<compile_context>
chip_gen: v5e
topology: v5e:2x2
jax: 0.10.0
libtpu: 0.0.40
codegen_flags: <defaults>
</compile_context>

<pallas_src>
import math

import numpy as np
import jax
import jax.numpy as jnp
from jax import lax
from jax.experimental import pallas as pl
from jax.experimental.pallas import tpu as pltpu


def _round_up(x, m):
    return (x + m - 1) // m * m


def _reflect1(t, n):
    """ReflectionPad2d(1) index map: t in [-1, n] -> source index in [0, n)."""
    if t < 0:
        return -t
    if t >= n:
        return 2 * n - 2 - t
    return t


def _pad_gather_matrix(B, H, W, k_pad):
    """One-hot (B*Hp2*Wp2, k_pad) matrix.

    Row b*Hp2*Wp2 + py*Wp2 + px picks, from the batch-stacked flat 2x2-max field of the
    stage-1 conv (row index b*Hp1*Wp1 + 2*h*Wp1 + 2*w), the pooled pixel that lands at
    reflection-padded position (py, px) of batch element b, i.e. it fuses "gather pooled rows"
    + "ReflectionPad2d(1)" into a single matmul.  Static asserts guarantee only valid conv
    pixels / pool windows are ever selected (junk slab rows are never touched).
    """
    Hp1, Wp1 = H + 2, W + 2
    P1 = Hp1 * Wp1
    Hq1, Wq1 = H // 2, W // 2
    Hp2, Wp2 = Hq1 + 2, Wq1 + 2
    L1 = (H - 1) * Wp1 + W
    n_src = (B - 1) * P1 + L1 - 1 - Wp1          # rows of the stacked 2x2-max field
    sel = np.zeros((B * Hp2 * Wp2, k_pad), np.float32)
    for b in range(B):
        for py in range(Hp2):
            for px in range(Wp2):
                h = _reflect1(py - 1, Hq1)
                w = _reflect1(px - 1, Wq1)
                # static correctness guards (review): the selected 2x2 pool window must read
                # only valid conv pixels (x <= W-1, y <= H-1), never junk slab rows.
                assert 0 <= h < Hq1 and 0 <= w < Wq1
                assert 2 * h + 1 <= H - 1 and 2 * w + 1 <= W - 1
                src = b * P1 + 2 * h * Wp1 + 2 * w
                assert src < n_src <= k_pad
                sel[b * Hp2 * Wp2 + py * Wp2 + px, src] = 1.0
    return sel


def _make_encoder_head_kernel(B, H, W, Cin, Cmid, Cout, sel_k):
    """Fused [ReflectionPad(1)+conv3x3+MaxPool2d(2)] x2 kernel for B stacked batch elements."""
    Hp1, Wp1 = H + 2, W + 2            # stage-1 padded input (supplied by the wrapper)
    Hq1, Wq1 = H // 2, W // 2          # stage-1 pooled map == stage-2 (unpadded) input
    Hp2, Wp2 = Hq1 + 2, Wq1 + 2        # stage-2 padded input (built in-kernel)
    Hq2, Wq2 = Hq1 // 2, Wq1 // 2      # final output spatial dims
    P1, P2 = Hp1 * Wp1, Hp2 * Wp2
    L1 = (H - 1) * Wp1 + W             # per-batch stage-1 slab length
    L2 = (Hq1 - 1) * Wp2 + Wq1         # per-batch stage-2 slab length
    Ls1 = (B - 1) * P1 + L1            # batch-stacked slab lengths (max tap offset + Ls == B*P)
    Ls2 = (B - 1) * P2 + L2
    NV1 = Ls1 - 1 - Wp1                # rows of the stacked stage-1 2x2-max field
    NV2 = Ls2 - 1 - Wp2
    assert NV1 <= sel_k

    out_rows = []
    for b in range(B):
        for h in range(Hq2):
            for w in range(Wq2):
                # static guards: the final pool window only reads valid conv-2 pixels.
                assert 2 * h + 1 <= Hq1 - 1 and 2 * w + 1 <= Wq1 - 1
                r = b * P2 + 2 * h * Wp2 + 2 * w
                assert r < NV2
                out_rows.append(r)

    def _tree_sum(xs):
        """Balanced pairwise sum (breaks the serial add chain -> more VPU ILP)."""
        while len(xs) > 1:
            nxt = [xs[i] + xs[i + 1] for i in range(0, len(xs) - 1, 2)]
            if len(xs) % 2:
                nxt.append(xs[-1])
            xs = nxt
        return xs[0]

    def kernel(xp1_ref, w1_ref, b1_ref, sel1_ref, w2_ref, b2_ref, o_ref, pad_ref):
        # ---- stage 1: ONE wide matmul against tap-stacked weights (N = 9*Cmid = 1152), ----
        # ---- then 8 shifted VPU adds of the per-tap column blocks.                      ----
        y1 = jnp.dot(xp1_ref[...], w1_ref[...], preferred_element_type=jnp.float32)
        taps1 = []
        for t in range(9):
            dy, dx = divmod(t, 3)
            off = dy * Wp1 + dx
            taps1.append(y1[off:off + Ls1, t * Cmid:(t + 1) * Cmid])
        # acc1[b*P1 + y*Wp1 + x] == conv1_b(y, x) for 0 <= y < H, 0 <= x < W (other rows junk).
        acc1 = _tree_sum(taps1)                                     # (Ls1, Cmid) f32

        # ---- stage 1: 2x2/stride-2 max-pool as a dense 2x2-max field (unit-stride slices) ----
        h1 = jnp.maximum(acc1[:-1, :], acc1[1:, :])                 # horizontal pairs
        v1 = jnp.maximum(h1[:-Wp1, :], h1[Wp1:, :])                 # + vertical pairs (NV1 rows)

        # ---- stage 1 -> 2 glue: bias (hoisted past the pool, exact: uniform per channel)  ----
        # added in f32, then one-hot gather + ReflectionPad2d(1) as a single bf16 matmul.
        # pad_ref is a persistent VMEM scratch so no zero-slab concatenate is materialized;
        # the tail is zeroed every step (scratch is per-core under "parallel" megacore).
        pad_ref[0:NV1, :] = v1 + b1_ref[...]
        if sel_k > NV1:
            pad_ref[NV1:, :] = jnp.zeros((sel_k - NV1, Cmid), jnp.float32)
        xp2 = jnp.dot(sel1_ref[...], pad_ref[...].astype(jnp.bfloat16),
                      preferred_element_type=jnp.float32)           # (B*P2, Cmid)
        xp2b = xp2.astype(jnp.bfloat16)                              # single cast for all 9 taps

        # ---- stage 2: same single wide matmul + shifted adds -------------------------------
        y2 = jnp.dot(xp2b, w2_ref[...], preferred_element_type=jnp.float32)
        taps2 = []
        for t in range(9):
            dy, dx = divmod(t, 3)
            off = dy * Wp2 + dx
            taps2.append(y2[off:off + Ls2, t * Cout:(t + 1) * Cout])
        acc2 = _tree_sum(taps2)                                      # (Ls2, Cout) f32

        # ---- stage 2: 2x2/stride-2 max-pool + bias; one lane-dense 8-sublane output store ---
        h2 = jnp.maximum(acc2[:-1, :], acc2[1:, :])
        v2 = jnp.maximum(h2[:-Wp2, :], h2[Wp2:, :])
        # B*Hq2*Wq2 (= 8 here) single-row picks; fine at this size (one-hot matmul if it grows).
        pooled = jnp.concatenate([v2[r:r + 1, :] for r in out_rows], axis=0)
        o_ref[...] = (pooled + b2_ref[...]).astype(o_ref.dtype)

    return kernel


def encoder_head_pallas(feat, w1, b1, w2, b2):
    """pool2(Conv3x3(feat)) -> pool2(Conv3x3(.)), ReflectionPad2d(1) convs.  NCHW in/out."""
    N, Cin, H, W = feat.shape
    Cmid, Cout = int(w1.shape[0]), int(w2.shape[0])
    assert H % 4 == 0 and W % 4 == 0, "two 2x2 max-pools need H, W divisible by 4"

    # Batch block per grid step (review opt: stack batch along M).  B=2 keeps the grid length
    # >= 2 for batch >= 4 so both v7x TensorCores stay busy; odd batches are zero-padded.
    B = 1 if N == 1 else 2
    if N % B:
        feat = jnp.concatenate(
            [feat, jnp.zeros((B - N % B,) + feat.shape[1:], feat.dtype)], axis=0)
    Np = feat.shape[0]

    Hp1, Wp1 = H + 2, W + 2
    Hq1, Wq1 = H // 2, W // 2
    Hp2, Wp2 = Hq1 + 2, Wq1 + 2
    Hq2, Wq2 = Hq1 // 2, Wq1 // 2
    P1, P2 = Hp1 * Wp1, Hp2 * Wp2
    L1 = (H - 1) * Wp1 + W
    NV1 = (B - 1) * P1 + L1 - 1 - Wp1
    sel_k = _round_up(NV1, 128)        # lane-aligned contraction dim for the gather matmul

    # One NCHW -> NHWC transpose + reflection pad at head entry; everything else (both convs,
    # both pools, stage-2 pad) runs inside a single fused pallas_call (no HBM round trip).
    # The slab is flattened to 2-D so each grid step DMAs B*P1 contiguous, aligned rows.
    x = jnp.transpose(feat, (0, 2, 3, 1))
    xp = jnp.pad(x, ((0, 0), (1, 1), (1, 1), (0, 0)), mode="reflect")
    xpf = xp.reshape(Np * P1, Cin).astype(jnp.bfloat16)

    # Tap-stacked weights: (Cout, Cin, 3, 3) -> (Cin, 9*Cout); column block t = dy*3 + dx.
    w1s = jnp.transpose(w1, (1, 2, 3, 0)).reshape(Cin, 9 * Cmid).astype(jnp.bfloat16)
    w2s = jnp.transpose(w2, (1, 2, 3, 0)).reshape(Cmid, 9 * Cout).astype(jnp.bfloat16)
    b1k = b1.reshape(1, Cmid).astype(jnp.float32)
    b2k = b2.reshape(1, Cout).astype(jnp.float32)
    sel1 = jnp.asarray(_pad_gather_matrix(B, H, W, sel_k), dtype=jnp.bfloat16)

    kernel = _make_encoder_head_kernel(B, H, W, Cin, Cmid, Cout, sel_k)

    flops = 2 * Np * (P1 * Cin * 9 * Cmid + P2 * sel_k * Cmid + P2 * Cmid * 9 * Cout)
    bytes_accessed = (xpf.size * 2 + w1s.size * 2 + w2s.size * 2 + sel1.size * 2
                      + b1k.size * 4 + b2k.size * 4 + Np * Hq2 * Wq2 * Cout * 4)

    out = pl.pallas_call(
        kernel,
        out_shape=jax.ShapeDtypeStruct((Np * Hq2 * Wq2, Cout), jnp.float32),
        grid=(Np // B,),
        in_specs=[
            pl.BlockSpec((B * P1, Cin), lambda n: (n, 0)),
            pl.BlockSpec((Cin, 9 * Cmid), lambda n: (0, 0)),
            pl.BlockSpec((1, Cmid), lambda n: (0, 0)),
            pl.BlockSpec((B * P2, sel_k), lambda n: (0, 0)),
            pl.BlockSpec((Cmid, 9 * Cout), lambda n: (0, 0)),
            pl.BlockSpec((1, Cout), lambda n: (0, 0)),
        ],
        out_specs=pl.BlockSpec((B * Hq2 * Wq2, Cout), lambda n: (n, 0)),
        scratch_shapes=[pltpu.VMEM((sel_k, Cmid), jnp.float32)],
        # Batch-block axis stays parallel so multi-TensorCore parts (megacore / v7x) split it.
        compiler_params=pltpu.CompilerParams(dimension_semantics=("parallel",)),
        cost_estimate=pl.CostEstimate(flops=flops, transcendentals=0,
                                      bytes_accessed=bytes_accessed),
    )(xpf, w1s, b1k, sel1, w2s, b2k)

    out = out[:N * Hq2 * Wq2].reshape(N, Hq2, Wq2, Cout)
    return jnp.transpose(out, (0, 3, 1, 2))      # back to NCHW (PyTorch layout)


@jax.jit
def encoder_head(feat, w1, b1, w2, b2):
    """Encoder.forward after the resnet backbone: pool(conv1(feat)) -> pool(conv2(.))."""
    return encoder_head_pallas(feat, w1, b1, w2, b2)


# ---------------- pure-JAX fp32 reference (for correctness check) ----------------
def _reference_stage(x, w, b):
    xp = jnp.pad(x, ((0, 0), (0, 0), (1, 1), (1, 1)), mode="reflect")
    y = lax.conv_general_dilated(
        xp, w, (1, 1), "VALID",
        dimension_numbers=("NCHW", "OIHW", "NCHW"),
        precision=lax.Precision.HIGHEST)
    y = y + b[None, :, None, None]
    y = lax.reduce_window(y, -jnp.inf, lax.max, (1, 1, 2, 2), (1, 1, 2, 2), "VALID")
    return y


def reference_head(feat, w1, b1, w2, b2):
    return _reference_stage(_reference_stage(feat, w1, b1), w2, b2)


if __name__ == "__main__":
    key = jax.random.PRNGKey(0)
    # small shapes: batch=4, last resnet18 feature map (512 channels, 8x8 spatial)
    N, C_feat, Hf, Wf = 4, 512, 8, 8
    k_x, k_w1, k_b1, k_w2, k_b2 = jax.random.split(key, 5)

    def conv_init(kw, kb, cin, cout):
        bound = 1.0 / math.sqrt(cin * 9)   # PyTorch Conv2d default-style uniform init
        w = jax.random.uniform(kw, (cout, cin, 3, 3), jnp.float32, -bound, bound)
        b = jax.random.uniform(kb, (cout,), jnp.float32, -bound, bound)
        return w, b

    feat = jax.random.normal(k_x, (N, C_feat, Hf, Wf), jnp.float32)
    w1, b1 = conv_init(k_w1, k_b1, C_feat, 128)
    w2, b2 = conv_init(k_w2, k_b2, 128, 128)

    out = encoder_head(feat, w1, b1, w2, b2)
    out = jax.block_until_ready(out)

    assert out.shape == (N, 128, Hf // 4, Wf // 4), out.shape

    # Kernel computes on the bf16 MXU path (f32 accumulation); reference is fp32, so use a
    # bf16-appropriate tolerance (observed errors are a few 1e-3).
    ref = reference_head(feat, w1, b1, w2, b2)
    if not bool(jnp.allclose(out, ref, atol=1.5e-2, rtol=1.5e-2)):
        raise RuntimeError(
            f"mismatch vs reference, max abs err = {float(jnp.max(jnp.abs(out - ref)))}")

    print("KERNEL_OK")
</pallas_src>

<mosaic_0001>
module attributes {stable_mosaic.version = 11 : i64} {
  func.func @kernel(%arg0: i32, %arg1: memref<200x512xbf16, #tpu.memory_space<vmem>>, %arg2: memref<512x1152xbf16, #tpu.memory_space<vmem>>, %arg3: memref<1x128xf32, #tpu.memory_space<vmem>>, %arg4: memref<72x256xbf16, #tpu.memory_space<vmem>>, %arg5: memref<128x1152xbf16, #tpu.memory_space<vmem>>, %arg6: memref<1x128xf32, #tpu.memory_space<vmem>>, %arg7: memref<8x128xf32, #tpu.memory_space<vmem>>, %arg8: memref<256x128xf32, #tpu.memory_space<vmem>>) attributes {dimension_semantics = [#tpu.dimension_semantics<parallel>], iteration_bounds = array<i64: 2>, scalar_prefetch = 0 : i64, scratch_operands = 1 : i64, tpu.core_type = #tpu.core_type<tc>, window_params = [{transform_indices = @transform_0, window_bounds = array<i64: 200, 512>}, {pipeline_mode = #tpu.pipeline_mode<synchronous>, transform_indices = @transform_1, window_bounds = array<i64: 512, 1152>}, {pipeline_mode = #tpu.pipeline_mode<synchronous>, transform_indices = @transform_2, window_bounds = array<i64: 1, 128>}, {pipeline_mode = #tpu.pipeline_mode<synchronous>, transform_indices = @transform_3, window_bounds = array<i64: 72, 256>}, {pipeline_mode = #tpu.pipeline_mode<synchronous>, transform_indices = @transform_4, window_bounds = array<i64: 128, 1152>}, {pipeline_mode = #tpu.pipeline_mode<synchronous>, transform_indices = @transform_5, window_bounds = array<i64: 1, 128>}, {transform_indices = @transform_6, window_bounds = array<i64: 8, 128>}]} {
    %c0 = arith.constant 0 : index
    %c0_0 = arith.constant 0 : index
    %0 = vector.load %arg1[%c0, %c0_0] : memref<200x512xbf16, #tpu.memory_space<vmem>>, vector<200x512xbf16>
    %c0_1 = arith.constant 0 : index
    %c0_2 = arith.constant 0 : index
    %1 = vector.load %arg2[%c0_1, %c0_2] : memref<512x1152xbf16, #tpu.memory_space<vmem>>, vector<512x1152xbf16>
    %cst = arith.constant dense<0.000000e+00> : vector<200x1152xf32>
    %2 = tpu.matmul %0, %1, %cst {dimension_numbers = #tpu.dot_dimension_numbers<[1], [0], [0], [1], [0, 0, 1, 1], [], []>} : vector<200x512xbf16>, vector<512x1152xbf16>, vector<200x1152xf32> -> vector<200x1152xf32>
    %3 = vector.extract_strided_slice %2 {offsets = [0, 0], sizes = [178, 128], strides = [1, 1]} : vector<200x1152xf32> to vector<178x128xf32>
    %4 = vector.extract_strided_slice %2 {offsets = [1, 128], sizes = [178, 128], strides = [1, 1]} : vector<200x1152xf32> to vector<178x128xf32>
    %5 = vector.extract_strided_slice %2 {offsets = [2, 256], sizes = [178, 128], strides = [1, 1]} : vector<200x1152xf32> to vector<178x128xf32>
    %6 = vector.extract_strided_slice %2 {offsets = [10, 384], sizes = [178, 128], strides = [1, 1]} : vector<200x1152xf32> to vector<178x128xf32>
    %7 = vector.extract_strided_slice %2 {offsets = [11, 512], sizes = [178, 128], strides = [1, 1]} : vector<200x1152xf32> to vector<178x128xf32>
    %8 = vector.extract_strided_slice %2 {offsets = [12, 640], sizes = [178, 128], strides = [1, 1]} : vector<200x1152xf32> to vector<178x128xf32>
    %9 = vector.extract_strided_slice %2 {offsets = [20, 768], sizes = [178, 128], strides = [1, 1]} : vector<200x1152xf32> to vector<178x128xf32>
    %10 = vector.extract_strided_slice %2 {offsets = [21, 896], sizes = [178, 128], strides = [1, 1]} : vector<200x1152xf32> to vector<178x128xf32>
    %11 = vector.extract_strided_slice %2 {offsets = [22, 1024], sizes = [178, 128], strides = [1, 1]} : vector<200x1152xf32> to vector<178x128xf32>
    %12 = arith.addf %3, %4 : vector<178x128xf32>
    %13 = arith.addf %5, %6 : vector<178x128xf32>
    %14 = arith.addf %7, %8 : vector<178x128xf32>
    %15 = arith.addf %9, %10 : vector<178x128xf32>
    %16 = arith.addf %12, %13 : vector<178x128xf32>
    %17 = arith.addf %14, %15 : vector<178x128xf32>
    %18 = arith.addf %16, %17 : vector<178x128xf32>
    %19 = arith.addf %18, %11 : vector<178x128xf32>
    %20 = vector.extract_strided_slice %19 {offsets = [0, 0], sizes = [177, 128], strides = [1, 1]} : vector<178x128xf32> to vector<177x128xf32>
    %21 = vector.extract_strided_slice %19 {offsets = [1, 0], sizes = [177, 128], strides = [1, 1]} : vector<178x128xf32> to vector<177x128xf32>
    %22 = arith.maximumf %20, %21 : vector<177x128xf32>
    %23 = vector.extract_strided_slice %22 {offsets = [0, 0], sizes = [167, 128], strides = [1, 1]} : vector<177x128xf32> to vector<167x128xf32>
    %24 = vector.extract_strided_slice %22 {offsets = [10, 0], sizes = [167, 128], strides = [1, 1]} : vector<177x128xf32> to vector<167x128xf32>
    %25 = arith.maximumf %23, %24 : vector<167x128xf32>
    %c0_3 = arith.constant 0 : index
    %c0_4 = arith.constant 0 : index
    %26 = vector.load %arg3[%c0_3, %c0_4] : memref<1x128xf32, #tpu.memory_space<vmem>>, vector<1x128xf32>
    %27 = vector.broadcast %26 : vector<1x128xf32> to vector<167x128xf32>
    %28 = arith.addf %25, %27 : vector<167x128xf32>
    %c0_5 = arith.constant 0 : index
    %c0_6 = arith.constant 0 : index
    %29 = vector.load %arg8[%c0_5, %c0_6] : memref<256x128xf32, #tpu.memory_space<vmem>>, vector<167x128xf32>
    tpu.vector_store %arg8[%c0_5, %c0_6], %28 {strides = array<i32>} : memref<256x128xf32, #tpu.memory_space<vmem>>, vector<167x128xf32>,
    %cst_7 = arith.constant 0.000000e+00 : f32
    %30 = vector.broadcast %cst_7 : f32 to vector<89x128xf32>
    %c167 = arith.constant 167 : index
    %c0_8 = arith.constant 0 : index
    %31 = vector.load %arg8[%c167, %c0_8] : memref<256x128xf32, #tpu.memory_space<vmem>>, vector<89x128xf32>
    tpu.vector_store %arg8[%c167, %c0_8], %30 {strides = array<i32>} : memref<256x128xf32, #tpu.memory_space<vmem>>, vector<89x128xf32>,
    %c0_9 = arith.constant 0 : index
    %c0_10 = arith.constant 0 : index
    %32 = vector.load %arg4[%c0_9, %c0_10] : memref<72x256xbf16, #tpu.memory_space<vmem>>, vector<72x256xbf16>
    %c0_11 = arith.constant 0 : index
    %c0_12 = arith.constant 0 : index
    %33 = vector.load %arg8[%c0_11, %c0_12] : memref<256x128xf32, #tpu.memory_space<vmem>>, vector<256x128xf32>
    %34 = arith.truncf %33 : vector<256x128xf32> to vector<256x128xbf16>
    %cst_13 = arith.constant dense<0.000000e+00> : vector<72x128xf32>
    %35 = tpu.matmul %32, %34, %cst_13 {dimension_numbers = #tpu.dot_dimension_numbers<[1], [0], [0], [1], [0, 0, 1, 1], [], []>} : vector<72x256xbf16>, vector<256x128xbf16>, vector<72x128xf32> -> vector<72x128xf32>
    %36 = arith.truncf %35 : vector<72x128xf32> to vector<72x128xbf16>
    %c0_14 = arith.constant 0 : index
    %c0_15 = arith.constant 0 : index
    %37 = vector.load %arg5[%c0_14, %c0_15] : memref<128x1152xbf16, #tpu.memory_space<vmem>>, vector<128x1152xbf16>
    %cst_16 = arith.constant dense<0.000000e+00> : vector<72x1152xf32>
    %38 = tpu.matmul %36, %37, %cst_16 {dimension_numbers = #tpu.dot_dimension_numbers<[1], [0], [0], [1], [0, 0, 1, 1], [], []>} : vector<72x128xbf16>, vector<128x1152xbf16>, vector<72x1152xf32> -> vector<72x1152xf32>
    %39 = vector.extract_strided_slice %38 {offsets = [0, 0], sizes = [58, 128], strides = [1, 1]} : vector<72x1152xf32> to vector<58x128xf32>
    %40 = vector.extract_strided_slice %38 {offsets = [1, 128], sizes = [58, 128], strides = [1, 1]} : vector<72x1152xf32> to vector<58x128xf32>
    %41 = vector.extract_strided_slice %38 {offsets = [2, 256], sizes = [58, 128], strides = [1, 1]} : vector<72x1152xf32> to vector<58x128xf32>
    %42 = vector.extract_strided_slice %38 {offsets = [6, 384], sizes = [58, 128], strides = [1, 1]} : vector<72x1152xf32> to vector<58x128xf32>
    %43 = vector.extract_strided_slice %38 {offsets = [7, 512], sizes = [58, 128], strides = [1, 1]} : vector<72x1152xf32> to vector<58x128xf32>
    %44 = vector.extract_strided_slice %38 {offsets = [8, 640], sizes = [58, 128], strides = [1, 1]} : vector<72x1152xf32> to vector<58x128xf32>
    %45 = vector.extract_strided_slice %38 {offsets = [12, 768], sizes = [58, 128], strides = [1, 1]} : vector<72x1152xf32> to vector<58x128xf32>
    %46 = vector.extract_strided_slice %38 {offsets = [13, 896], sizes = [58, 128], strides = [1, 1]} : vector<72x1152xf32> to vector<58x128xf32>
    %47 = vector.extract_strided_slice %38 {offsets = [14, 1024], sizes = [58, 128], strides = [1, 1]} : vector<72x1152xf32> to vector<58x128xf32>
    %48 = arith.addf %39, %40 : vector<58x128xf32>
    %49 = arith.addf %41, %42 : vector<58x128xf32>
    %50 = arith.addf %43, %44 : vector<58x128xf32>
    %51 = arith.addf %45, %46 : vector<58x128xf32>
    %52 = arith.addf %48, %49 : vector<58x128xf32>
    %53 = arith.addf %50, %51 : vector<58x128xf32>
    %54 = arith.addf %52, %53 : vector<58x128xf32>
    %55 = arith.addf %54, %47 : vector<58x128xf32>
    %56 = vector.extract_strided_slice %55 {offsets = [0, 0], sizes = [57, 128], strides = [1, 1]} : vector<58x128xf32> to vector<57x128xf32>
    %57 = vector.extract_strided_slice %55 {offsets = [1, 0], sizes = [57, 128], strides = [1, 1]} : vector<58x128xf32> to vector<57x128xf32>
    %58 = arith.maximumf %56, %57 : vector<57x128xf32>
    %59 = vector.extract_strided_slice %58 {offsets = [0, 0], sizes = [51, 128], strides = [1, 1]} : vector<57x128xf32> to vector<51x128xf32>
    %60 = vector.extract_strided_slice %58 {offsets = [6, 0], sizes = [51, 128], strides = [1, 1]} : vector<57x128xf32> to vector<51x128xf32>
    %61 = arith.maximumf %59, %60 : vector<51x128xf32>
    %62 = vector.extract_strided_slice %61 {offsets = [0, 0], sizes = [1, 128], strides = [1, 1]} : vector<51x128xf32> to vector<1x128xf32>
    %63 = vector.extract_strided_slice %61 {offsets = [2, 0], sizes = [1, 128], strides = [1, 1]} : vector<51x128xf32> to vector<1x128xf32>
    %64 = vector.extract_strided_slice %61 {offsets = [12, 0], sizes = [1, 128], strides = [1, 1]} : vector<51x128xf32> to vector<1x128xf32>
    %65 = vector.extract_strided_slice %61 {offsets = [14, 0], sizes = [1, 128], strides = [1, 1]} : vector<51x128xf32> to vector<1x128xf32>
    %66 = vector.extract_strided_slice %61 {offsets = [36, 0], sizes = [1, 128], strides = [1, 1]} : vector<51x128xf32> to vector<1x128xf32>
    %67 = vector.extract_strided_slice %61 {offsets = [38, 0], sizes = [1, 128], strides = [1, 1]} : vector<51x128xf32> to vector<1x128xf32>
    %68 = vector.extract_strided_slice %61 {offsets = [48, 0], sizes = [1, 128], strides = [1, 1]} : vector<51x128xf32> to vector<1x128xf32>
    %69 = vector.extract_strided_slice %61 {offsets = [50, 0], sizes = [1, 128], strides = [1, 1]} : vector<51x128xf32> to vector<1x128xf32>
    %70 = tpu.concatenate %62, %63, %64, %65, %66, %67, %68, %69 in 0 : vector<1x128xf32>, vector<1x128xf32>, vector<1x128xf32>, vector<1x128xf32>, vector<1x128xf32>, vector<1x128xf32>, vector<1x128xf32>, vector<1x128xf32> -> vector<8x128xf32>
    %c0_17 = arith.constant 0 : index
    %c0_18 = arith.constant 0 : index
    %71 = vector.load %arg6[%c0_17, %c0_18] : memref<1x128xf32, #tpu.memory_space<vmem>>, vector<1x128xf32>
    %72 = vector.broadcast %71 : vector<1x128xf32> to vector<8x128xf32>
    %73 = arith.addf %70, %72 : vector<8x128xf32>
    %c0_19 = arith.constant 0 : index
    %c0_20 = arith.constant 0 : index
    %74 = vector.load %arg7[%c0_19, %c0_20] : memref<8x128xf32, #tpu.memory_space<vmem>>, vector<8x128xf32>
    tpu.vector_store %arg7[%c0_19, %c0_20], %73 {strides = array<i32>} : memref<8x128xf32, #tpu.memory_space<vmem>>, vector<8x128xf32>,
    return
  }
  func.func @transform_0(%arg0: i32) -> (i32, i32) {
    %c0_i32 = arith.constant 0 : i32
    %c0_i32_0 = arith.constant 0 : i32
    return %arg0, %c0_i32 : i32, i32
  }
  func.func @transform_1(%arg0: i32) -> (i32, i32) {
    %c0_i32 = arith.constant 0 : i32
    %c0_i32_0 = arith.constant 0 : i32
    %c0_i32_1 = arith.constant 0 : i32
    return %c0_i32, %c0_i32_0 : i32, i32
  }
  func.func @transform_2(%arg0: i32) -> (i32, i32) {
    %c0_i32 = arith.constant 0 : i32
    %c0_i32_0 = arith.constant 0 : i32
    %c0_i32_1 = arith.constant 0 : i32
    return %c0_i32, %c0_i32_0 : i32, i32
  }
  func.func @transform_3(%arg0: i32) -> (i32, i32) {
    %c0_i32 = arith.constant 0 : i32
    %c0_i32_0 = arith.constant 0 : i32
    %c0_i32_1 = arith.constant 0 : i32
    return %c0_i32, %c0_i32_0 : i32, i32
  }
  func.func @transform_4(%arg0: i32) -> (i32, i32) {
    %c0_i32 = arith.constant 0 : i32
    %c0_i32_0 = arith.constant 0 : i32
    %c0_i32_1 = arith.constant 0 : i32
    return %c0_i32, %c0_i32_0 : i32, i32
  }
  func.func @transform_5(%arg0: i32) -> (i32, i32) {
    %c0_i32 = arith.constant 0 : i32
    %c0_i32_0 = arith.constant 0 : i32
    %c0_i32_1 = arith.constant 0 : i32
    return %c0_i32, %c0_i32_0 : i32, i32
  }
  func.func @transform_6(%arg0: i32) -> (i32, i32) {
    %c0_i32 = arith.constant 0 : i32
    %c0_i32_0 = arith.constant 0 : i32
    return %arg0, %c0_i32 : i32, i32
  }
}

</mosaic_0001>

<llo_original>
// kernel: encoder_head.1
$region0: #{encoder_head.1}
  #allocation0 [shape = 'u32[]', space=smem, size = 0x4, offset = 0x4, fixed_abs, tag = 'smem constant byte address 0x4 - core index']
  #allocation1 [shape = 'u32[72,128]{1,0:T(1,128)}', space=vmem, size = 0x9000, scoped, tag = 'internal scratch']
  #allocation2 [shape = 'f32[256,128]{1,0:T(8,128)}', space=vmem, size = 0x20000, scoped, tag = 'scratch operand']
  %s0 = inlined_call_operand.vmem [shape: bf16[400,512], index: 0, kind: input, shape index: {}]
  %s1 = inlined_call_operand.vmem [shape: bf16[512,1152], index: 1, kind: input, shape index: {}]
  %s2 = inlined_call_operand.vmem [shape: f32[1,128], index: 2, kind: input, shape index: {}]
  %s3 = inlined_call_operand.vmem [shape: bf16[72,256], index: 3, kind: input, shape index: {}]
  %s4 = inlined_call_operand.vmem [shape: bf16[128,1152], index: 4, kind: input, shape index: {}]
  %s5 = inlined_call_operand.vmem [shape: f32[1,128], index: 5, kind: input, shape index: {}]
  %s6 = inlined_call_operand.hbm [shape: f32[16,128], index: 6, kind: output, shape index: {}]
  %s7 = sld [smem:[#allocation0]]
  $region57: #{encoder_head.1} parent=0
    _
  %s9 = ssub.s32 1, %s7
  %s10 = scalar_select 0, %s9, %s7
  $region1: #{encoder_head.1} parent=0
    #allocation3 [shape = 'u8[8192]{0}', space=vmem, size = 0x2000, scoped, tag = 'output window, operand 0']
    #allocation4 [shape = 's32[2]{0}', space=sflag, size = 0x8, scoped, tag = 'scoped memory for encoder_head.1']
    %11 = vsyncpa [#allocation4], 0
    %s12 = scalar_lea.sflag [#allocation4], 1
    %13 = vsyncpa %s12, 0
    loop: start=0, step=1, limit=4
    $region2: #{encoder_head.1} parent=1 // loop_pre_header
      _
    $region3: #{encoder_head.1} parent=1 // loop_header
      %s15 = sphi 0, %s19
      %p16 = scmp.ge.s32.totalorder %s15, 4
      %s25 = sphi 0, %s27
      %s28 = sphi 0, %s25
      %s29 = sphi 0, %s28
      %s45 = sphi 0, %s29
      %s49 = sphi 0, %s49
      %s51 = sphi 0, %s49
      %s52 = sphi 0, %s51
      %s66 = sphi 0, %s52
      %s70 = sphi 0, %s70
      %s72 = sphi 0, %s70
      %s73 = sphi 0, %s72
      %s87 = sphi 0, %s73
      %s91 = sphi 0, %s91
      %s93 = sphi 0, %s91
      %s94 = sphi 0, %s93
      %s108 = sphi 0, %s94
      %s112 = sphi 0, %s112
      %s114 = sphi 0, %s112
      %s115 = sphi 0, %s114
      %s129 = sphi 0, %s115
      %s133 = sphi 0, %s133
      %s135 = sphi 0, %s133
      %s136 = sphi 0, %s135
      %s150 = sphi 0, %s136
      %s156 = sphi 0, %s158
      %s159 = sphi 0, %s156
      %s160 = sphi 0, %s159
      %s176 = sphi 0, %s160
    $region4: #{encoder_head.1} parent=1 // loop_header_branch
      %18 = sbr.rel (%p16) target = $region8
    $region5: #{encoder_head.1} parent=1 // loop_body
      %s20 = ssub.s32 %s15, 1
      %s21 = ssub.s32 %s15, 2
      %s22 = sadd.s32 %s15, 1
      %s23 = ssub.s32 %s15, %s22
      %p24 = scmp.eq.s32.totalorder %s23, 0
      %s26 = sadd.s32 %s25, 1
      %s27 = scalar_select %p24, %s25, %s26
      %p30 = pneg %p24
      %p31 = scmp.eq.s32.totalorder %s15, 1
      %p32 = por %p30, %p31
      %p33 = scmp.ne.s32.totalorder %s25, %s28
      %p34 = scmp.eq.s32.totalorder %s15, 0
      %p35 = por %p33, %p34
      %p36 = scmp.ne.s32.totalorder %s25, %s28
      %p37 = scmp.eq.s32.totalorder %s20, 1
      %p38 = por %p36, %p37
      %p39 = scmp.ne.s32.totalorder %s28, %s29
      %p40 = scmp.eq.s32.totalorder %s20, 0
      %p41 = por %p39, %p40
      %p42 = scmp.ne.s32.totalorder %s28, %s29
      %p43 = scmp.eq.s32.totalorder %s21, 1
      %p44 = por %p42, %p43
      %p46 = scmp.ne.s32.totalorder %s29, %s45
      %p47 = scmp.eq.s32.totalorder %s21, 0
      %p48 = por %p46, %p47
      %s50 = sadd.s32 %s49, 1
      %p53 = scmp.eq.s32.totalorder %s15, 1
      %p54 = scmp.ne.s32.totalorder %s49, %s51
      %p55 = scmp.eq.s32.totalorder %s15, 0
      %p56 = por %p54, %p55
      %p57 = scmp.ne.s32.totalorder %s49, %s51
      %p58 = scmp.eq.s32.totalorder %s20, 1
      %p59 = por %p57, %p58
      %p60 = scmp.ne.s32.totalorder %s51, %s52
      %p61 = scmp.eq.s32.totalorder %s20, 0
      %p62 = por %p60, %p61
      %p63 = scmp.ne.s32.totalorder %s51, %s52
      %p64 = scmp.eq.s32.totalorder %s21, 1
      %p65 = por %p63, %p64
      %p67 = scmp.ne.s32.totalorder %s52, %s66
      %p68 = scmp.eq.s32.totalorder %s21, 0
      %p69 = por %p67, %p68
      %s71 = sadd.s32 %s70, 1
      %p74 = scmp.eq.s32.totalorder %s15, 1
      %p75 = scmp.ne.s32.totalorder %s70, %s72
      %p76 = scmp.eq.s32.totalorder %s15, 0
      %p77 = por %p75, %p76
      %p78 = scmp.ne.s32.totalorder %s70, %s72
      %p79 = scmp.eq.s32.totalorder %s20, 1
      %p80 = por %p78, %p79
      %p81 = scmp.ne.s32.totalorder %s72, %s73
      %p82 = scmp.eq.s32.totalorder %s20, 0
      %p83 = por %p81, %p82
      %p84 = scmp.ne.s32.totalorder %s72, %s73
      %p85 = scmp.eq.s32.totalorder %s21, 1
      %p86 = por %p84, %p85
      %p88 = scmp.ne.s32.totalorder %s73, %s87
      %p89 = scmp.eq.s32.totalorder %s21, 0
      %p90 = por %p88, %p89
      %s92 = sadd.s32 %s91, 1
      %p95 = scmp.eq.s32.totalorder %s15, 1
      %p96 = scmp.ne.s32.totalorder %s91, %s93
      %p97 = scmp.eq.s32.totalorder %s15, 0
      %p98 = por %p96, %p97
      %p99 = scmp.ne.s32.totalorder %s91, %s93
      %p100 = scmp.eq.s32.totalorder %s20, 1
      %p101 = por %p99, %p100
      %p102 = scmp.ne.s32.totalorder %s93, %s94
      %p103 = scmp.eq.s32.totalorder %s20, 0
      %p104 = por %p102, %p103
      %p105 = scmp.ne.s32.totalorder %s93, %s94
      %p106 = scmp.eq.s32.totalorder %s21, 1
      %p107 = por %p105, %p106
      %p109 = scmp.ne.s32.totalorder %s94, %s108
      %p110 = scmp.eq.s32.totalorder %s21, 0
      %p111 = por %p109, %p110
      %s113 = sadd.s32 %s112, 1
      %p116 = scmp.eq.s32.totalorder %s15, 1
      %p117 = scmp.ne.s32.totalorder %s112, %s114
      %p118 = scmp.eq.s32.totalorder %s15, 0
      %p119 = por %p117, %p118
      %p120 = scmp.ne.s32.totalorder %s112, %s114
      %p121 = scmp.eq.s32.totalorder %s20, 1
      %p122 = por %p120, %p121
      %p123 = scmp.ne.s32.totalorder %s114, %s115
      %p124 = scmp.eq.s32.totalorder %s20, 0
      %p125 = por %p123, %p124
      %p126 = scmp.ne.s32.totalorder %s114, %s115
      %p127 = scmp.eq.s32.totalorder %s21, 1
      %p128 = por %p126, %p127
      %p130 = scmp.ne.s32.totalorder %s115, %s129
      %p131 = scmp.eq.s32.totalorder %s21, 0
      %p132 = por %p130, %p131
      %s134 = sadd.s32 %s133, 1
      %p137 = scmp.eq.s32.totalorder %s15, 1
      %p138 = scmp.ne.s32.totalorder %s133, %s135
      %p139 = scmp.eq.s32.totalorder %s15, 0
      %p140 = por %p138, %p139
      %p141 = scmp.ne.s32.totalorder %s133, %s135
      %p142 = scmp.eq.s32.totalorder %s20, 1
      %p143 = por %p141, %p142
      %p144 = scmp.ne.s32.totalorder %s135, %s136
      %p145 = scmp.eq.s32.totalorder %s20, 0
      %p146 = por %p144, %p145
      %p147 = scmp.ne.s32.totalorder %s135, %s136
      %p148 = scmp.eq.s32.totalorder %s21, 1
      %p149 = por %p147, %p148
      %p151 = scmp.ne.s32.totalorder %s136, %s150
      %p152 = scmp.eq.s32.totalorder %s21, 0
      %p153 = por %p151, %p152
      %s154 = ssub.s32 %s15, %s22
      %p155 = scmp.eq.s32.totalorder %s154, 0
      %s157 = sadd.s32 %s156, 1
      %s158 = scalar_select %p155, %s156, %s157
      %p161 = pneg %p155
      %p162 = scmp.eq.s32.totalorder %s15, 1
      %p163 = por %p161, %p162
      %p164 = scmp.ne.s32.totalorder %s156, %s159
      %p165 = scmp.eq.s32.totalorder %s15, 0
      %p166 = por %p164, %p165
      %p167 = scmp.ne.s32.totalorder %s156, %s159
      %p168 = scmp.eq.s32.totalorder %s20, 1
      %p169 = por %p167, %p168
      %p170 = scmp.ne.s32.totalorder %s159, %s160
      %p171 = scmp.eq.s32.totalorder %s20, 0
      %p172 = por %p170, %p171
      %p173 = scmp.ne.s32.totalorder %s159, %s160
      %p174 = scmp.eq.s32.totalorder %s21, 1
      %p175 = por %p173, %p174
      %p177 = scmp.ne.s32.totalorder %s160, %s176
      %p178 = scmp.eq.s32.totalorder %s21, 0
      %p179 = por %p177, %p178
      %p180 = scmp.le.s32.totalorder 1, %s15
      %p181 = scmp.lt.s32.totalorder %s15, 3
      %p182 = pnand %p180, %p181
      %p183 = pneg %p182
      // Predicated region
      $region9: #{encoder_head.1} parent=5 // pred_check
        _
      $region10: #{encoder_head.1} parent=5 // pred_check_branch
        %185 = sbr.rel (%p182) target = $region12
      $region11: #{encoder_head.1} parent=5 // pred_region
        %s186 = ssub.s32 %s15, 1
        // Predicated region
        $region13: #{encoder_head.1} parent=11 // pred_check
          %p187 = pneg %p62
        $region14: #{encoder_head.1} parent=11 // pred_check_branch
          %189 = sbr.rel (%p187) target = $region16
        $region15: #{encoder_head.1} parent=11 // pred_region
          _
        $region16: #{encoder_head.1} parent=11 // pred_fallthru
          _
        // Predicated region
        $region17: #{encoder_head.1} parent=11 // pred_check
          %p190 = pneg %p83
        $region18: #{encoder_head.1} parent=11 // pred_check_branch
          %192 = sbr.rel (%p190) target = $region20
        $region19: #{encoder_head.1} parent=11 // pred_region
          _
        $region20: #{encoder_head.1} parent=11 // pred_fallthru
          _
        // Predicated region
        $region21: #{encoder_head.1} parent=11 // pred_check
          %p193 = pneg %p104
        $region22: #{encoder_head.1} parent=11 // pred_check_branch
          %195 = sbr.rel (%p193) target = $region24
        $region23: #{encoder_head.1} parent=11 // pred_region
          _
        $region24: #{encoder_head.1} parent=11 // pred_fallthru
          _
        // Predicated region
        $region25: #{encoder_head.1} parent=11 // pred_check
          %p196 = pneg %p125
        $region26: #{encoder_head.1} parent=11 // pred_check_branch
          %198 = sbr.rel (%p196) target = $region28
        $region27: #{encoder_head.1} parent=11 // pred_region
          _
        $region28: #{encoder_head.1} parent=11 // pred_fallthru
          _
        // Predicated region
        $region29: #{encoder_head.1} parent=11 // pred_check
          %p199 = pneg %p146
        $region30: #{encoder_head.1} parent=11 // pred_check_branch
          %201 = sbr.rel (%p199) target = $region32
        $region31: #{encoder_head.1} parent=11 // pred_region
          _
        $region32: #{encoder_head.1} parent=11 // pred_fallthru
          _
      $region12: #{encoder_head.1} parent=5 // pred_fallthru
        _
      %p202 = scmp.lt.s32.totalorder %s15, 2
      // Predicated region
      $region33: #{encoder_head.1} parent=5 // pred_check
        %p203 = pneg %p202
      $region34: #{encoder_head.1} parent=5 // pred_check_branch
        %205 = sbr.rel (%p203) target = $region36
      $region35: #{encoder_head.1} parent=5 // pred_region
        // Predicated region
        $region37: #{encoder_head.1} parent=35 // pred_check
          %p206 = pneg %p35
        $region38: #{encoder_head.1} parent=35 // pred_check_branch
          %208 = sbr.rel (%p206) target = $region40
        $region39: #{encoder_head.1} parent=35 // pred_region
          %s209 = smul.u32 25, %s15
          %p210 = scmp.lt.s32.totalorder %s209, 49
          %s211 = scalar_select %p210, %s209, 49
          %s212 = smul.addr %s211, 4
          %s213 = smul.addr %s212, 4
          %s214 = scalar_lea.vmem %s0, %s213
          %s215 = smul.u32 25, %s15
        $region40: #{encoder_head.1} parent=35 // pred_fallthru
          _
      $region36: #{encoder_head.1} parent=5 // pred_fallthru
        _
      %p216 = scmp.le.s32.totalorder 1, %s15
      %p217 = scmp.lt.s32.totalorder %s15, 3
      %p218 = pnand %p216, %p217
      %p219 = pneg %p218
      // Predicated region
      $region41: #{encoder_head.1} parent=5 // pred_check
        _
      $region42: #{encoder_head.1} parent=5 // pred_check_branch
        %221 = sbr.rel (%p218) target = $region44
      $region43: #{encoder_head.1} parent=5 // pred_region
        %s222 = ssub.s32 %s15, 1
        %s223 = smul.u32 25, %s20
        %p224 = scmp.lt.s32.totalorder %s223, 49
        %s225 = scalar_select %p224, %s223, 49
        %s226 = smul.addr %s225, 4
        %s227 = smul.addr %s226, 4
        %s228 = scalar_lea.vmem %s0, %s227
        %p229 = pneg %p41
        %p230 = pneg %p38
        %p231 = pneg %p62
        %p232 = pneg %p59
        %p233 = pneg %p83
        %p234 = pneg %p80
        %p235 = pneg %p104
        %p236 = pneg %p101
        %p237 = pneg %p125
        %p238 = pneg %p122
        %p239 = pneg %p146
        %p240 = pneg %p143
        %p241 = pneg %p172
        %p242 = pneg %p169
        %s243 = sand.u32 %s159, 1
        %s244 = scalar_lea.sflag [#allocation4], %s243
        %s245 = sand.u32 %s159, 1
        %s246 = smul.addr %s245, 8
        %s247 = scalar_lea.vmem [#allocation3], %s246
        %s248 = smul.u32 25, %s20
        %p249 = scmp.lt.s32.totalorder %s248, 49
        %s250 = scalar_select %p249, %s248, 49
        %s251 = smul.addr %s250, 4
        %s252 = smul.addr %s251, 4
        %s253 = scalar_lea.vmem %s0, %s252
        %s254 = smul.u32 25, %s20
        %v255 = vld [vmem:[%s253] sm:$0xff]
        %v256 = vld [vmem:[%s253 + $0x8] sm:$0xff]
        %v257 = vld [vmem:[%s253 + $0x10] sm:$0xff]
        %v258 = vld [vmem:[%s253 + $0x18] sm:$0xff]
        %v259 = vld [vmem:[%s253 + $0x20] sm:$0xff]
        %v260 = vld [vmem:[%s253 + $0x28] sm:$0xff]
        %v261 = vld [vmem:[%s253 + $0x30] sm:$0xff]
        %v262 = vld [vmem:[%s253 + $0x38] sm:$0xff]
        %v263 = vld [vmem:[%s253 + $0x40] sm:$0xff]
        %v264 = vld [vmem:[%s253 + $0x48] sm:$0xff]
        %v265 = vld [vmem:[%s253 + $0x50] sm:$0xff]
        %v266 = vld [vmem:[%s253 + $0x58] sm:$0xff]
        %v267 = vld [vmem:[%s253 + $0x60] sm:$0xff]
        %v268 = vld [vmem:[%s253 + $0x68] sm:$0xff]
        %v269 = vld [vmem:[%s253 + $0x70] sm:$0xff]
        %v270 = vld [vmem:[%s253 + $0x78] sm:$0xff]
        %v271 = vld [vmem:[%s253 + $0x80] sm:$0xff]
        %v272 = vld [vmem:[%s253 + $0x88] sm:$0xff]
        %v273 = vld [vmem:[%s253 + $0x90] sm:$0xff]
        %v274 = vld [vmem:[%s253 + $0x98] sm:$0xff]
        %v275 = vld [vmem:[%s253 + $0xa0] sm:$0xff]
        %v276 = vld [vmem:[%s253 + $0xa8] sm:$0xff]
        %v277 = vld [vmem:[%s253 + $0xb0] sm:$0xff]
        %v278 = vld [vmem:[%s253 + $0xb8] sm:$0xff]
        %v279 = vld [vmem:[%s253 + $0xc0] sm:$0xff]
        %v280 = vld [vmem:[%s253 + $0xc8] sm:$0xff]
        %v281 = vld [vmem:[%s253 + $0xd0] sm:$0xff]
        %v282 = vld [vmem:[%s253 + $0xd8] sm:$0xff]
        %v283 = vld [vmem:[%s253 + $0xe0] sm:$0xff]
        %v284 = vld [vmem:[%s253 + $0xe8] sm:$0xff]
        %v285 = vld [vmem:[%s253 + $0xf0] sm:$0xff]
        %v286 = vld [vmem:[%s253 + $0xf8] sm:$0xff]
        %v287 = vld [vmem:[%s253 + $0x100] sm:$0xff]
        %v288 = vld [vmem:[%s253 + $0x108] sm:$0xff]
        %v289 = vld [vmem:[%s253 + $0x110] sm:$0xff]
        %v290 = vld [vmem:[%s253 + $0x118] sm:$0xff]
        %v291 = vld [vmem:[%s253 + $0x120] sm:$0xff]
        %v292 = vld [vmem:[%s253 + $0x128] sm:$0xff]
        %v293 = vld [vmem:[%s253 + $0x130] sm:$0xff]
        %v294 = vld [vmem:[%s253 + $0x138] sm:$0xff]
        %v295 = vld [vmem:[%s253 + $0x140] sm:$0xff]
        %v296 = vld [vmem:[%s253 + $0x148] sm:$0xff]
        %v297 = vld [vmem:[%s253 + $0x150] sm:$0xff]
        %v298 = vld [vmem:[%s253 + $0x158] sm:$0xff]
        %v299 = vld [vmem:[%s253 + $0x160] sm:$0xff]
        %v300 = vld [vmem:[%s253 + $0x168] sm:$0xff]
        %v301 = vld [vmem:[%s253 + $0x170] sm:$0xff]
        %v302 = vld [vmem:[%s253 + $0x178] sm:$0xff]
        %v303 = vld [vmem:[%s253 + $0x180] sm:$0xff]
        %v304 = vld [vmem:[%s253 + $0x188] sm:$0xff]
        %v305 = vld [vmem:[%s1] sm:$0xff]
        %v306 = vld [vmem:[%s1 + $0x8] sm:$0xff]
        %v307 = vld [vmem:[%s1 + $0x10] sm:$0xff]
        %v308 = vld [vmem:[%s1 + $0x18] sm:$0xff]
        %v309 = vld [vmem:[%s1 + $0x20] sm:$0xf]
        %v310 = vld [vmem:[%s1 + $0x24] sm:$0xff]
        %v311 = vld [vmem:[%s1 + $0x2c] sm:$0xff]
        %v312 = vld [vmem:[%s1 + $0x34] sm:$0xff]
        %v313 = vld [vmem:[%s1 + $0x3c] sm:$0xff]
        %v314 = vld [vmem:[%s1 + $0x44] sm:$0xf]
        %v315 = vld [vmem:[%s1 + $0x48] sm:$0xff]
        %v316 = vld [vmem:[%s1 + $0x50] sm:$0xff]
        %v317 = vld [vmem:[%s1 + $0x58] sm:$0xff]
        %v318 = vld [vmem:[%s1 + $0x60] sm:$0xff]
        %v319 = vld [vmem:[%s1 + $0x68] sm:$0xf]
        %v320 = vld [vmem:[%s1 + $0x6c] sm:$0xff]
        %v321 = vld [vmem:[%s1 + $0x74] sm:$0xff]
        %v322 = vld [vmem:[%s1 + $0x7c] sm:$0xff]
        %v323 = vld [vmem:[%s1 + $0x84] sm:$0xff]
        %v324 = vld [vmem:[%s1 + $0x8c] sm:$0xf]
        %v325 = vld [vmem:[%s1 + $0x90] sm:$0xff]
        %v326 = vld [vmem:[%s1 + $0x98] sm:$0xff]
        %v327 = vld [vmem:[%s1 + $0xa0] sm:$0xff]
        %v328 = vld [vmem:[%s1 + $0xa8] sm:$0xff]
        %v329 = vld [vmem:[%s1 + $0xb0] sm:$0xf]
        %v330 = vld [vmem:[%s1 + $0xb4] sm:$0xff]
        %v331 = vld [vmem:[%s1 + $0xbc] sm:$0xff]
        %v332 = vld [vmem:[%s1 + $0xc4] sm:$0xff]
        %v333 = vld [vmem:[%s1 + $0xcc] sm:$0xff]
        %v334 = vld [vmem:[%s1 + $0xd4] sm:$0xf]
        %v335 = vld [vmem:[%s1 + $0xd8] sm:$0xff]
        %v336 = vld [vmem:[%s1 + $0xe0] sm:$0xff]
        %v337 = vld [vmem:[%s1 + $0xe8] sm:$0xff]
        %v338 = vld [vmem:[%s1 + $0xf0] sm:$0xff]
        %v339 = vld [vmem:[%s1 + $0xf8] sm:$0xf]
        %v340 = vld [vmem:[%s1 + $0xfc] sm:$0xff]
        %v341 = vld [vmem:[%s1 + $0x104] sm:$0xff]
        %v342 = vld [vmem:[%s1 + $0x10c] sm:$0xff]
        %v343 = vld [vmem:[%s1 + $0x114] sm:$0xff]
        %v344 = vld [vmem:[%s1 + $0x11c] sm:$0xf]
        %v345 = vld [vmem:[%s1 + $0x120] sm:$0xff]
        %v346 = vld [vmem:[%s1 + $0x128] sm:$0xff]
        %v347 = vld [vmem:[%s1 + $0x130] sm:$0xff]
        %v348 = vld [vmem:[%s1 + $0x138] sm:$0xff]
        %v349 = vld [vmem:[%s1 + $0x140] sm:$0xf]
        %v350 = vld [vmem:[%s1 + $0x144] sm:$0xff]
        %v351 = vld [vmem:[%s1 + $0x14c] sm:$0xff]
        %v352 = vld [vmem:[%s1 + $0x154] sm:$0xff]
        %v353 = vld [vmem:[%s1 + $0x15c] sm:$0xff]
        %v354 = vld [vmem:[%s1 + $0x164] sm:$0xf]
        %v355 = vld [vmem:[%s1 + $0x168] sm:$0xff]
        %v356 = vld [vmem:[%s1 + $0x170] sm:$0xff]
        %v357 = vld [vmem:[%s1 + $0x178] sm:$0xff]
        %v358 = vld [vmem:[%s1 + $0x180] sm:$0xff]
        %v359 = vld [vmem:[%s1 + $0x188] sm:$0xf]
        %v360 = vld [vmem:[%s1 + $0x18c] sm:$0xff]
        %v361 = vld [vmem:[%s1 + $0x194] sm:$0xff]
        %v362 = vld [vmem:[%s1 + $0x19c] sm:$0xff]
        %v363 = vld [vmem:[%s1 + $0x1a4] sm:$0xff]
        %v364 = vld [vmem:[%s1 + $0x1ac] sm:$0xf]
        %v365 = vld [vmem:[%s1 + $0x1b0] sm:$0xff]
        %v366 = vld [vmem:[%s1 + $0x1b8] sm:$0xff]
        %v367 = vld [vmem:[%s1 + $0x1c0] sm:$0xff]
        %v368 = vld [vmem:[%s1 + $0x1c8] sm:$0xff]
        %v369 = vld [vmem:[%s1 + $0x1d0] sm:$0xf]
        %v370 = vld [vmem:[%s1 + $0x1d4] sm:$0xff]
        %v371 = vld [vmem:[%s1 + $0x1dc] sm:$0xff]
        %v372 = vld [vmem:[%s1 + $0x1e4] sm:$0xff]
        %v373 = vld [vmem:[%s1 + $0x1ec] sm:$0xff]
        %v374 = vld [vmem:[%s1 + $0x1f4] sm:$0xf]
        %v375 = vld [vmem:[%s1 + $0x1f8] sm:$0xff]
        %v376 = vld [vmem:[%s1 + $0x200] sm:$0xff]
        %v377 = vld [vmem:[%s1 + $0x208] sm:$0xff]
        %v378 = vld [vmem:[%s1 + $0x210] sm:$0xff]
        %v379 = vld [vmem:[%s1 + $0x218] sm:$0xf]
        %v380 = vld [vmem:[%s1 + $0x21c] sm:$0xff]
        %v381 = vld [vmem:[%s1 + $0x224] sm:$0xff]
        %v382 = vld [vmem:[%s1 + $0x22c] sm:$0xff]
        %v383 = vld [vmem:[%s1 + $0x234] sm:$0xff]
        %v384 = vld [vmem:[%s1 + $0x23c] sm:$0xf]
        %v385 = vld [vmem:[%s1 + $0x240] sm:$0xff]
        %v386 = vld [vmem:[%s1 + $0x248] sm:$0xff]
        %v387 = vld [vmem:[%s1 + $0x250] sm:$0xff]
        %v388 = vld [vmem:[%s1 + $0x258] sm:$0xff]
        %v389 = vld [vmem:[%s1 + $0x260] sm:$0xf]
        %v390 = vld [vmem:[%s1 + $0x264] sm:$0xff]
        %v391 = vld [vmem:[%s1 + $0x26c] sm:$0xff]
        %v392 = vld [vmem:[%s1 + $0x274] sm:$0xff]
        %v393 = vld [vmem:[%s1 + $0x27c] sm:$0xff]
        %v394 = vld [vmem:[%s1 + $0x284] sm:$0xf]
        %v395 = vld [vmem:[%s1 + $0x288] sm:$0xff]
        %v396 = vld [vmem:[%s1 + $0x290] sm:$0xff]
        %v397 = vld [vmem:[%s1 + $0x298] sm:$0xff]
        %v398 = vld [vmem:[%s1 + $0x2a0] sm:$0xff]
        %v399 = vld [vmem:[%s1 + $0x2a8] sm:$0xf]
        %v400 = vld [vmem:[%s1 + $0x2ac] sm:$0xff]
        %v401 = vld [vmem:[%s1 + $0x2b4] sm:$0xff]
        %v402 = vld [vmem:[%s1 + $0x2bc] sm:$0xff]
        %v403 = vld [vmem:[%s1 + $0x2c4] sm:$0xff]
        %v404 = vld [vmem:[%s1 + $0x2cc] sm:$0xf]
        %v405 = vld [vmem:[%s1 + $0x2d0] sm:$0xff]
        %v406 = vld [vmem:[%s1 + $0x2d8] sm:$0xff]
        %v407 = vld [vmem:[%s1 + $0x2e0] sm:$0xff]
        %v408 = vld [vmem:[%s1 + $0x2e8] sm:$0xff]
        %v409 = vld [vmem:[%s1 + $0x2f0] sm:$0xf]
        %v410 = vld [vmem:[%s1 + $0x2f4] sm:$0xff]
        %v411 = vld [vmem:[%s1 + $0x2fc] sm:$0xff]
        %v412 = vld [vmem:[%s1 + $0x304] sm:$0xff]
        %v413 = vld [vmem:[%s1 + $0x30c] sm:$0xff]
        %v414 = vld [vmem:[%s1 + $0x314] sm:$0xf]
        %v415 = vld [vmem:[%s1 + $0x318] sm:$0xff]
        %v416 = vld [vmem:[%s1 + $0x320] sm:$0xff]
        %v417 = vld [vmem:[%s1 + $0x328] sm:$0xff]
        %v418 = vld [vmem:[%s1 + $0x330] sm:$0xff]
        %v419 = vld [vmem:[%s1 + $0x338] sm:$0xf]
        %v420 = vld [vmem:[%s1 + $0x33c] sm:$0xff]
        %v421 = vld [vmem:[%s1 + $0x344] sm:$0xff]
        %v422 = vld [vmem:[%s1 + $0x34c] sm:$0xff]
        %v423 = vld [vmem:[%s1 + $0x354] sm:$0xff]
        %v424 = vld [vmem:[%s1 + $0x35c] sm:$0xf]
        %v425 = vld [vmem:[%s1 + $0x360] sm:$0xff]
        %v426 = vld [vmem:[%s1 + $0x368] sm:$0xff]
        %v427 = vld [vmem:[%s1 + $0x370] sm:$0xff]
        %v428 = vld [vmem:[%s1 + $0x378] sm:$0xff]
        %v429 = vld [vmem:[%s1 + $0x380] sm:$0xf]
        %v430 = vld [vmem:[%s1 + $0x384] sm:$0xff]
        %v431 = vld [vmem:[%s1 + $0x38c] sm:$0xff]
        %v432 = vld [vmem:[%s1 + $0x394] sm:$0xff]
        %v433 = vld [vmem:[%s1 + $0x39c] sm:$0xff]
        %v434 = vld [vmem:[%s1 + $0x3a4] sm:$0xf]
        %v435 = vld [vmem:[%s1 + $0x3a8] sm:$0xff]
        %v436 = vld [vmem:[%s1 + $0x3b0] sm:$0xff]
        %v437 = vld [vmem:[%s1 + $0x3b8] sm:$0xff]
        %v438 = vld [vmem:[%s1 + $0x3c0] sm:$0xff]
        %v439 = vld [vmem:[%s1 + $0x3c8] sm:$0xf]
        %v440 = vld [vmem:[%s1 + $0x3cc] sm:$0xff]
        %v441 = vld [vmem:[%s1 + $0x3d4] sm:$0xff]
        %v442 = vld [vmem:[%s1 + $0x3dc] sm:$0xff]
        %v443 = vld [vmem:[%s1 + $0x3e4] sm:$0xff]
        %v444 = vld [vmem:[%s1 + $0x3ec] sm:$0xf]
        %v445 = vld [vmem:[%s1 + $0x3f0] sm:$0xff]
        %v446 = vld [vmem:[%s1 + $0x3f8] sm:$0xff]
        %v447 = vld [vmem:[%s1 + $0x400] sm:$0xff]
        %v448 = vld [vmem:[%s1 + $0x408] sm:$0xff]
        %v449 = vld [vmem:[%s1 + $0x410] sm:$0xf]
        %v450 = vld [vmem:[%s1 + $0x414] sm:$0xff]
        %v451 = vld [vmem:[%s1 + $0x41c] sm:$0xff]
        %v452 = vld [vmem:[%s1 + $0x424] sm:$0xff]
        %v453 = vld [vmem:[%s1 + $0x42c] sm:$0xff]
        %v454 = vld [vmem:[%s1 + $0x434] sm:$0xf]
        %v455 = vld [vmem:[%s1 + $0x438] sm:$0xff]
        %v456 = vld [vmem:[%s1 + $0x440] sm:$0xff]
        %v457 = vld [vmem:[%s1 + $0x448] sm:$0xff]
        %v458 = vld [vmem:[%s1 + $0x450] sm:$0xff]
        %v459 = vld [vmem:[%s1 + $0x458] sm:$0xf]
        %v460 = vld [vmem:[%s1 + $0x45c] sm:$0xff]
        %v461 = vld [vmem:[%s1 + $0x464] sm:$0xff]
        %v462 = vld [vmem:[%s1 + $0x46c] sm:$0xff]
        %v463 = vld [vmem:[%s1 + $0x474] sm:$0xff]
        %v464 = vld [vmem:[%s1 + $0x47c] sm:$0xf]
        %v465 = vld [vmem:[%s1 + $0x480] sm:$0xff]
        %v466 = vld [vmem:[%s1 + $0x488] sm:$0xff]
        %v467 = vld [vmem:[%s1 + $0x490] sm:$0xff]
        %v468 = vld [vmem:[%s1 + $0x498] sm:$0xff]
        %v469 = vld [vmem:[%s1 + $0x4a0] sm:$0xf]
        %v470 = vld [vmem:[%s1 + $0x4a4] sm:$0xff]
        %v471 = vld [vmem:[%s1 + $0x4ac] sm:$0xff]
        %v472 = vld [vmem:[%s1 + $0x4b4] sm:$0xff]
        %v473 = vld [vmem:[%s1 + $0x4bc] sm:$0xff]
        %v474 = vld [vmem:[%s1 + $0x4c4] sm:$0xf]
        %v475 = vld [vmem:[%s1 + $0x4c8] sm:$0xff]
        %v476 = vld [vmem:[%s1 + $0x4d0] sm:$0xff]
        %v477 = vld [vmem:[%s1 + $0x4d8] sm:$0xff]
        %v478 = vld [vmem:[%s1 + $0x4e0] sm:$0xff]
        %v479 = vld [vmem:[%s1 + $0x4e8] sm:$0xf]
        %v480 = vld [vmem:[%s1 + $0x4ec] sm:$0xff]
        %v481 = vld [vmem:[%s1 + $0x4f4] sm:$0xff]
        %v482 = vld [vmem:[%s1 + $0x4fc] sm:$0xff]
        %v483 = vld [vmem:[%s1 + $0x504] sm:$0xff]
        %v484 = vld [vmem:[%s1 + $0x50c] sm:$0xf]
        %v485 = vld [vmem:[%s1 + $0x510] sm:$0xff]
        %v486 = vld [vmem:[%s1 + $0x518] sm:$0xff]
        %v487 = vld [vmem:[%s1 + $0x520] sm:$0xff]
        %v488 = vld [vmem:[%s1 + $0x528] sm:$0xff]
        %v489 = vld [vmem:[%s1 + $0x530] sm:$0xf]
        %v490 = vld [vmem:[%s1 + $0x534] sm:$0xff]
        %v491 = vld [vmem:[%s1 + $0x53c] sm:$0xff]
        %v492 = vld [vmem:[%s1 + $0x544] sm:$0xff]
        %v493 = vld [vmem:[%s1 + $0x54c] sm:$0xff]
        %v494 = vld [vmem:[%s1 + $0x554] sm:$0xf]
        %v495 = vld [vmem:[%s1 + $0x558] sm:$0xff]
        %v496 = vld [vmem:[%s1 + $0x560] sm:$0xff]
        %v497 = vld [vmem:[%s1 + $0x568] sm:$0xff]
        %v498 = vld [vmem:[%s1 + $0x570] sm:$0xff]
        %v499 = vld [vmem:[%s1 + $0x578] sm:$0xf]
        %v500 = vld [vmem:[%s1 + $0x57c] sm:$0xff]
        %v501 = vld [vmem:[%s1 + $0x584] sm:$0xff]
        %v502 = vld [vmem:[%s1 + $0x58c] sm:$0xff]
        %v503 = vld [vmem:[%s1 + $0x594] sm:$0xff]
        %v504 = vld [vmem:[%s1 + $0x59c] sm:$0xf]
        %v505 = vld [vmem:[%s1 + $0x5a0] sm:$0xff]
        %v506 = vld [vmem:[%s1 + $0x5a8] sm:$0xff]
        %v507 = vld [vmem:[%s1 + $0x5b0] sm:$0xff]
        %v508 = vld [vmem:[%s1 + $0x5b8] sm:$0xff]
        %v509 = vld [vmem:[%s1 + $0x5c0] sm:$0xf]
        %v510 = vld [vmem:[%s1 + $0x5c4] sm:$0xff]
        %v511 = vld [vmem:[%s1 + $0x5cc] sm:$0xff]
        %v512 = vld [vmem:[%s1 + $0x5d4] sm:$0xff]
        %v513 = vld [vmem:[%s1 + $0x5dc] sm:$0xff]
        %v514 = vld [vmem:[%s1 + $0x5e4] sm:$0xf]
        %v515 = vld [vmem:[%s1 + $0x5e8] sm:$0xff]
        %v516 = vld [vmem:[%s1 + $0x5f0] sm:$0xff]
        %v517 = vld [vmem:[%s1 + $0x5f8] sm:$0xff]
        %v518 = vld [vmem:[%s1 + $0x600] sm:$0xff]
        %v519 = vld [vmem:[%s1 + $0x608] sm:$0xf]
        %v520 = vld [vmem:[%s1 + $0x60c] sm:$0xff]
        %v521 = vld [vmem:[%s1 + $0x614] sm:$0xff]
        %v522 = vld [vmem:[%s1 + $0x61c] sm:$0xff]
        %v523 = vld [vmem:[%s1 + $0x624] sm:$0xff]
        %v524 = vld [vmem:[%s1 + $0x62c] sm:$0xf]
        %v525 = vld [vmem:[%s1 + $0x630] sm:$0xff]
        %v526 = vld [vmem:[%s1 + $0x638] sm:$0xff]
        %v527 = vld [vmem:[%s1 + $0x640] sm:$0xff]
        %v528 = vld [vmem:[%s1 + $0x648] sm:$0xff]
        %v529 = vld [vmem:[%s1 + $0x650] sm:$0xf]
        %v530 = vld [vmem:[%s1 + $0x654] sm:$0xff]
        %v531 = vld [vmem:[%s1 + $0x65c] sm:$0xff]
        %v532 = vld [vmem:[%s1 + $0x664] sm:$0xff]
        %v533 = vld [vmem:[%s1 + $0x66c] sm:$0xff]
        %v534 = vld [vmem:[%s1 + $0x674] sm:$0xf]
        %v535 = vld [vmem:[%s1 + $0x678] sm:$0xff]
        %v536 = vld [vmem:[%s1 + $0x680] sm:$0xff]
        %v537 = vld [vmem:[%s1 + $0x688] sm:$0xff]
        %v538 = vld [vmem:[%s1 + $0x690] sm:$0xff]
        %v539 = vld [vmem:[%s1 + $0x698] sm:$0xf]
        %v540 = vld [vmem:[%s1 + $0x69c] sm:$0xff]
        %v541 = vld [vmem:[%s1 + $0x6a4] sm:$0xff]
        %v542 = vld [vmem:[%s1 + $0x6ac] sm:$0xff]
        %v543 = vld [vmem:[%s1 + $0x6b4] sm:$0xff]
        %v544 = vld [vmem:[%s1 + $0x6bc] sm:$0xf]
        %v545 = vld [vmem:[%s1 + $0x6c0] sm:$0xff]
        %v546 = vld [vmem:[%s1 + $0x6c8] sm:$0xff]
        %v547 = vld [vmem:[%s1 + $0x6d0] sm:$0xff]
        %v548 = vld [vmem:[%s1 + $0x6d8] sm:$0xff]
        %v549 = vld [vmem:[%s1 + $0x6e0] sm:$0xf]
        %v550 = vld [vmem:[%s1 + $0x6e4] sm:$0xff]
        %v551 = vld [vmem:[%s1 + $0x6ec] sm:$0xff]
        %v552 = vld [vmem:[%s1 + $0x6f4] sm:$0xff]
        %v553 = vld [vmem:[%s1 + $0x6fc] sm:$0xff]
        %v554 = vld [vmem:[%s1 + $0x704] sm:$0xf]
        %v555 = vld [vmem:[%s1 + $0x708] sm:$0xff]
        %v556 = vld [vmem:[%s1 + $0x710] sm:$0xff]
        %v557 = vld [vmem:[%s1 + $0x718] sm:$0xff]
        %v558 = vld [vmem:[%s1 + $0x720] sm:$0xff]
        %v559 = vld [vmem:[%s1 + $0x728] sm:$0xf]
        %v560 = vld [vmem:[%s1 + $0x72c] sm:$0xff]
        %v561 = vld [vmem:[%s1 + $0x734] sm:$0xff]
        %v562 = vld [vmem:[%s1 + $0x73c] sm:$0xff]
        %v563 = vld [vmem:[%s1 + $0x744] sm:$0xff]
        %v564 = vld [vmem:[%s1 + $0x74c] sm:$0xf]
        %v565 = vld [vmem:[%s1 + $0x750] sm:$0xff]
        %v566 = vld [vmem:[%s1 + $0x758] sm:$0xff]
        %v567 = vld [vmem:[%s1 + $0x760] sm:$0xff]
        %v568 = vld [vmem:[%s1 + $0x768] sm:$0xff]
        %v569 = vld [vmem:[%s1 + $0x770] sm:$0xf]
        %v570 = vld [vmem:[%s1 + $0x774] sm:$0xff]
        %v571 = vld [vmem:[%s1 + $0x77c] sm:$0xff]
        %v572 = vld [vmem:[%s1 + $0x784] sm:$0xff]
        %v573 = vld [vmem:[%s1 + $0x78c] sm:$0xff]
        %v574 = vld [vmem:[%s1 + $0x794] sm:$0xf]
        %v575 = vld [vmem:[%s1 + $0x798] sm:$0xff]
        %v576 = vld [vmem:[%s1 + $0x7a0] sm:$0xff]
        %v577 = vld [vmem:[%s1 + $0x7a8] sm:$0xff]
        %v578 = vld [vmem:[%s1 + $0x7b0] sm:$0xff]
        %v579 = vld [vmem:[%s1 + $0x7b8] sm:$0xf]
        %v580 = vld [vmem:[%s1 + $0x7bc] sm:$0xff]
        %v581 = vld [vmem:[%s1 + $0x7c4] sm:$0xff]
        %v582 = vld [vmem:[%s1 + $0x7cc] sm:$0xff]
        %v583 = vld [vmem:[%s1 + $0x7d4] sm:$0xff]
        %v584 = vld [vmem:[%s1 + $0x7dc] sm:$0xf]
        %v585 = vld [vmem:[%s1 + $0x7e0] sm:$0xff]
        %v586 = vld [vmem:[%s1 + $0x7e8] sm:$0xff]
        %v587 = vld [vmem:[%s1 + $0x7f0] sm:$0xff]
        %v588 = vld [vmem:[%s1 + $0x7f8] sm:$0xff]
        %v589 = vld [vmem:[%s1 + $0x800] sm:$0xf]
        %v590 = vld [vmem:[%s1 + $0x804] sm:$0xff]
        %v591 = vld [vmem:[%s1 + $0x80c] sm:$0xff]
        %v592 = vld [vmem:[%s1 + $0x814] sm:$0xff]
        %v593 = vld [vmem:[%s1 + $0x81c] sm:$0xff]
        %v594 = vld [vmem:[%s1 + $0x824] sm:$0xf]
        %v595 = vld [vmem:[%s1 + $0x828] sm:$0xff]
        %v596 = vld [vmem:[%s1 + $0x830] sm:$0xff]
        %v597 = vld [vmem:[%s1 + $0x838] sm:$0xff]
        %v598 = vld [vmem:[%s1 + $0x840] sm:$0xff]
        %v599 = vld [vmem:[%s1 + $0x848] sm:$0xf]
        %v600 = vld [vmem:[%s1 + $0x84c] sm:$0xff]
        %v601 = vld [vmem:[%s1 + $0x854] sm:$0xff]
        %v602 = vld [vmem:[%s1 + $0x85c] sm:$0xff]
        %v603 = vld [vmem:[%s1 + $0x864] sm:$0xff]
        %v604 = vld [vmem:[%s1 + $0x86c] sm:$0xf]
        %v605 = vld [vmem:[%s1 + $0x870] sm:$0xff]
        %v606 = vld [vmem:[%s1 + $0x878] sm:$0xff]
        %v607 = vld [vmem:[%s1 + $0x880] sm:$0xff]
        %v608 = vld [vmem:[%s1 + $0x888] sm:$0xff]
        %v609 = vld [vmem:[%s1 + $0x890] sm:$0xf]
        %v610 = vld [vmem:[%s1 + $0x894] sm:$0xff]
        %v611 = vld [vmem:[%s1 + $0x89c] sm:$0xff]
        %v612 = vld [vmem:[%s1 + $0x8a4] sm:$0xff]
        %v613 = vld [vmem:[%s1 + $0x8ac] sm:$0xff]
        %v614 = vld [vmem:[%s1 + $0x8b4] sm:$0xf]
        %v615 = vld [vmem:[%s1 + $0x8b8] sm:$0xff]
        %v616 = vld [vmem:[%s1 + $0x8c0] sm:$0xff]
        %v617 = vld [vmem:[%s1 + $0x8c8] sm:$0xff]
        %v618 = vld [vmem:[%s1 + $0x8d0] sm:$0xff]
        %v619 = vld [vmem:[%s1 + $0x8d8] sm:$0xf]
        %v620 = vld [vmem:[%s1 + $0x8dc] sm:$0xff]
        %v621 = vld [vmem:[%s1 + $0x8e4] sm:$0xff]
        %v622 = vld [vmem:[%s1 + $0x8ec] sm:$0xff]
        %v623 = vld [vmem:[%s1 + $0x8f4] sm:$0xff]
        %v624 = vld [vmem:[%s1 + $0x8fc] sm:$0xf]
        %v675 = vunpack.c.l.b16 %v255
        %v676 = vunpack.c.h.b16 %v255
        %v677 = vunpack.c.l.b16 %v256
        %v678 = vunpack.c.h.b16 %v256
        %v679 = vunpack.c.l.b16 %v257
        %v680 = vunpack.c.h.b16 %v257
        %v681 = vunpack.c.l.b16 %v258
        %v682 = vunpack.c.h.b16 %v258
        %v683 = vunpack.c.l.b16 %v259
        %v684 = vunpack.c.h.b16 %v259
        %v685 = vunpack.c.l.b16 %v260
        %v686 = vunpack.c.h.b16 %v260
        %v687 = vunpack.c.l.b16 %v261
        %v688 = vunpack.c.h.b16 %v261
        %v689 = vunpack.c.l.b16 %v262
        %v690 = vunpack.c.h.b16 %v262
        %v691 = vunpack.c.l.b16 %v263
        %v692 = vunpack.c.h.b16 %v263
        %v693 = vunpack.c.l.b16 %v264
        %v694 = vunpack.c.h.b16 %v264
        %v695 = vunpack.c.l.b16 %v265
        %v696 = vunpack.c.h.b16 %v265
        %v697 = vunpack.c.l.b16 %v266
        %v698 = vunpack.c.h.b16 %v266
        %v699 = vunpack.c.l.b16 %v267
        %v700 = vunpack.c.h.b16 %v267
        %v701 = vunpack.c.l.b16 %v268
        %v702 = vunpack.c.h.b16 %v268
        %v703 = vunpack.c.l.b16 %v269
        %v704 = vunpack.c.h.b16 %v269
        %v705 = vunpack.c.l.b16 %v270
        %v706 = vunpack.c.h.b16 %v270
        %v707 = vunpack.c.l.b16 %v271
        %v708 = vunpack.c.h.b16 %v271
        %v709 = vunpack.c.l.b16 %v272
        %v710 = vunpack.c.h.b16 %v272
        %v711 = vunpack.c.l.b16 %v273
        %v712 = vunpack.c.h.b16 %v273
        %v713 = vunpack.c.l.b16 %v274
        %v714 = vunpack.c.h.b16 %v274
        %v715 = vunpack.c.l.b16 %v275
        %v716 = vunpack.c.h.b16 %v275
        %v717 = vunpack.c.l.b16 %v276
        %v718 = vunpack.c.h.b16 %v276
        %v719 = vunpack.c.l.b16 %v277
        %v720 = vunpack.c.h.b16 %v277
        %v721 = vunpack.c.l.b16 %v278
        %v722 = vunpack.c.h.b16 %v278
        %v723 = vunpack.c.l.b16 %v279
        %v724 = vunpack.c.h.b16 %v279
        %v725 = vunpack.c.l.b16 %v280
        %v726 = vunpack.c.h.b16 %v280
        %v727 = vunpack.c.l.b16 %v281
        %v728 = vunpack.c.h.b16 %v281
        %v729 = vunpack.c.l.b16 %v282
        %v730 = vunpack.c.h.b16 %v282
        %v731 = vunpack.c.l.b16 %v283
        %v732 = vunpack.c.h.b16 %v283
        %v733 = vunpack.c.l.b16 %v284
        %v734 = vunpack.c.h.b16 %v284
        %v735 = vunpack.c.l.b16 %v285
        %v736 = vunpack.c.h.b16 %v285
        %v737 = vunpack.c.l.b16 %v286
        %v738 = vunpack.c.h.b16 %v286
        %v739 = vunpack.c.l.b16 %v287
        %v740 = vunpack.c.h.b16 %v287
        %v741 = vunpack.c.l.b16 %v288
        %v742 = vunpack.c.h.b16 %v288
        %v743 = vunpack.c.l.b16 %v289
        %v744 = vunpack.c.h.b16 %v289
        %v745 = vunpack.c.l.b16 %v290
        %v746 = vunpack.c.h.b16 %v290
        %v747 = vunpack.c.l.b16 %v291
        %v748 = vunpack.c.h.b16 %v291
        %v749 = vunpack.c.l.b16 %v292
        %v750 = vunpack.c.h.b16 %v292
        %v751 = vunpack.c.l.b16 %v293
        %v752 = vunpack.c.h.b16 %v293
        %v753 = vunpack.c.l.b16 %v294
        %v754 = vunpack.c.h.b16 %v294
        %v755 = vunpack.c.l.b16 %v295
        %v756 = vunpack.c.h.b16 %v295
        %v757 = vunpack.c.l.b16 %v296
        %v758 = vunpack.c.h.b16 %v296
        %v759 = vunpack.c.l.b16 %v297
        %v760 = vunpack.c.h.b16 %v297
        %v761 = vunpack.c.l.b16 %v298
        %v762 = vunpack.c.h.b16 %v298
        %v763 = vunpack.c.l.b16 %v299
        %v764 = vunpack.c.h.b16 %v299
        %v765 = vunpack.c.l.b16 %v300
        %v766 = vunpack.c.h.b16 %v300
        %v767 = vunpack.c.l.b16 %v301
        %v768 = vunpack.c.h.b16 %v301
        %v769 = vunpack.c.l.b16 %v302
        %v770 = vunpack.c.h.b16 %v302
        %v771 = vunpack.c.l.b16 %v303
        %v772 = vunpack.c.h.b16 %v303
        %v773 = vunpack.c.l.b16 %v304
        %v774 = vunpack.c.h.b16 %v304
        %v775 = vpack.c.b16 %v679, %v675
        %v776 = vpack.c.b16 %v680, %v676
        %v777 = vpack.c.b16 %v681, %v677
        %v778 = vpack.c.b16 %v682, %v678
        %v779 = vpack.c.b16 %v687, %v683
        %v780 = vpack.c.b16 %v688, %v684
        %v781 = vpack.c.b16 %v689, %v685
        %v782 = vpack.c.b16 %v690, %v686
        %v783 = vpack.c.b16 %v695, %v691
        %v784 = vpack.c.b16 %v696, %v692
        %v785 = vpack.c.b16 %v697, %v693
        %v786 = vpack.c.b16 %v698, %v694
        %v787 = vpack.c.b16 %v703, %v699
        %v788 = vpack.c.b16 %v704, %v700
        %v789 = vpack.c.b16 %v705, %v701
        %v790 = vpack.c.b16 %v706, %v702
        %v791 = vpack.c.b16 %v711, %v707
        %v792 = vpack.c.b16 %v712, %v708
        %v793 = vpack.c.b16 %v713, %v709
        %v794 = vpack.c.b16 %v714, %v710
        %v795 = vpack.c.b16 %v719, %v715
        %v796 = vpack.c.b16 %v720, %v716
        %v797 = vpack.c.b16 %v721, %v717
        %v798 = vpack.c.b16 %v722, %v718
        %v799 = vpack.c.b16 %v727, %v723
        %v800 = vpack.c.b16 %v728, %v724
        %v801 = vpack.c.b16 %v729, %v725
        %v802 = vpack.c.b16 %v730, %v726
        %v803 = vpack.c.b16 %v735, %v731
        %v804 = vpack.c.b16 %v736, %v732
        %v805 = vpack.c.b16 %v737, %v733
        %v806 = vpack.c.b16 %v738, %v734
        %v807 = vpack.c.b16 %v743, %v739
        %v808 = vpack.c.b16 %v744, %v740
        %v809 = vpack.c.b16 %v745, %v741
        %v810 = vpack.c.b16 %v746, %v742
        %v811 = vpack.c.b16 %v751, %v747
        %v812 = vpack.c.b16 %v752, %v748
        %v813 = vpack.c.b16 %v753, %v749
        %v814 = vpack.c.b16 %v754, %v750
        %v815 = vpack.c.b16 %v759, %v755
        %v816 = vpack.c.b16 %v760, %v756
        %v817 = vpack.c.b16 %v761, %v757
        %v818 = vpack.c.b16 %v762, %v758
        %v819 = vpack.c.b16 %v767, %v763
        %v820 = vpack.c.b16 %v768, %v764
        %v821 = vpack.c.b16 %v769, %v765
        %v822 = vpack.c.b16 %v770, %v766
        %v823 = vpack.c.b16 %v771, %v771
        %v824 = vpack.c.b16 %v772, %v772
        %v825 = vpack.c.b16 %v773, %v773
        %v826 = vpack.c.b16 %v774, %v774
        %v1199 = vunpack.c.l.b16 %v305
        %v1200 = vunpack.c.h.b16 %v305
        %v1201 = vunpack.c.l.b16 %v306
        %v1202 = vunpack.c.h.b16 %v306
        %v1203 = vunpack.c.l.b16 %v307
        %v1204 = vunpack.c.h.b16 %v307
        %v1205 = vunpack.c.l.b16 %v308
        %v1206 = vunpack.c.h.b16 %v308
        %v1207 = vunpack.c.l.b16 %v309
        %v1208 = vunpack.c.l.b16 %v310
        %v1209 = vunpack.c.h.b16 %v310
        %v1210 = vunpack.c.l.b16 %v311
        %v1211 = vunpack.c.h.b16 %v311
        %v1212 = vunpack.c.l.b16 %v312
        %v1213 = vunpack.c.h.b16 %v312
        %v1214 = vunpack.c.l.b16 %v313
        %v1215 = vunpack.c.h.b16 %v313
        %v1216 = vunpack.c.l.b16 %v314
        %v1217 = vunpack.c.l.b16 %v315
        %v1218 = vunpack.c.h.b16 %v315
        %v1219 = vunpack.c.l.b16 %v316
        %v1220 = vunpack.c.h.b16 %v316
        %v1221 = vunpack.c.l.b16 %v317
        %v1222 = vunpack.c.h.b16 %v317
        %v1223 = vunpack.c.l.b16 %v318
        %v1224 = vunpack.c.h.b16 %v318
        %v1225 = vunpack.c.l.b16 %v319
        %v1226 = vunpack.c.l.b16 %v320
        %v1227 = vunpack.c.h.b16 %v320
        %v1228 = vunpack.c.l.b16 %v321
        %v1229 = vunpack.c.h.b16 %v321
        %v1230 = vunpack.c.l.b16 %v322
        %v1231 = vunpack.c.h.b16 %v322
        %v1232 = vunpack.c.l.b16 %v323
        %v1233 = vunpack.c.h.b16 %v323
        %v1234 = vunpack.c.l.b16 %v324
        %v1235 = vunpack.c.l.b16 %v325
        %v1236 = vunpack.c.h.b16 %v325
        %v1237 = vunpack.c.l.b16 %v326
        %v1238 = vunpack.c.h.b16 %v326
        %v1239 = vunpack.c.l.b16 %v327
        %v1240 = vunpack.c.h.b16 %v327
        %v1241 = vunpack.c.l.b16 %v328
        %v1242 = vunpack.c.h.b16 %v328
        %v1243 = vunpack.c.l.b16 %v329
        %v1244 = vunpack.c.l.b16 %v330
        %v1245 = vunpack.c.h.b16 %v330
        %v1246 = vunpack.c.l.b16 %v331
        %v1247 = vunpack.c.h.b16 %v331
        %v1248 = vunpack.c.l.b16 %v332
        %v1249 = vunpack.c.h.b16 %v332
        %v1250 = vunpack.c.l.b16 %v333
        %v1251 = vunpack.c.h.b16 %v333
        %v1252 = vunpack.c.l.b16 %v334
        %v1253 = vunpack.c.l.b16 %v335
        %v1254 = vunpack.c.h.b16 %v335
        %v1255 = vunpack.c.l.b16 %v336
        %v1256 = vunpack.c.h.b16 %v336
        %v1257 = vunpack.c.l.b16 %v337
        %v1258 = vunpack.c.h.b16 %v337
        %v1259 = vunpack.c.l.b16 %v338
        %v1260 = vunpack.c.h.b16 %v338
        %v1261 = vunpack.c.l.b16 %v339
        %v1262 = vunpack.c.l.b16 %v340
        %v1263 = vunpack.c.h.b16 %v340
        %v1264 = vunpack.c.l.b16 %v341
        %v1265 = vunpack.c.h.b16 %v341
        %v1266 = vunpack.c.l.b16 %v342
        %v1267 = vunpack.c.h.b16 %v342
        %v1268 = vunpack.c.l.b16 %v343
        %v1269 = vunpack.c.h.b16 %v343
        %v1270 = vunpack.c.l.b16 %v344
        %v1271 = vunpack.c.l.b16 %v345
        %v1272 = vunpack.c.h.b16 %v345
        %v1273 = vunpack.c.l.b16 %v346
        %v1274 = vunpack.c.h.b16 %v346
        %v1275 = vunpack.c.l.b16 %v347
        %v1276 = vunpack.c.h.b16 %v347
        %v1277 = vunpack.c.l.b16 %v348
        %v1278 = vunpack.c.h.b16 %v348
        %v1279 = vunpack.c.l.b16 %v349
        %v1280 = vunpack.c.l.b16 %v350
        %v1281 = vunpack.c.h.b16 %v350
        %v1282 = vunpack.c.l.b16 %v351
        %v1283 = vunpack.c.h.b16 %v351
        %v1284 = vunpack.c.l.b16 %v352
        %v1285 = vunpack.c.h.b16 %v352
        %v1286 = vunpack.c.l.b16 %v353
        %v1287 = vunpack.c.h.b16 %v353
        %v1288 = vunpack.c.l.b16 %v354
        %v1289 = vunpack.c.l.b16 %v355
        %v1290 = vunpack.c.h.b16 %v355
        %v1291 = vunpack.c.l.b16 %v356
        %v1292 = vunpack.c.h.b16 %v356
        %v1293 = vunpack.c.l.b16 %v357
        %v1294 = vunpack.c.h.b16 %v357
        %v1295 = vunpack.c.l.b16 %v358
        %v1296 = vunpack.c.h.b16 %v358
        %v1297 = vunpack.c.l.b16 %v359
        %v1298 = vunpack.c.l.b16 %v360
        %v1299 = vunpack.c.h.b16 %v360
        %v1300 = vunpack.c.l.b16 %v361
        %v1301 = vunpack.c.h.b16 %v361
        %v1302 = vunpack.c.l.b16 %v362
        %v1303 = vunpack.c.h.b16 %v362
        %v1304 = vunpack.c.l.b16 %v363
        %v1305 = vunpack.c.h.b16 %v363
        %v1306 = vunpack.c.l.b16 %v364
        %v1307 = vunpack.c.l.b16 %v365
        %v1308 = vunpack.c.h.b16 %v365
        %v1309 = vunpack.c.l.b16 %v366
        %v1310 = vunpack.c.h.b16 %v366
        %v1311 = vunpack.c.l.b16 %v367
        %v1312 = vunpack.c.h.b16 %v367
        %v1313 = vunpack.c.l.b16 %v368
        %v1314 = vunpack.c.h.b16 %v368
        %v1315 = vunpack.c.l.b16 %v369
        %v1316 = vunpack.c.l.b16 %v370
        %v1317 = vunpack.c.h.b16 %v370
        %v1318 = vunpack.c.l.b16 %v371
        %v1319 = vunpack.c.h.b16 %v371
        %v1320 = vunpack.c.l.b16 %v372
        %v1321 = vunpack.c.h.b16 %v372
        %v1322 = vunpack.c.l.b16 %v373
        %v1323 = vunpack.c.h.b16 %v373
        %v1324 = vunpack.c.l.b16 %v374
        %v1325 = vunpack.c.l.b16 %v375
        %v1326 = vunpack.c.h.b16 %v375
        %v1327 = vunpack.c.l.b16 %v376
        %v1328 = vunpack.c.h.b16 %v376
        %v1329 = vunpack.c.l.b16 %v377
        %v1330 = vunpack.c.h.b16 %v377
        %v1331 = vunpack.c.l.b16 %v378
        %v1332 = vunpack.c.h.b16 %v378
        %v1333 = vunpack.c.l.b16 %v379
        %v1334 = vunpack.c.l.b16 %v380
        %v1335 = vunpack.c.h.b16 %v380
        %v1336 = vunpack.c.l.b16 %v381
        %v1337 = vunpack.c.h.b16 %v381
        %v1338 = vunpack.c.l.b16 %v382
        %v1339 = vunpack.c.h.b16 %v382
        %v1340 = vunpack.c.l.b16 %v383
        %v1341 = vunpack.c.h.b16 %v383
        %v1342 = vunpack.c.l.b16 %v384
        %v1343 = vunpack.c.l.b16 %v385
        %v1344 = vunpack.c.h.b16 %v385
        %v1345 = vunpack.c.l.b16 %v386
        %v1346 = vunpack.c.h.b16 %v386
        %v1347 = vunpack.c.l.b16 %v387
        %v1348 = vunpack.c.h.b16 %v387
        %v1349 = vunpack.c.l.b16 %v388
        %v1350 = vunpack.c.h.b16 %v388
        %v1351 = vunpack.c.l.b16 %v389
        %v1352 = vunpack.c.l.b16 %v390
        %v1353 = vunpack.c.h.b16 %v390
        %v1354 = vunpack.c.l.b16 %v391
        %v1355 = vunpack.c.h.b16 %v391
        %v1356 = vunpack.c.l.b16 %v392
        %v1357 = vunpack.c.h.b16 %v392
        %v1358 = vunpack.c.l.b16 %v393
        %v1359 = vunpack.c.h.b16 %v393
        %v1360 = vunpack.c.l.b16 %v394
        %v1361 = vunpack.c.l.b16 %v395
        %v1362 = vunpack.c.h.b16 %v395
        %v1363 = vunpack.c.l.b16 %v396
        %v1364 = vunpack.c.h.b16 %v396
        %v1365 = vunpack.c.l.b16 %v397
        %v1366 = vunpack.c.h.b16 %v397
        %v1367 = vunpack.c.l.b16 %v398
        %v1368 = vunpack.c.h.b16 %v398
        %v1369 = vunpack.c.l.b16 %v399
        %v1370 = vunpack.c.l.b16 %v400
        %v1371 = vunpack.c.h.b16 %v400
        %v1372 = vunpack.c.l.b16 %v401
        %v1373 = vunpack.c.h.b16 %v401
        %v1374 = vunpack.c.l.b16 %v402
        %v1375 = vunpack.c.h.b16 %v402
        %v1376 = vunpack.c.l.b16 %v403
        %v1377 = vunpack.c.h.b16 %v403
        %v1378 = vunpack.c.l.b16 %v404
        %v1379 = vunpack.c.l.b16 %v405
        %v1380 = vunpack.c.h.b16 %v405
        %v1381 = vunpack.c.l.b16 %v406
        %v1382 = vunpack.c.h.b16 %v406
        %v1383 = vunpack.c.l.b16 %v407
        %v1384 = vunpack.c.h.b16 %v407
        %v1385 = vunpack.c.l.b16 %v408
        %v1386 = vunpack.c.h.b16 %v408
        %v1387 = vunpack.c.l.b16 %v409
        %v1388 = vunpack.c.l.b16 %v410
        %v1389 = vunpack.c.h.b16 %v410
        %v1390 = vunpack.c.l.b16 %v411
        %v1391 = vunpack.c.h.b16 %v411
        %v1392 = vunpack.c.l.b16 %v412
        %v1393 = vunpack.c.h.b16 %v412
        %v1394 = vunpack.c.l.b16 %v413
        %v1395 = vunpack.c.h.b16 %v413
        %v1396 = vunpack.c.l.b16 %v414
        %v1397 = vunpack.c.l.b16 %v415
        %v1398 = vunpack.c.h.b16 %v415
        %v1399 = vunpack.c.l.b16 %v416
        %v1400 = vunpack.c.h.b16 %v416
        %v1401 = vunpack.c.l.b16 %v417
        %v1402 = vunpack.c.h.b16 %v417
        %v1403 = vunpack.c.l.b16 %v418
        %v1404 = vunpack.c.h.b16 %v418
        %v1405 = vunpack.c.l.b16 %v419
        %v1406 = vunpack.c.l.b16 %v420
        %v1407 = vunpack.c.h.b16 %v420
        %v1408 = vunpack.c.l.b16 %v421
        %v1409 = vunpack.c.h.b16 %v421
        %v1410 = vunpack.c.l.b16 %v422
        %v1411 = vunpack.c.h.b16 %v422
        %v1412 = vunpack.c.l.b16 %v423
        %v1413 = vunpack.c.h.b16 %v423
        %v1414 = vunpack.c.l.b16 %v424
        %v1415 = vunpack.c.l.b16 %v425
        %v1416 = vunpack.c.h.b16 %v425
        %v1417 = vunpack.c.l.b16 %v426
        %v1418 = vunpack.c.h.b16 %v426
        %v1419 = vunpack.c.l.b16 %v427
        %v1420 = vunpack.c.h.b16 %v427
        %v1421 = vunpack.c.l.b16 %v428
        %v1422 = vunpack.c.h.b16 %v428
        %v1423 = vunpack.c.l.b16 %v429
        %v1424 = vunpack.c.l.b16 %v430
        %v1425 = vunpack.c.h.b16 %v430
        %v1426 = vunpack.c.l.b16 %v431
        %v1427 = vunpack.c.h.b16 %v431
        %v1428 = vunpack.c.l.b16 %v432
        %v1429 = vunpack.c.h.b16 %v432
        %v1430 = vunpack.c.l.b16 %v433
        %v1431 = vunpack.c.h.b16 %v433
        %v1432 = vunpack.c.l.b16 %v434
        %v1433 = vunpack.c.l.b16 %v435
        %v1434 = vunpack.c.h.b16 %v435
        %v1435 = vunpack.c.l.b16 %v436
        %v1436 = vunpack.c.h.b16 %v436
        %v1437 = vunpack.c.l.b16 %v437
        %v1438 = vunpack.c.h.b16 %v437
        %v1439 = vunpack.c.l.b16 %v438
        %v1440 = vunpack.c.h.b16 %v438
        %v1441 = vunpack.c.l.b16 %v439
        %v1442 = vunpack.c.l.b16 %v440
        %v1443 = vunpack.c.h.b16 %v440
        %v1444 = vunpack.c.l.b16 %v441
        %v1445 = vunpack.c.h.b16 %v441
        %v1446 = vunpack.c.l.b16 %v442
        %v1447 = vunpack.c.h.b16 %v442
        %v1448 = vunpack.c.l.b16 %v443
        %v1449 = vunpack.c.h.b16 %v443
        %v1450 = vunpack.c.l.b16 %v444
        %v1451 = vunpack.c.l.b16 %v445
        %v1452 = vunpack.c.h.b16 %v445
        %v1453 = vunpack.c.l.b16 %v446
        %v1454 = vunpack.c.h.b16 %v446
        %v1455 = vunpack.c.l.b16 %v447
        %v1456 = vunpack.c.h.b16 %v447
        %v1457 = vunpack.c.l.b16 %v448
        %v1458 = vunpack.c.h.b16 %v448
        %v1459 = vunpack.c.l.b16 %v449
        %v1460 = vunpack.c.l.b16 %v450
        %v1461 = vunpack.c.h.b16 %v450
        %v1462 = vunpack.c.l.b16 %v451
        %v1463 = vunpack.c.h.b16 %v451
        %v1464 = vunpack.c.l.b16 %v452
        %v1465 = vunpack.c.h.b16 %v452
        %v1466 = vunpack.c.l.b16 %v453
        %v1467 = vunpack.c.h.b16 %v453
        %v1468 = vunpack.c.l.b16 %v454
        %v1469 = vunpack.c.l.b16 %v455
        %v1470 = vunpack.c.h.b16 %v455
        %v1471 = vunpack.c.l.b16 %v456
        %v1472 = vunpack.c.h.b16 %v456
        %v1473 = vunpack.c.l.b16 %v457
        %v1474 = vunpack.c.h.b16 %v457
        %v1475 = vunpack.c.l.b16 %v458
        %v1476 = vunpack.c.h.b16 %v458
        %v1477 = vunpack.c.l.b16 %v459
        %v1478 = vunpack.c.l.b16 %v460
        %v1479 = vunpack.c.h.b16 %v460
        %v1480 = vunpack.c.l.b16 %v461
        %v1481 = vunpack.c.h.b16 %v461
        %v1482 = vunpack.c.l.b16 %v462
        %v1483 = vunpack.c.h.b16 %v462
        %v1484 = vunpack.c.l.b16 %v463
        %v1485 = vunpack.c.h.b16 %v463
        %v1486 = vunpack.c.l.b16 %v464
        %v1487 = vunpack.c.l.b16 %v465
        %v1488 = vunpack.c.h.b16 %v465
        %v1489 = vunpack.c.l.b16 %v466
        %v1490 = vunpack.c.h.b16 %v466
        %v1491 = vunpack.c.l.b16 %v467
        %v1492 = vunpack.c.h.b16 %v467
        %v1493 = vunpack.c.l.b16 %v468
        %v1494 = vunpack.c.h.b16 %v468
        %v1495 = vunpack.c.l.b16 %v469
        %v1496 = vunpack.c.l.b16 %v470
        %v1497 = vunpack.c.h.b16 %v470
        %v1498 = vunpack.c.l.b16 %v471
        %v1499 = vunpack.c.h.b16 %v471
        %v1500 = vunpack.c.l.b16 %v472
        %v1501 = vunpack.c.h.b16 %v472
        %v1502 = vunpack.c.l.b16 %v473
        %v1503 = vunpack.c.h.b16 %v473
        %v1504 = vunpack.c.l.b16 %v474
        %v1505 = vunpack.c.l.b16 %v475
        %v1506 = vunpack.c.h.b16 %v475
        %v1507 = vunpack.c.l.b16 %v476
        %v1508 = vunpack.c.h.b16 %v476
        %v1509 = vunpack.c.l.b16 %v477
        %v1510 = vunpack.c.h.b16 %v477
        %v1511 = vunpack.c.l.b16 %v478
        %v1512 = vunpack.c.h.b16 %v478
        %v1513 = vunpack.c.l.b16 %v479
        %v1514 = vunpack.c.l.b16 %v480
        %v1515 = vunpack.c.h.b16 %v480
        %v1516 = vunpack.c.l.b16 %v481
        %v1517 = vunpack.c.h.b16 %v481
        %v1518 = vunpack.c.l.b16 %v482
        %v1519 = vunpack.c.h.b16 %v482
        %v1520 = vunpack.c.l.b16 %v483
        %v1521 = vunpack.c.h.b16 %v483
        %v1522 = vunpack.c.l.b16 %v484
        %v1523 = vunpack.c.l.b16 %v485
        %v1524 = vunpack.c.h.b16 %v485
        %v1525 = vunpack.c.l.b16 %v486
        %v1526 = vunpack.c.h.b16 %v486
        %v1527 = vunpack.c.l.b16 %v487
        %v1528 = vunpack.c.h.b16 %v487
        %v1529 = vunpack.c.l.b16 %v488
        %v1530 = vunpack.c.h.b16 %v488
        %v1531 = vunpack.c.l.b16 %v489
        %v1532 = vunpack.c.l.b16 %v490
        %v1533 = vunpack.c.h.b16 %v490
        %v1534 = vunpack.c.l.b16 %v491
        %v1535 = vunpack.c.h.b16 %v491
        %v1536 = vunpack.c.l.b16 %v492
        %v1537 = vunpack.c.h.b16 %v492
        %v1538 = vunpack.c.l.b16 %v493
        %v1539 = vunpack.c.h.b16 %v493
        %v1540 = vunpack.c.l.b16 %v494
        %v1541 = vunpack.c.l.b16 %v495
        %v1542 = vunpack.c.h.b16 %v495
        %v1543 = vunpack.c.l.b16 %v496
        %v1544 = vunpack.c.h.b16 %v496
        %v1545 = vunpack.c.l.b16 %v497
        %v1546 = vunpack.c.h.b16 %v497
        %v1547 = vunpack.c.l.b16 %v498
        %v1548 = vunpack.c.h.b16 %v498
        %v1549 = vunpack.c.l.b16 %v499
        %v1550 = vunpack.c.l.b16 %v500
        %v1551 = vunpack.c.h.b16 %v500
        %v1552 = vunpack.c.l.b16 %v501
        %v1553 = vunpack.c.h.b16 %v501
        %v1554 = vunpack.c.l.b16 %v502
        %v1555 = vunpack.c.h.b16 %v502
        %v1556 = vunpack.c.l.b16 %v503
        %v1557 = vunpack.c.h.b16 %v503
        %v1558 = vunpack.c.l.b16 %v504
        %v1559 = vunpack.c.l.b16 %v505
        %v1560 = vunpack.c.h.b16 %v505
        %v1561 = vunpack.c.l.b16 %v506
        %v1562 = vunpack.c.h.b16 %v506
        %v1563 = vunpack.c.l.b16 %v507
        %v1564 = vunpack.c.h.b16 %v507
        %v1565 = vunpack.c.l.b16 %v508
        %v1566 = vunpack.c.h.b16 %v508
        %v1567 = vunpack.c.l.b16 %v509
        %v1568 = vunpack.c.l.b16 %v510
        %v1569 = vunpack.c.h.b16 %v510
        %v1570 = vunpack.c.l.b16 %v511
        %v1571 = vunpack.c.h.b16 %v511
        %v1572 = vunpack.c.l.b16 %v512
        %v1573 = vunpack.c.h.b16 %v512
        %v1574 = vunpack.c.l.b16 %v513
        %v1575 = vunpack.c.h.b16 %v513
        %v1576 = vunpack.c.l.b16 %v514
        %v1577 = vunpack.c.l.b16 %v515
        %v1578 = vunpack.c.h.b16 %v515
        %v1579 = vunpack.c.l.b16 %v516
        %v1580 = vunpack.c.h.b16 %v516
        %v1581 = vunpack.c.l.b16 %v517
        %v1582 = vunpack.c.h.b16 %v517
        %v1583 = vunpack.c.l.b16 %v518
        %v1584 = vunpack.c.h.b16 %v518
        %v1585 = vunpack.c.l.b16 %v519
        %v1586 = vunpack.c.l.b16 %v520
        %v1587 = vunpack.c.h.b16 %v520
        %v1588 = vunpack.c.l.b16 %v521
        %v1589 = vunpack.c.h.b16 %v521
        %v1590 = vunpack.c.l.b16 %v522
        %v1591 = vunpack.c.h.b16 %v522
        %v1592 = vunpack.c.l.b16 %v523
        %v1593 = vunpack.c.h.b16 %v523
        %v1594 = vunpack.c.l.b16 %v524
        %v1595 = vunpack.c.l.b16 %v525
        %v1596 = vunpack.c.h.b16 %v525
        %v1597 = vunpack.c.l.b16 %v526
        %v1598 = vunpack.c.h.b16 %v526
        %v1599 = vunpack.c.l.b16 %v527
        %v1600 = vunpack.c.h.b16 %v527
        %v1601 = vunpack.c.l.b16 %v528
        %v1602 = vunpack.c.h.b16 %v528
        %v1603 = vunpack.c.l.b16 %v529
        %v1604 = vunpack.c.l.b16 %v530
        %v1605 = vunpack.c.h.b16 %v530
        %v1606 = vunpack.c.l.b16 %v531
        %v1607 = vunpack.c.h.b16 %v531
        %v1608 = vunpack.c.l.b16 %v532
        %v1609 = vunpack.c.h.b16 %v532
        %v1610 = vunpack.c.l.b16 %v533
        %v1611 = vunpack.c.h.b16 %v533
        %v1612 = vunpack.c.l.b16 %v534
        %v1613 = vunpack.c.l.b16 %v535
        %v1614 = vunpack.c.h.b16 %v535
        %v1615 = vunpack.c.l.b16 %v536
        %v1616 = vunpack.c.h.b16 %v536
        %v1617 = vunpack.c.l.b16 %v537
        %v1618 = vunpack.c.h.b16 %v537
        %v1619 = vunpack.c.l.b16 %v538
        %v1620 = vunpack.c.h.b16 %v538
        %v1621 = vunpack.c.l.b16 %v539
        %v1622 = vunpack.c.l.b16 %v540
        %v1623 = vunpack.c.h.b16 %v540
        %v1624 = vunpack.c.l.b16 %v541
        %v1625 = vunpack.c.h.b16 %v541
        %v1626 = vunpack.c.l.b16 %v542
        %v1627 = vunpack.c.h.b16 %v542
        %v1628 = vunpack.c.l.b16 %v543
        %v1629 = vunpack.c.h.b16 %v543
        %v1630 = vunpack.c.l.b16 %v544
        %v1631 = vunpack.c.l.b16 %v545
        %v1632 = vunpack.c.h.b16 %v545
        %v1633 = vunpack.c.l.b16 %v546
        %v1634 = vunpack.c.h.b16 %v546
        %v1635 = vunpack.c.l.b16 %v547
        %v1636 = vunpack.c.h.b16 %v547
        %v1637 = vunpack.c.l.b16 %v548
        %v1638 = vunpack.c.h.b16 %v548
        %v1639 = vunpack.c.l.b16 %v549
        %v1640 = vunpack.c.l.b16 %v550
        %v1641 = vunpack.c.h.b16 %v550
        %v1642 = vunpack.c.l.b16 %v551
        %v1643 = vunpack.c.h.b16 %v551
        %v1644 = vunpack.c.l.b16 %v552
        %v1645 = vunpack.c.h.b16 %v552
        %v1646 = vunpack.c.l.b16 %v553
        %v1647 = vunpack.c.h.b16 %v553
        %v1648 = vunpack.c.l.b16 %v554
        %v1649 = vunpack.c.l.b16 %v555
        %v1650 = vunpack.c.h.b16 %v555
        %v1651 = vunpack.c.l.b16 %v556
        %v1652 = vunpack.c.h.b16 %v556
        %v1653 = vunpack.c.l.b16 %v557
        %v1654 = vunpack.c.h.b16 %v557
        %v1655 = vunpack.c.l.b16 %v558
        %v1656 = vunpack.c.h.b16 %v558
        %v1657 = vunpack.c.l.b16 %v559
        %v1658 = vunpack.c.l.b16 %v560
        %v1659 = vunpack.c.h.b16 %v560
        %v1660 = vunpack.c.l.b16 %v561
        %v1661 = vunpack.c.h.b16 %v561
        %v1662 = vunpack.c.l.b16 %v562
        %v1663 = vunpack.c.h.b16 %v562
        %v1664 = vunpack.c.l.b16 %v563
        %v1665 = vunpack.c.h.b16 %v563
        %v1666 = vunpack.c.l.b16 %v564
        %v1667 = vunpack.c.l.b16 %v565
        %v1668 = vunpack.c.h.b16 %v565
        %v1669 = vunpack.c.l.b16 %v566
        %v1670 = vunpack.c.h.b16 %v566
        %v1671 = vunpack.c.l.b16 %v567
        %v1672 = vunpack.c.h.b16 %v567
        %v1673 = vunpack.c.l.b16 %v568
        %v1674 = vunpack.c.h.b16 %v568
        %v1675 = vunpack.c.l.b16 %v569
        %v1676 = vunpack.c.l.b16 %v570
        %v1677 = vunpack.c.h.b16 %v570
        %v1678 = vunpack.c.l.b16 %v571
        %v1679 = vunpack.c.h.b16 %v571
        %v1680 = vunpack.c.l.b16 %v572
        %v1681 = vunpack.c.h.b16 %v572
        %v1682 = vunpack.c.l.b16 %v573
        %v1683 = vunpack.c.h.b16 %v573
        %v1684 = vunpack.c.l.b16 %v574
        %v1685 = vunpack.c.l.b16 %v575
        %v1686 = vunpack.c.h.b16 %v575
        %v1687 = vunpack.c.l.b16 %v576
        %v1688 = vunpack.c.h.b16 %v576
        %v1689 = vunpack.c.l.b16 %v577
        %v1690 = vunpack.c.h.b16 %v577
        %v1691 = vunpack.c.l.b16 %v578
        %v1692 = vunpack.c.h.b16 %v578
        %v1693 = vunpack.c.l.b16 %v579
        %v1694 = vunpack.c.l.b16 %v580
        %v1695 = vunpack.c.h.b16 %v580
        %v1696 = vunpack.c.l.b16 %v581
        %v1697 = vunpack.c.h.b16 %v581
        %v1698 = vunpack.c.l.b16 %v582
        %v1699 = vunpack.c.h.b16 %v582
        %v1700 = vunpack.c.l.b16 %v583
        %v1701 = vunpack.c.h.b16 %v583
        %v1702 = vunpack.c.l.b16 %v584
        %v1703 = vunpack.c.l.b16 %v585
        %v1704 = vunpack.c.h.b16 %v585
        %v1705 = vunpack.c.l.b16 %v586
        %v1706 = vunpack.c.h.b16 %v586
        %v1707 = vunpack.c.l.b16 %v587
        %v1708 = vunpack.c.h.b16 %v587
        %v1709 = vunpack.c.l.b16 %v588
        %v1710 = vunpack.c.h.b16 %v588
        %v1711 = vunpack.c.l.b16 %v589
        %v1712 = vunpack.c.l.b16 %v590
        %v1713 = vunpack.c.h.b16 %v590
        %v1714 = vunpack.c.l.b16 %v591
        %v1715 = vunpack.c.h.b16 %v591
        %v1716 = vunpack.c.l.b16 %v592
        %v1717 = vunpack.c.h.b16 %v592
        %v1718 = vunpack.c.l.b16 %v593
        %v1719 = vunpack.c.h.b16 %v593
        %v1720 = vunpack.c.l.b16 %v594
        %v1721 = vunpack.c.l.b16 %v595
        %v1722 = vunpack.c.h.b16 %v595
        %v1723 = vunpack.c.l.b16 %v596
        %v1724 = vunpack.c.h.b16 %v596
        %v1725 = vunpack.c.l.b16 %v597
        %v1726 = vunpack.c.h.b16 %v597
        %v1727 = vunpack.c.l.b16 %v598
        %v1728 = vunpack.c.h.b16 %v598
        %v1729 = vunpack.c.l.b16 %v599
        %v1730 = vunpack.c.l.b16 %v600
        %v1731 = vunpack.c.h.b16 %v600
        %v1732 = vunpack.c.l.b16 %v601
        %v1733 = vunpack.c.h.b16 %v601
        %v1734 = vunpack.c.l.b16 %v602
        %v1735 = vunpack.c.h.b16 %v602
        %v1736 = vunpack.c.l.b16 %v603
        %v1737 = vunpack.c.h.b16 %v603
        %v1738 = vunpack.c.l.b16 %v604
        %v1739 = vunpack.c.l.b16 %v605
        %v1740 = vunpack.c.h.b16 %v605
        %v1741 = vunpack.c.l.b16 %v606
        %v1742 = vunpack.c.h.b16 %v606
        %v1743 = vunpack.c.l.b16 %v607
        %v1744 = vunpack.c.h.b16 %v607
        %v1745 = vunpack.c.l.b16 %v608
        %v1746 = vunpack.c.h.b16 %v608
        %v1747 = vunpack.c.l.b16 %v609
        %v1748 = vunpack.c.l.b16 %v610
        %v1749 = vunpack.c.h.b16 %v610
        %v1750 = vunpack.c.l.b16 %v611
        %v1751 = vunpack.c.h.b16 %v611
        %v1752 = vunpack.c.l.b16 %v612
        %v1753 = vunpack.c.h.b16 %v612
        %v1754 = vunpack.c.l.b16 %v613
        %v1755 = vunpack.c.h.b16 %v613
        %v1756 = vunpack.c.l.b16 %v614
        %v1757 = vunpack.c.l.b16 %v615
        %v1758 = vunpack.c.h.b16 %v615
        %v1759 = vunpack.c.l.b16 %v616
        %v1760 = vunpack.c.h.b16 %v616
        %v1761 = vunpack.c.l.b16 %v617
        %v1762 = vunpack.c.h.b16 %v617
        %v1763 = vunpack.c.l.b16 %v618
        %v1764 = vunpack.c.h.b16 %v618
        %v1765 = vunpack.c.l.b16 %v619
        %v1766 = vunpack.c.l.b16 %v620
        %v1767 = vunpack.c.h.b16 %v620
        %v1768 = vunpack.c.l.b16 %v621
        %v1769 = vunpack.c.h.b16 %v621
        %v1770 = vunpack.c.l.b16 %v622
        %v1771 = vunpack.c.h.b16 %v622
        %v1772 = vunpack.c.l.b16 %v623
        %v1773 = vunpack.c.h.b16 %v623
        %v1774 = vunpack.c.l.b16 %v624
        %v1775 = vpack.c.b16 %v1208, %v1199
        %v1776 = vpack.c.b16 %v1209, %v1200
        %v1777 = vpack.c.b16 %v1210, %v1201
        %v1778 = vpack.c.b16 %v1211, %v1202
        %v1779 = vpack.c.b16 %v1212, %v1203
        %v1780 = vpack.c.b16 %v1213, %v1204
        %v1781 = vpack.c.b16 %v1214, %v1205
        %v1782 = vpack.c.b16 %v1215, %v1206
        %v1783 = vpack.c.b16 %v1216, %v1207
        %v1784 = vpack.c.b16 %v1226, %v1217
        %v1785 = vpack.c.b16 %v1227, %v1218
        %v1786 = vpack.c.b16 %v1228, %v1219
        %v1787 = vpack.c.b16 %v1229, %v1220
        %v1788 = vpack.c.b16 %v1230, %v1221
        %v1789 = vpack.c.b16 %v1231, %v1222
        %v1790 = vpack.c.b16 %v1232, %v1223
        %v1791 = vpack.c.b16 %v1233, %v1224
        %v1792 = vpack.c.b16 %v1234, %v1225
        %v1793 = vpack.c.b16 %v1244, %v1235
        %v1794 = vpack.c.b16 %v1245, %v1236
        %v1795 = vpack.c.b16 %v1246, %v1237
        %v1796 = vpack.c.b16 %v1247, %v1238
        %v1797 = vpack.c.b16 %v1248, %v1239
        %v1798 = vpack.c.b16 %v1249, %v1240
        %v1799 = vpack.c.b16 %v1250, %v1241
        %v1800 = vpack.c.b16 %v1251, %v1242
        %v1801 = vpack.c.b16 %v1252, %v1243
        %v1802 = vpack.c.b16 %v1262, %v1253
        %v1803 = vpack.c.b16 %v1263, %v1254
        %v1804 = vpack.c.b16 %v1264, %v1255
        %v1805 = vpack.c.b16 %v1265, %v1256
        %v1806 = vpack.c.b16 %v1266, %v1257
        %v1807 = vpack.c.b16 %v1267, %v1258
        %v1808 = vpack.c.b16 %v1268, %v1259
        %v1809 = vpack.c.b16 %v1269, %v1260
        %v1810 = vpack.c.b16 %v1270, %v1261
        %v1811 = vpack.c.b16 %v1280, %v1271
        %v1812 = vpack.c.b16 %v1281, %v1272
        %v1813 = vpack.c.b16 %v1282, %v1273
        %v1814 = vpack.c.b16 %v1283, %v1274
        %v1815 = vpack.c.b16 %v1284, %v1275
        %v1816 = vpack.c.b16 %v1285, %v1276
        %v1817 = vpack.c.b16 %v1286, %v1277
        %v1818 = vpack.c.b16 %v1287, %v1278
        %v1819 = vpack.c.b16 %v1288, %v1279
        %v1820 = vpack.c.b16 %v1298, %v1289
        %v1821 = vpack.c.b16 %v1299, %v1290
        %v1822 = vpack.c.b16 %v1300, %v1291
        %v1823 = vpack.c.b16 %v1301, %v1292
        %v1824 = vpack.c.b16 %v1302, %v1293
        %v1825 = vpack.c.b16 %v1303, %v1294
        %v1826 = vpack.c.b16 %v1304, %v1295
        %v1827 = vpack.c.b16 %v1305, %v1296
        %v1828 = vpack.c.b16 %v1306, %v1297
        %v1829 = vpack.c.b16 %v1316, %v1307
        %v1830 = vpack.c.b16 %v1317, %v1308
        %v1831 = vpack.c.b16 %v1318, %v1309
        %v1832 = vpack.c.b16 %v1319, %v1310
        %v1833 = vpack.c.b16 %v1320, %v1311
        %v1834 = vpack.c.b16 %v1321, %v1312
        %v1835 = vpack.c.b16 %v1322, %v1313
        %v1836 = vpack.c.b16 %v1323, %v1314
        %v1837 = vpack.c.b16 %v1324, %v1315
        %v1838 = vpack.c.b16 %v1334, %v1325
        %v1839 = vpack.c.b16 %v1335, %v1326
        %v1840 = vpack.c.b16 %v1336, %v1327
        %v1841 = vpack.c.b16 %v1337, %v1328
        %v1842 = vpack.c.b16 %v1338, %v1329
        %v1843 = vpack.c.b16 %v1339, %v1330
        %v1844 = vpack.c.b16 %v1340, %v1331
        %v1845 = vpack.c.b16 %v1341, %v1332
        %v1846 = vpack.c.b16 %v1342, %v1333
        %v1847 = vpack.c.b16 %v1352, %v1343
        %v1848 = vpack.c.b16 %v1353, %v1344
        %v1849 = vpack.c.b16 %v1354, %v1345
        %v1850 = vpack.c.b16 %v1355, %v1346
        %v1851 = vpack.c.b16 %v1356, %v1347
        %v1852 = vpack.c.b16 %v1357, %v1348
        %v1853 = vpack.c.b16 %v1358, %v1349
        %v1854 = vpack.c.b16 %v1359, %v1350
        %v1855 = vpack.c.b16 %v1360, %v1351
        %v1856 = vpack.c.b16 %v1370, %v1361
        %v1857 = vpack.c.b16 %v1371, %v1362
        %v1858 = vpack.c.b16 %v1372, %v1363
        %v1859 = vpack.c.b16 %v1373, %v1364
        %v1860 = vpack.c.b16 %v1374, %v1365
        %v1861 = vpack.c.b16 %v1375, %v1366
        %v1862 = vpack.c.b16 %v1376, %v1367
        %v1863 = vpack.c.b16 %v1377, %v1368
        %v1864 = vpack.c.b16 %v1378, %v1369
        %v1865 = vpack.c.b16 %v1388, %v1379
        %v1866 = vpack.c.b16 %v1389, %v1380
        %v1867 = vpack.c.b16 %v1390, %v1381
        %v1868 = vpack.c.b16 %v1391, %v1382
        %v1869 = vpack.c.b16 %v1392, %v1383
        %v1870 = vpack.c.b16 %v1393, %v1384
        %v1871 = vpack.c.b16 %v1394, %v1385
        %v1872 = vpack.c.b16 %v1395, %v1386
        %v1873 = vpack.c.b16 %v1396, %v1387
        %v1874 = vpack.c.b16 %v1406, %v1397
        %v1875 = vpack.c.b16 %v1407, %v1398
        %v1876 = vpack.c.b16 %v1408, %v1399
        %v1877 = vpack.c.b16 %v1409, %v1400
        %v1878 = vpack.c.b16 %v1410, %v1401
        %v1879 = vpack.c.b16 %v1411, %v1402
        %v1880 = vpack.c.b16 %v1412, %v1403
        %v1881 = vpack.c.b16 %v1413, %v1404
        %v1882 = vpack.c.b16 %v1414, %v1405
        %v1883 = vpack.c.b16 %v1424, %v1415
        %v1884 = vpack.c.b16 %v1425, %v1416
        %v1885 = vpack.c.b16 %v1426, %v1417
        %v1886 = vpack.c.b16 %v1427, %v1418
        %v1887 = vpack.c.b16 %v1428, %v1419
        %v1888 = vpack.c.b16 %v1429, %v1420
        %v1889 = vpack.c.b16 %v1430, %v1421
        %v1890 = vpack.c.b16 %v1431, %v1422
        %v1891 = vpack.c.b16 %v1432, %v1423
        %v1892 = vpack.c.b16 %v1442, %v1433
        %v1893 = vpack.c.b16 %v1443, %v1434
        %v1894 = vpack.c.b16 %v1444, %v1435
        %v1895 = vpack.c.b16 %v1445, %v1436
        %v1896 = vpack.c.b16 %v1446, %v1437
        %v1897 = vpack.c.b16 %v1447, %v1438
        %v1898 = vpack.c.b16 %v1448, %v1439
        %v1899 = vpack.c.b16 %v1449, %v1440
        %v1900 = vpack.c.b16 %v1450, %v1441
        %v1901 = vpack.c.b16 %v1460, %v1451
        %v1902 = vpack.c.b16 %v1461, %v1452
        %v1903 = vpack.c.b16 %v1462, %v1453
        %v1904 = vpack.c.b16 %v1463, %v1454
        %v1905 = vpack.c.b16 %v1464, %v1455
        %v1906 = vpack.c.b16 %v1465, %v1456
        %v1907 = vpack.c.b16 %v1466, %v1457
        %v1908 = vpack.c.b16 %v1467, %v1458
        %v1909 = vpack.c.b16 %v1468, %v1459
        %v1910 = vpack.c.b16 %v1478, %v1469
        %v1911 = vpack.c.b16 %v1479, %v1470
        %v1912 = vpack.c.b16 %v1480, %v1471
        %v1913 = vpack.c.b16 %v1481, %v1472
        %v1914 = vpack.c.b16 %v1482, %v1473
        %v1915 = vpack.c.b16 %v1483, %v1474
        %v1916 = vpack.c.b16 %v1484, %v1475
        %v1917 = vpack.c.b16 %v1485, %v1476
        %v1918 = vpack.c.b16 %v1486, %v1477
        %v1919 = vpack.c.b16 %v1496, %v1487
        %v1920 = vpack.c.b16 %v1497, %v1488
        %v1921 = vpack.c.b16 %v1498, %v1489
        %v1922 = vpack.c.b16 %v1499, %v1490
        %v1923 = vpack.c.b16 %v1500, %v1491
        %v1924 = vpack.c.b16 %v1501, %v1492
        %v1925 = vpack.c.b16 %v1502, %v1493
        %v1926 = vpack.c.b16 %v1503, %v1494
        %v1927 = vpack.c.b16 %v1504, %v1495
        %v1928 = vpack.c.b16 %v1514, %v1505
        %v1929 = vpack.c.b16 %v1515, %v1506
        %v1930 = vpack.c.b16 %v1516, %v1507
        %v1931 = vpack.c.b16 %v1517, %v1508
        %v1932 = vpack.c.b16 %v1518, %v1509
        %v1933 = vpack.c.b16 %v1519, %v1510
        %v1934 = vpack.c.b16 %v1520, %v1511
        %v1935 = vpack.c.b16 %v1521, %v1512
        %v1936 = vpack.c.b16 %v1522, %v1513
        %v1937 = vpack.c.b16 %v1532, %v1523
        %v1938 = vpack.c.b16 %v1533, %v1524
        %v1939 = vpack.c.b16 %v1534, %v1525
        %v1940 = vpack.c.b16 %v1535, %v1526
        %v1941 = vpack.c.b16 %v1536, %v1527
        %v1942 = vpack.c.b16 %v1537, %v1528
        %v1943 = vpack.c.b16 %v1538, %v1529
        %v1944 = vpack.c.b16 %v1539, %v1530
        %v1945 = vpack.c.b16 %v1540, %v1531
        %v1946 = vpack.c.b16 %v1550, %v1541
        %v1947 = vpack.c.b16 %v1551, %v1542
        %v1948 = vpack.c.b16 %v1552, %v1543
        %v1949 = vpack.c.b16 %v1553, %v1544
        %v1950 = vpack.c.b16 %v1554, %v1545
        %v1951 = vpack.c.b16 %v1555, %v1546
        %v1952 = vpack.c.b16 %v1556, %v1547
        %v1953 = vpack.c.b16 %v1557, %v1548
        %v1954 = vpack.c.b16 %v1558, %v1549
        %v1955 = vpack.c.b16 %v1568, %v1559
        %v1956 = vpack.c.b16 %v1569, %v1560
        %v1957 = vpack.c.b16 %v1570, %v1561
        %v1958 = vpack.c.b16 %v1571, %v1562
        %v1959 = vpack.c.b16 %v1572, %v1563
        %v1960 = vpack.c.b16 %v1573, %v1564
        %v1961 = vpack.c.b16 %v1574, %v1565
        %v1962 = vpack.c.b16 %v1575, %v1566
        %v1963 = vpack.c.b16 %v1576, %v1567
        %v1964 = vpack.c.b16 %v1586, %v1577
        %v1965 = vpack.c.b16 %v1587, %v1578
        %v1966 = vpack.c.b16 %v1588, %v1579
        %v1967 = vpack.c.b16 %v1589, %v1580
        %v1968 = vpack.c.b16 %v1590, %v1581
        %v1969 = vpack.c.b16 %v1591, %v1582
        %v1970 = vpack.c.b16 %v1592, %v1583
        %v1971 = vpack.c.b16 %v1593, %v1584
        %v1972 = vpack.c.b16 %v1594, %v1585
        %v1973 = vpack.c.b16 %v1604, %v1595
        %v1974 = vpack.c.b16 %v1605, %v1596
        %v1975 = vpack.c.b16 %v1606, %v1597
        %v1976 = vpack.c.b16 %v1607, %v1598
        %v1977 = vpack.c.b16 %v1608, %v1599
        %v1978 = vpack.c.b16 %v1609, %v1600
        %v1979 = vpack.c.b16 %v1610, %v1601
        %v1980 = vpack.c.b16 %v1611, %v1602
        %v1981 = vpack.c.b16 %v1612, %v1603
        %v1982 = vpack.c.b16 %v1622, %v1613
        %v1983 = vpack.c.b16 %v1623, %v1614
        %v1984 = vpack.c.b16 %v1624, %v1615
        %v1985 = vpack.c.b16 %v1625, %v1616
        %v1986 = vpack.c.b16 %v1626, %v1617
        %v1987 = vpack.c.b16 %v1627, %v1618
        %v1988 = vpack.c.b16 %v1628, %v1619
        %v1989 = vpack.c.b16 %v1629, %v1620
        %v1990 = vpack.c.b16 %v1630, %v1621
        %v1991 = vpack.c.b16 %v1640, %v1631
        %v1992 = vpack.c.b16 %v1641, %v1632
        %v1993 = vpack.c.b16 %v1642, %v1633
        %v1994 = vpack.c.b16 %v1643, %v1634
        %v1995 = vpack.c.b16 %v1644, %v1635
        %v1996 = vpack.c.b16 %v1645, %v1636
        %v1997 = vpack.c.b16 %v1646, %v1637
        %v1998 = vpack.c.b16 %v1647, %v1638
        %v1999 = vpack.c.b16 %v1648, %v1639
        %v2000 = vpack.c.b16 %v1658, %v1649
        %v2001 = vpack.c.b16 %v1659, %v1650
        %v2002 = vpack.c.b16 %v1660, %v1651
        %v2003 = vpack.c.b16 %v1661, %v1652
        %v2004 = vpack.c.b16 %v1662, %v1653
        %v2005 = vpack.c.b16 %v1663, %v1654
        %v2006 = vpack.c.b16 %v1664, %v1655
        %v2007 = vpack.c.b16 %v1665, %v1656
        %v2008 = vpack.c.b16 %v1666, %v1657
        %v2009 = vpack.c.b16 %v1676, %v1667
        %v2010 = vpack.c.b16 %v1677, %v1668
        %v2011 = vpack.c.b16 %v1678, %v1669
        %v2012 = vpack.c.b16 %v1679, %v1670
        %v2013 = vpack.c.b16 %v1680, %v1671
        %v2014 = vpack.c.b16 %v1681, %v1672
        %v2015 = vpack.c.b16 %v1682, %v1673
        %v2016 = vpack.c.b16 %v1683, %v1674
        %v2017 = vpack.c.b16 %v1684, %v1675
        %v2018 = vpack.c.b16 %v1694, %v1685
        %v2019 = vpack.c.b16 %v1695, %v1686
        %v2020 = vpack.c.b16 %v1696, %v1687
        %v2021 = vpack.c.b16 %v1697, %v1688
        %v2022 = vpack.c.b16 %v1698, %v1689
        %v2023 = vpack.c.b16 %v1699, %v1690
        %v2024 = vpack.c.b16 %v1700, %v1691
        %v2025 = vpack.c.b16 %v1701, %v1692
        %v2026 = vpack.c.b16 %v1702, %v1693
        %v2027 = vpack.c.b16 %v1712, %v1703
        %v2028 = vpack.c.b16 %v1713, %v1704
        %v2029 = vpack.c.b16 %v1714, %v1705
        %v2030 = vpack.c.b16 %v1715, %v1706
        %v2031 = vpack.c.b16 %v1716, %v1707
        %v2032 = vpack.c.b16 %v1717, %v1708
        %v2033 = vpack.c.b16 %v1718, %v1709
        %v2034 = vpack.c.b16 %v1719, %v1710
        %v2035 = vpack.c.b16 %v1720, %v1711
        %v2036 = vpack.c.b16 %v1730, %v1721
        %v2037 = vpack.c.b16 %v1731, %v1722
        %v2038 = vpack.c.b16 %v1732, %v1723
        %v2039 = vpack.c.b16 %v1733, %v1724
        %v2040 = vpack.c.b16 %v1734, %v1725
        %v2041 = vpack.c.b16 %v1735, %v1726
        %v2042 = vpack.c.b16 %v1736, %v1727
        %v2043 = vpack.c.b16 %v1737, %v1728
        %v2044 = vpack.c.b16 %v1738, %v1729
        %v2045 = vpack.c.b16 %v1748, %v1739
        %v2046 = vpack.c.b16 %v1749, %v1740
        %v2047 = vpack.c.b16 %v1750, %v1741
        %v2048 = vpack.c.b16 %v1751, %v1742
        %v2049 = vpack.c.b16 %v1752, %v1743
        %v2050 = vpack.c.b16 %v1753, %v1744
        %v2051 = vpack.c.b16 %v1754, %v1745
        %v2052 = vpack.c.b16 %v1755, %v1746
        %v2053 = vpack.c.b16 %v1756, %v1747
        %v2054 = vpack.c.b16 %v1766, %v1757
        %v2055 = vpack.c.b16 %v1767, %v1758
        %v2056 = vpack.c.b16 %v1768, %v1759
        %v2057 = vpack.c.b16 %v1769, %v1760
        %v2058 = vpack.c.b16 %v1770, %v1761
        %v2059 = vpack.c.b16 %v1771, %v1762
        %v2060 = vpack.c.b16 %v1772, %v1763
        %v2061 = vpack.c.b16 %v1773, %v1764
        %v2062 = vpack.c.b16 %v1774, %v1765
        %2351 = vmatpush.bf16.msra.mxu0 %v1838
        %2352 = vmatpush.bf16.msra.mxu0 %v1829
        %2353 = vmatpush.bf16.msra.mxu0 %v1820
        %2354 = vmatpush.bf16.msra.mxu0 %v1811
        %2355 = vmatpush.bf16.msra.mxu0 %v1802
        %2356 = vmatpush.bf16.msra.mxu0 %v1793
        %2357 = vmatpush.bf16.msra.mxu0 %v1784
        %2358 = vmatpush.bf16.msra.mxu0 %v1775
        %2359 = vmatmul.bf16.gmra.mxu0 %v775
        %v2360 = vpop.f32.mrf.mxu0
        %v2361 = vadd.f32 0.0, %v2360
        %v2362 = vpop.f32.mrf.mxu0
        %v2363 = vadd.f32 0.0, %v2362
        %2364 = vmatmul.bf16.gmra.mxu0 %v779
        %v2365 = vpop.f32.mrf.mxu0
        %v2366 = vadd.f32 0.0, %v2365
        %v2367 = vpop.f32.mrf.mxu0
        %v2368 = vadd.f32 0.0, %v2367
        %2369 = vmatmul.bf16.gmra.mxu0 %v783
        %v2370 = vpop.f32.mrf.mxu0
        %v2371 = vadd.f32 0.0, %v2370
        %v2372 = vpop.f32.mrf.mxu0
        %v2373 = vadd.f32 0.0, %v2372
        %2374 = vmatmul.bf16.gmra.mxu0 %v787
        %v2375 = vpop.f32.mrf.mxu0
        %v2376 = vadd.f32 0.0, %v2375
        %v2377 = vpop.f32.mrf.mxu0
        %v2378 = vadd.f32 0.0, %v2377
        %2379 = vmatmul.bf16.gmra.mxu0 %v791
        %v2380 = vpop.f32.mrf.mxu0
        %v2381 = vadd.f32 0.0, %v2380
        %v2382 = vpop.f32.mrf.mxu0
        %v2383 = vadd.f32 0.0, %v2382
        %2384 = vmatmul.bf16.gmra.mxu0 %v795
        %v2385 = vpop.f32.mrf.mxu0
        %v2386 = vadd.f32 0.0, %v2385
        %v2387 = vpop.f32.mrf.mxu0
        %v2388 = vadd.f32 0.0, %v2387
        %2389 = vmatmul.bf16.gmra.mxu0 %v799
        %v2390 = vpop.f32.mrf.mxu0
        %v2391 = vadd.f32 0.0, %v2390
        %v2392 = vpop.f32.mrf.mxu0
        %v2393 = vadd.f32 0.0, %v2392
        %2394 = vmatmul.bf16.gmra.mxu0 %v803
        %v2395 = vpop.f32.mrf.mxu0
        %v2396 = vadd.f32 0.0, %v2395
        %v2397 = vpop.f32.mrf.mxu0
        %v2398 = vadd.f32 0.0, %v2397
        %2399 = vmatmul.bf16.gmra.mxu0 %v807
        %v2400 = vpop.f32.mrf.mxu0
        %v2401 = vadd.f32 0.0, %v2400
        %v2402 = vpop.f32.mrf.mxu0
        %v2403 = vadd.f32 0.0, %v2402
        %2404 = vmatmul.bf16.gmra.mxu0 %v811
        %v2405 = vpop.f32.mrf.mxu0
        %v2406 = vadd.f32 0.0, %v2405
        %v2407 = vpop.f32.mrf.mxu0
        %v2408 = vadd.f32 0.0, %v2407
        %2409 = vmatmul.bf16.gmra.mxu0 %v815
        %v2410 = vpop.f32.mrf.mxu0
        %v2411 = vadd.f32 0.0, %v2410
        %v2412 = vpop.f32.mrf.mxu0
        %v2413 = vadd.f32 0.0, %v2412
        %2414 = vmatmul.bf16.gmra.mxu0 %v819
        %v2415 = vpop.f32.mrf.mxu0
        %v2416 = vadd.f32 0.0, %v2415
        %v2417 = vpop.f32.mrf.mxu0
        %2418 = vmatmul.bf16.gmra.mxu0 %v823
        %v2419 = vpop.f32.mrf.mxu0
        %v2420 = vpop.f32.mrf.mxu0
        %2421 = vdwg.mxu0
        %2422 = vmatpush.bf16.msra.mxu0 %v1910
        %2423 = vmatpush.bf16.msra.mxu0 %v1901
        %2424 = vmatpush.bf16.msra.mxu0 %v1892
        %2425 = vmatpush.bf16.msra.mxu0 %v1883
        %2426 = vmatpush.bf16.msra.mxu0 %v1874
        %2427 = vmatpush.bf16.msra.mxu0 %v1865
        %2428 = vmatpush.bf16.msra.mxu0 %v1856
        %2429 = vmatpush.bf16.msra.mxu0 %v1847
        %2430 = vmatmul.bf16.gmra.mxu0 %v776
        %v2431 = vpop.f32.mrf.mxu0
        %v2432 = vadd.f32 %v2361, %v2431
        %v2433 = vpop.f32.mrf.mxu0
        %v2434 = vadd.f32 %v2363, %v2433
        %2435 = vmatmul.bf16.gmra.mxu0 %v780
        %v2436 = vpop.f32.mrf.mxu0
        %v2437 = vadd.f32 %v2366, %v2436
        %v2438 = vpop.f32.mrf.mxu0
        %v2439 = vadd.f32 %v2368, %v2438
        %2440 = vmatmul.bf16.gmra.mxu0 %v784
        %v2441 = vpop.f32.mrf.mxu0
        %v2442 = vadd.f32 %v2371, %v2441
        %v2443 = vpop.f32.mrf.mxu0
        %v2444 = vadd.f32 %v2373, %v2443
        %2445 = vmatmul.bf16.gmra.mxu0 %v788
        %v2446 = vpop.f32.mrf.mxu0
        %v2447 = vadd.f32 %v2376, %v2446
        %v2448 = vpop.f32.mrf.mxu0
        %v2449 = vadd.f32 %v2378, %v2448
        %2450 = vmatmul.bf16.gmra.mxu0 %v792
        %v2451 = vpop.f32.mrf.mxu0
        %v2452 = vadd.f32 %v2381, %v2451
        %v2453 = vpop.f32.mrf.mxu0
        %v2454 = vadd.f32 %v2383, %v2453
        %2455 = vmatmul.bf16.gmra.mxu0 %v796
        %v2456 = vpop.f32.mrf.mxu0
        %v2457 = vadd.f32 %v2386, %v2456
        %v2458 = vpop.f32.mrf.mxu0
        %v2459 = vadd.f32 %v2388, %v2458
        %2460 = vmatmul.bf16.gmra.mxu0 %v800
        %v2461 = vpop.f32.mrf.mxu0
        %v2462 = vadd.f32 %v2391, %v2461
        %v2463 = vpop.f32.mrf.mxu0
        %v2464 = vadd.f32 %v2393, %v2463
        %2465 = vmatmul.bf16.gmra.mxu0 %v804
        %v2466 = vpop.f32.mrf.mxu0
        %v2467 = vadd.f32 %v2396, %v2466
        %v2468 = vpop.f32.mrf.mxu0
        %v2469 = vadd.f32 %v2398, %v2468
        %2470 = vmatmul.bf16.gmra.mxu0 %v808
        %v2471 = vpop.f32.mrf.mxu0
        %v2472 = vadd.f32 %v2401, %v2471
        %v2473 = vpop.f32.mrf.mxu0
        %v2474 = vadd.f32 %v2403, %v2473
        %2475 = vmatmul.bf16.gmra.mxu0 %v812
        %v2476 = vpop.f32.mrf.mxu0
        %v2477 = vadd.f32 %v2406, %v2476
        %v2478 = vpop.f32.mrf.mxu0
        %v2479 = vadd.f32 %v2408, %v2478
        %2480 = vmatmul.bf16.gmra.mxu0 %v816
        %v2481 = vpop.f32.mrf.mxu0
        %v2482 = vadd.f32 %v2411, %v2481
        %v2483 = vpop.f32.mrf.mxu0
        %v2484 = vadd.f32 %v2413, %v2483
        %2485 = vmatmul.bf16.gmra.mxu0 %v820
        %v2486 = vpop.f32.mrf.mxu0
        %v2487 = vadd.f32 %v2416, %v2486
        %v2488 = vpop.f32.mrf.mxu0
        %2489 = vmatmul.bf16.gmra.mxu0 %v824
        %v2490 = vpop.f32.mrf.mxu0
        %v2491 = vpop.f32.mrf.mxu0
        %2492 = vdwg.mxu0
        %2493 = vmatpush.bf16.msra.mxu0 %v1982
        %2494 = vmatpush.bf16.msra.mxu0 %v1973
        %2495 = vmatpush.bf16.msra.mxu0 %v1964
        %2496 = vmatpush.bf16.msra.mxu0 %v1955
        %2497 = vmatpush.bf16.msra.mxu0 %v1946
        %2498 = vmatpush.bf16.msra.mxu0 %v1937
        %2499 = vmatpush.bf16.msra.mxu0 %v1928
        %2500 = vmatpush.bf16.msra.mxu0 %v1919
        %2501 = vmatmul.bf16.gmra.mxu0 %v777
        %v2502 = vpop.f32.mrf.mxu0
        %v2503 = vadd.f32 %v2432, %v2502
        %v2504 = vpop.f32.mrf.mxu0
        %v2505 = vadd.f32 %v2434, %v2504
        %2506 = vmatmul.bf16.gmra.mxu0 %v781
        %v2507 = vpop.f32.mrf.mxu0
        %v2508 = vadd.f32 %v2437, %v2507
        %v2509 = vpop.f32.mrf.mxu0
        %v2510 = vadd.f32 %v2439, %v2509
        %2511 = vmatmul.bf16.gmra.mxu0 %v785
        %v2512 = vpop.f32.mrf.mxu0
        %v2513 = vadd.f32 %v2442, %v2512
        %v2514 = vpop.f32.mrf.mxu0
        %v2515 = vadd.f32 %v2444, %v2514
        %2516 = vmatmul.bf16.gmra.mxu0 %v789
        %v2517 = vpop.f32.mrf.mxu0
        %v2518 = vadd.f32 %v2447, %v2517
        %v2519 = vpop.f32.mrf.mxu0
        %v2520 = vadd.f32 %v2449, %v2519
        %2521 = vmatmul.bf16.gmra.mxu0 %v793
        %v2522 = vpop.f32.mrf.mxu0
        %v2523 = vadd.f32 %v2452, %v2522
        %v2524 = vpop.f32.mrf.mxu0
        %v2525 = vadd.f32 %v2454, %v2524
        %2526 = vmatmul.bf16.gmra.mxu0 %v797
        %v2527 = vpop.f32.mrf.mxu0
        %v2528 = vadd.f32 %v2457, %v2527
        %v2529 = vpop.f32.mrf.mxu0
        %v2530 = vadd.f32 %v2459, %v2529
        %2531 = vmatmul.bf16.gmra.mxu0 %v801
        %v2532 = vpop.f32.mrf.mxu0
        %v2533 = vadd.f32 %v2462, %v2532
        %v2534 = vpop.f32.mrf.mxu0
        %v2535 = vadd.f32 %v2464, %v2534
        %2536 = vmatmul.bf16.gmra.mxu0 %v805
        %v2537 = vpop.f32.mrf.mxu0
        %v2538 = vadd.f32 %v2467, %v2537
        %v2539 = vpop.f32.mrf.mxu0
        %v2540 = vadd.f32 %v2469, %v2539
        %2541 = vmatmul.bf16.gmra.mxu0 %v809
        %v2542 = vpop.f32.mrf.mxu0
        %v2543 = vadd.f32 %v2472, %v2542
        %v2544 = vpop.f32.mrf.mxu0
        %v2545 = vadd.f32 %v2474, %v2544
        %2546 = vmatmul.bf16.gmra.mxu0 %v813
        %v2547 = vpop.f32.mrf.mxu0
        %v2548 = vadd.f32 %v2477, %v2547
        %v2549 = vpop.f32.mrf.mxu0
        %v2550 = vadd.f32 %v2479, %v2549
        %2551 = vmatmul.bf16.gmra.mxu0 %v817
        %v2552 = vpop.f32.mrf.mxu0
        %v2553 = vadd.f32 %v2482, %v2552
        %v2554 = vpop.f32.mrf.mxu0
        %v2555 = vadd.f32 %v2484, %v2554
        %2556 = vmatmul.bf16.gmra.mxu0 %v821
        %v2557 = vpop.f32.mrf.mxu0
        %v2558 = vadd.f32 %v2487, %v2557
        %v2559 = vpop.f32.mrf.mxu0
        %2560 = vmatmul.bf16.gmra.mxu0 %v825
        %v2561 = vpop.f32.mrf.mxu0
        %v2562 = vpop.f32.mrf.mxu0
        %2563 = vdwg.mxu0
        %2564 = vmatpush.bf16.msra.mxu0 %v2054
        %2565 = vmatpush.bf16.msra.mxu0 %v2045
        %2566 = vmatpush.bf16.msra.mxu0 %v2036
        %2567 = vmatpush.bf16.msra.mxu0 %v2027
        %2568 = vmatpush.bf16.msra.mxu0 %v2018
        %2569 = vmatpush.bf16.msra.mxu0 %v2009
        %2570 = vmatpush.bf16.msra.mxu0 %v2000
        %2571 = vmatpush.bf16.msra.mxu0 %v1991
        %2572 = vmatmul.bf16.gmra.mxu0 %v778
        %v2573 = vpop.f32.mrf.mxu0
        %v2574 = vadd.f32 %v2503, %v2573
        %v2575 = vpop.f32.mrf.mxu0
        %v2576 = vadd.f32 %v2505, %v2575
        %2577 = vmatmul.bf16.gmra.mxu0 %v782
        %v2578 = vpop.f32.mrf.mxu0
        %v2579 = vadd.f32 %v2508, %v2578
        %v2580 = vpop.f32.mrf.mxu0
        %v2581 = vadd.f32 %v2510, %v2580
        %2582 = vmatmul.bf16.gmra.mxu0 %v786
        %v2583 = vpop.f32.mrf.mxu0
        %v2584 = vadd.f32 %v2513, %v2583
        %v2585 = vpop.f32.mrf.mxu0
        %v2586 = vadd.f32 %v2515, %v2585
        %2587 = vmatmul.bf16.gmra.mxu0 %v790
        %v2588 = vpop.f32.mrf.mxu0
        %v2589 = vadd.f32 %v2518, %v2588
        %v2590 = vpop.f32.mrf.mxu0
        %v2591 = vadd.f32 %v2520, %v2590
        %2592 = vmatmul.bf16.gmra.mxu0 %v794
        %v2593 = vpop.f32.mrf.mxu0
        %v2594 = vadd.f32 %v2523, %v2593
        %v2595 = vpop.f32.mrf.mxu0
        %v2596 = vadd.f32 %v2525, %v2595
        %2597 = vmatmul.bf16.gmra.mxu0 %v798
        %v2598 = vpop.f32.mrf.mxu0
        %v2599 = vadd.f32 %v2528, %v2598
        %v2600 = vpop.f32.mrf.mxu0
        %v2601 = vadd.f32 %v2530, %v2600
        %2602 = vmatmul.bf16.gmra.mxu0 %v802
        %v2603 = vpop.f32.mrf.mxu0
        %v2604 = vadd.f32 %v2533, %v2603
        %v2605 = vpop.f32.mrf.mxu0
        %v2606 = vadd.f32 %v2535, %v2605
        %2607 = vmatmul.bf16.gmra.mxu0 %v806
        %v2608 = vpop.f32.mrf.mxu0
        %v2609 = vadd.f32 %v2538, %v2608
        %v2610 = vpop.f32.mrf.mxu0
        %v2611 = vadd.f32 %v2540, %v2610
        %2612 = vmatmul.bf16.gmra.mxu0 %v810
        %v2613 = vpop.f32.mrf.mxu0
        %v2614 = vadd.f32 %v2543, %v2613
        %v2615 = vpop.f32.mrf.mxu0
        %v2616 = vadd.f32 %v2545, %v2615
        %2617 = vmatmul.bf16.gmra.mxu0 %v814
        %v2618 = vpop.f32.mrf.mxu0
        %v2619 = vadd.f32 %v2548, %v2618
        %v2620 = vpop.f32.mrf.mxu0
        %v2621 = vadd.f32 %v2550, %v2620
        %2622 = vmatmul.bf16.gmra.mxu0 %v818
        %v2623 = vpop.f32.mrf.mxu0
        %v2624 = vadd.f32 %v2553, %v2623
        %v2625 = vpop.f32.mrf.mxu0
        %v2626 = vadd.f32 %v2555, %v2625
        %2627 = vmatmul.bf16.gmra.mxu0 %v822
        %v2628 = vpop.f32.mrf.mxu0
        %v2629 = vadd.f32 %v2558, %v2628
        %v2630 = vpop.f32.mrf.mxu0
        %2631 = vmatmul.bf16.gmra.mxu0 %v826
        %v2632 = vpop.f32.mrf.mxu0
        %v2633 = vpop.f32.mrf.mxu0
        %2634 = vdwg.mxu0
        %2635 = vmatpush.bf16.msra.mxu0 %v1839
        %2636 = vmatpush.bf16.msra.mxu0 %v1830
        %2637 = vmatpush.bf16.msra.mxu0 %v1821
        %2638 = vmatpush.bf16.msra.mxu0 %v1812
        %2639 = vmatpush.bf16.msra.mxu0 %v1803
        %2640 = vmatpush.bf16.msra.mxu0 %v1794
        %2641 = vmatpush.bf16.msra.mxu0 %v1785
        %2642 = vmatpush.bf16.msra.mxu0 %v1776
        %2643 = vmatmul.bf16.gmra.mxu0 %v775
        %v2644 = vpop.f32.mrf.mxu0
        %v2645 = vadd.f32 0.0, %v2644
        %v2646 = vpop.f32.mrf.mxu0
        %v2647 = vadd.f32 0.0, %v2646
        %2648 = vmatmul.bf16.gmra.mxu0 %v779
        %v2649 = vpop.f32.mrf.mxu0
        %v2650 = vadd.f32 0.0, %v2649
        %v2651 = vpop.f32.mrf.mxu0
        %v2652 = vadd.f32 0.0, %v2651
        %2653 = vmatmul.bf16.gmra.mxu0 %v783
        %v2654 = vpop.f32.mrf.mxu0
        %v2655 = vadd.f32 0.0, %v2654
        %v2656 = vpop.f32.mrf.mxu0
        %v2657 = vadd.f32 0.0, %v2656
        %2658 = vmatmul.bf16.gmra.mxu0 %v787
        %v2659 = vpop.f32.mrf.mxu0
        %v2660 = vadd.f32 0.0, %v2659
        %v2661 = vpop.f32.mrf.mxu0
        %v2662 = vadd.f32 0.0, %v2661
        %2663 = vmatmul.bf16.gmra.mxu0 %v791
        %v2664 = vpop.f32.mrf.mxu0
        %v2665 = vadd.f32 0.0, %v2664
        %v2666 = vpop.f32.mrf.mxu0
        %v2667 = vadd.f32 0.0, %v2666
        %2668 = vmatmul.bf16.gmra.mxu0 %v795
        %v2669 = vpop.f32.mrf.mxu0
        %v2670 = vadd.f32 0.0, %v2669
        %v2671 = vpop.f32.mrf.mxu0
        %v2672 = vadd.f32 0.0, %v2671
        %2673 = vmatmul.bf16.gmra.mxu0 %v799
        %v2674 = vpop.f32.mrf.mxu0
        %v2675 = vadd.f32 0.0, %v2674
        %v2676 = vpop.f32.mrf.mxu0
        %v2677 = vadd.f32 0.0, %v2676
        %2678 = vmatmul.bf16.gmra.mxu0 %v803
        %v2679 = vpop.f32.mrf.mxu0
        %v2680 = vadd.f32 0.0, %v2679
        %v2681 = vpop.f32.mrf.mxu0
        %v2682 = vadd.f32 0.0, %v2681
        %2683 = vmatmul.bf16.gmra.mxu0 %v807
        %v2684 = vpop.f32.mrf.mxu0
        %v2685 = vadd.f32 0.0, %v2684
        %v2686 = vpop.f32.mrf.mxu0
        %v2687 = vadd.f32 0.0, %v2686
        %2688 = vmatmul.bf16.gmra.mxu0 %v811
        %v2689 = vpop.f32.mrf.mxu0
        %v2690 = vadd.f32 0.0, %v2689
        %v2691 = vpop.f32.mrf.mxu0
        %v2692 = vadd.f32 0.0, %v2691
        %2693 = vmatmul.bf16.gmra.mxu0 %v815
        %v2694 = vpop.f32.mrf.mxu0
        %v2695 = vadd.f32 0.0, %v2694
        %v2696 = vpop.f32.mrf.mxu0
        %v2697 = vadd.f32 0.0, %v2696
        %2698 = vmatmul.bf16.gmra.mxu0 %v819
        %v2699 = vpop.f32.mrf.mxu0
        %v2700 = vadd.f32 0.0, %v2699
        %v2701 = vpop.f32.mrf.mxu0
        %2702 = vmatmul.bf16.gmra.mxu0 %v823
        %v2703 = vpop.f32.mrf.mxu0
        %v2704 = vpop.f32.mrf.mxu0
        %2705 = vdwg.mxu0
        %2706 = vmatpush.bf16.msra.mxu0 %v1911
        %2707 = vmatpush.bf16.msra.mxu0 %v1902
        %2708 = vmatpush.bf16.msra.mxu0 %v1893
        %2709 = vmatpush.bf16.msra.mxu0 %v1884
        %2710 = vmatpush.bf16.msra.mxu0 %v1875
        %2711 = vmatpush.bf16.msra.mxu0 %v1866
        %2712 = vmatpush.bf16.msra.mxu0 %v1857
        %2713 = vmatpush.bf16.msra.mxu0 %v1848
        %2714 = vmatmul.bf16.gmra.mxu0 %v776
        %v2715 = vpop.f32.mrf.mxu0
        %v2716 = vadd.f32 %v2645, %v2715
        %v2717 = vpop.f32.mrf.mxu0
        %v2718 = vadd.f32 %v2647, %v2717
        %2719 = vmatmul.bf16.gmra.mxu0 %v780
        %v2720 = vpop.f32.mrf.mxu0
        %v2721 = vadd.f32 %v2650, %v2720
        %v2722 = vpop.f32.mrf.mxu0
        %v2723 = vadd.f32 %v2652, %v2722
        %2724 = vmatmul.bf16.gmra.mxu0 %v784
        %v2725 = vpop.f32.mrf.mxu0
        %v2726 = vadd.f32 %v2655, %v2725
        %v2727 = vpop.f32.mrf.mxu0
        %v2728 = vadd.f32 %v2657, %v2727
        %2729 = vmatmul.bf16.gmra.mxu0 %v788
        %v2730 = vpop.f32.mrf.mxu0
        %v2731 = vadd.f32 %v2660, %v2730
        %v2732 = vpop.f32.mrf.mxu0
        %v2733 = vadd.f32 %v2662, %v2732
        %2734 = vmatmul.bf16.gmra.mxu0 %v792
        %v2735 = vpop.f32.mrf.mxu0
        %v2736 = vadd.f32 %v2665, %v2735
        %v2737 = vpop.f32.mrf.mxu0
        %v2738 = vadd.f32 %v2667, %v2737
        %2739 = vmatmul.bf16.gmra.mxu0 %v796
        %v2740 = vpop.f32.mrf.mxu0
        %v2741 = vadd.f32 %v2670, %v2740
        %v2742 = vpop.f32.mrf.mxu0
        %v2743 = vadd.f32 %v2672, %v2742
        %2744 = vmatmul.bf16.gmra.mxu0 %v800
        %v2745 = vpop.f32.mrf.mxu0
        %v2746 = vadd.f32 %v2675, %v2745
        %v2747 = vpop.f32.mrf.mxu0
        %v2748 = vadd.f32 %v2677, %v2747
        %2749 = vmatmul.bf16.gmra.mxu0 %v804
        %v2750 = vpop.f32.mrf.mxu0
        %v2751 = vadd.f32 %v2680, %v2750
        %v2752 = vpop.f32.mrf.mxu0
        %v2753 = vadd.f32 %v2682, %v2752
        %2754 = vmatmul.bf16.gmra.mxu0 %v808
        %v2755 = vpop.f32.mrf.mxu0
        %v2756 = vadd.f32 %v2685, %v2755
        %v2757 = vpop.f32.mrf.mxu0
        %v2758 = vadd.f32 %v2687, %v2757
        %2759 = vmatmul.bf16.gmra.mxu0 %v812
        %v2760 = vpop.f32.mrf.mxu0
        %v2761 = vadd.f32 %v2690, %v2760
        %v2762 = vpop.f32.mrf.mxu0
        %v2763 = vadd.f32 %v2692, %v2762
        %2764 = vmatmul.bf16.gmra.mxu0 %v816
        %v2765 = vpop.f32.mrf.mxu0
        %v2766 = vadd.f32 %v2695, %v2765
        %v2767 = vpop.f32.mrf.mxu0
        %v2768 = vadd.f32 %v2697, %v2767
        %2769 = vmatmul.bf16.gmra.mxu0 %v820
        %v2770 = vpop.f32.mrf.mxu0
        %v2771 = vadd.f32 %v2700, %v2770
        %v2772 = vpop.f32.mrf.mxu0
        %2773 = vmatmul.bf16.gmra.mxu0 %v824
        %v2774 = vpop.f32.mrf.mxu0
        %v2775 = vpop.f32.mrf.mxu0
        %2776 = vdwg.mxu0
        %2777 = vmatpush.bf16.msra.mxu0 %v1983
        %2778 = vmatpush.bf16.msra.mxu0 %v1974
        %2779 = vmatpush.bf16.msra.mxu0 %v1965
        %2780 = vmatpush.bf16.msra.mxu0 %v1956
        %2781 = vmatpush.bf16.msra.mxu0 %v1947
        %2782 = vmatpush.bf16.msra.mxu0 %v1938
        %2783 = vmatpush.bf16.msra.mxu0 %v1929
        %2784 = vmatpush.bf16.msra.mxu0 %v1920
        %2785 = vmatmul.bf16.gmra.mxu0 %v777
        %v2786 = vpop.f32.mrf.mxu0
        %v2787 = vadd.f32 %v2716, %v2786
        %v2788 = vpop.f32.mrf.mxu0
        %v2789 = vadd.f32 %v2718, %v2788
        %2790 = vmatmul.bf16.gmra.mxu0 %v781
        %v2791 = vpop.f32.mrf.mxu0
        %v2792 = vadd.f32 %v2721, %v2791
        %v2793 = vpop.f32.mrf.mxu0
        %v2794 = vadd.f32 %v2723, %v2793
        %2795 = vmatmul.bf16.gmra.mxu0 %v785
        %v2796 = vpop.f32.mrf.mxu0
        %v2797 = vadd.f32 %v2726, %v2796
        %v2798 = vpop.f32.mrf.mxu0
        %v2799 = vadd.f32 %v2728, %v2798
        %2800 = vmatmul.bf16.gmra.mxu0 %v789
        %v2801 = vpop.f32.mrf.mxu0
        %v2802 = vadd.f32 %v2731, %v2801
        %v2803 = vpop.f32.mrf.mxu0
        %v2804 = vadd.f32 %v2733, %v2803
        %2805 = vmatmul.bf16.gmra.mxu0 %v793
        %v2806 = vpop.f32.mrf.mxu0
        %v2807 = vadd.f32 %v2736, %v2806
        %v2808 = vpop.f32.mrf.mxu0
        %v2809 = vadd.f32 %v2738, %v2808
        %2810 = vmatmul.bf16.gmra.mxu0 %v797
        %v2811 = vpop.f32.mrf.mxu0
        %v2812 = vadd.f32 %v2741, %v2811
        %v2813 = vpop.f32.mrf.mxu0
        %v2814 = vadd.f32 %v2743, %v2813
        %2815 = vmatmul.bf16.gmra.mxu0 %v801
        %v2816 = vpop.f32.mrf.mxu0
        %v2817 = vadd.f32 %v2746, %v2816
        %v2818 = vpop.f32.mrf.mxu0
        %v2819 = vadd.f32 %v2748, %v2818
        %2820 = vmatmul.bf16.gmra.mxu0 %v805
        %v2821 = vpop.f32.mrf.mxu0
        %v2822 = vadd.f32 %v2751, %v2821
        %v2823 = vpop.f32.mrf.mxu0
        %v2824 = vadd.f32 %v2753, %v2823
        %2825 = vmatmul.bf16.gmra.mxu0 %v809
        %v2826 = vpop.f32.mrf.mxu0
        %v2827 = vadd.f32 %v2756, %v2826
        %v2828 = vpop.f32.mrf.mxu0
        %v2829 = vadd.f32 %v2758, %v2828
        %2830 = vmatmul.bf16.gmra.mxu0 %v813
        %v2831 = vpop.f32.mrf.mxu0
        %v2832 = vadd.f32 %v2761, %v2831
        %v2833 = vpop.f32.mrf.mxu0
        %v2834 = vadd.f32 %v2763, %v2833
        %2835 = vmatmul.bf16.gmra.mxu0 %v817
        %v2836 = vpop.f32.mrf.mxu0
        %v2837 = vadd.f32 %v2766, %v2836
        %v2838 = vpop.f32.mrf.mxu0
        %v2839 = vadd.f32 %v2768, %v2838
        %2840 = vmatmul.bf16.gmra.mxu0 %v821
        %v2841 = vpop.f32.mrf.mxu0
        %v2842 = vadd.f32 %v2771, %v2841
        %v2843 = vpop.f32.mrf.mxu0
        %2844 = vmatmul.bf16.gmra.mxu0 %v825
        %v2845 = vpop.f32.mrf.mxu0
        %v2846 = vpop.f32.mrf.mxu0
        %2847 = vdwg.mxu0
        %2848 = vmatpush.bf16.msra.mxu0 %v2055
        %2849 = vmatpush.bf16.msra.mxu0 %v2046
        %2850 = vmatpush.bf16.msra.mxu0 %v2037
        %2851 = vmatpush.bf16.msra.mxu0 %v2028
        %2852 = vmatpush.bf16.msra.mxu0 %v2019
        %2853 = vmatpush.bf16.msra.mxu0 %v2010
        %2854 = vmatpush.bf16.msra.mxu0 %v2001
        %2855 = vmatpush.bf16.msra.mxu0 %v1992
        %2856 = vmatmul.bf16.gmra.mxu0 %v778
        %v2857 = vpop.f32.mrf.mxu0
        %v2858 = vadd.f32 %v2787, %v2857
        %v2859 = vpop.f32.mrf.mxu0
        %v2860 = vadd.f32 %v2789, %v2859
        %2861 = vmatmul.bf16.gmra.mxu0 %v782
        %v2862 = vpop.f32.mrf.mxu0
        %v2863 = vadd.f32 %v2792, %v2862
        %v2864 = vpop.f32.mrf.mxu0
        %v2865 = vadd.f32 %v2794, %v2864
        %2866 = vmatmul.bf16.gmra.mxu0 %v786
        %v2867 = vpop.f32.mrf.mxu0
        %v2868 = vadd.f32 %v2797, %v2867
        %v2869 = vpop.f32.mrf.mxu0
        %v2870 = vadd.f32 %v2799, %v2869
        %2871 = vmatmul.bf16.gmra.mxu0 %v790
        %v2872 = vpop.f32.mrf.mxu0
        %v2873 = vadd.f32 %v2802, %v2872
        %v2874 = vpop.f32.mrf.mxu0
        %v2875 = vadd.f32 %v2804, %v2874
        %2876 = vmatmul.bf16.gmra.mxu0 %v794
        %v2877 = vpop.f32.mrf.mxu0
        %v2878 = vadd.f32 %v2807, %v2877
        %v2879 = vpop.f32.mrf.mxu0
        %v2880 = vadd.f32 %v2809, %v2879
        %2881 = vmatmul.bf16.gmra.mxu0 %v798
        %v2882 = vpop.f32.mrf.mxu0
        %v2883 = vadd.f32 %v2812, %v2882
        %v2884 = vpop.f32.mrf.mxu0
        %v2885 = vadd.f32 %v2814, %v2884
        %2886 = vmatmul.bf16.gmra.mxu0 %v802
        %v2887 = vpop.f32.mrf.mxu0
        %v2888 = vadd.f32 %v2817, %v2887
        %v2889 = vpop.f32.mrf.mxu0
        %v2890 = vadd.f32 %v2819, %v2889
        %2891 = vmatmul.bf16.gmra.mxu0 %v806
        %v2892 = vpop.f32.mrf.mxu0
        %v2893 = vadd.f32 %v2822, %v2892
        %v2894 = vpop.f32.mrf.mxu0
        %v2895 = vadd.f32 %v2824, %v2894
        %2896 = vmatmul.bf16.gmra.mxu0 %v810
        %v2897 = vpop.f32.mrf.mxu0
        %v2898 = vadd.f32 %v2827, %v2897
        %v2899 = vpop.f32.mrf.mxu0
        %v2900 = vadd.f32 %v2829, %v2899
        %2901 = vmatmul.bf16.gmra.mxu0 %v814
        %v2902 = vpop.f32.mrf.mxu0
        %v2903 = vadd.f32 %v2832, %v2902
        %v2904 = vpop.f32.mrf.mxu0
        %v2905 = vadd.f32 %v2834, %v2904
        %2906 = vmatmul.bf16.gmra.mxu0 %v818
        %v2907 = vpop.f32.mrf.mxu0
        %v2908 = vadd.f32 %v2837, %v2907
        %v2909 = vpop.f32.mrf.mxu0
        %v2910 = vadd.f32 %v2839, %v2909
        %2911 = vmatmul.bf16.gmra.mxu0 %v822
        %v2912 = vpop.f32.mrf.mxu0
        %v2913 = vadd.f32 %v2842, %v2912
        %v2914 = vpop.f32.mrf.mxu0
        %2915 = vmatmul.bf16.gmra.mxu0 %v826
        %v2916 = vpop.f32.mrf.mxu0
        %v2917 = vpop.f32.mrf.mxu0
        %2918 = vdwg.mxu0
        %2919 = vmatpush.bf16.msra.mxu0 %v1840
        %2920 = vmatpush.bf16.msra.mxu0 %v1831
        %2921 = vmatpush.bf16.msra.mxu0 %v1822
        %2922 = vmatpush.bf16.msra.mxu0 %v1813
        %2923 = vmatpush.bf16.msra.mxu0 %v1804
        %2924 = vmatpush.bf16.msra.mxu0 %v1795
        %2925 = vmatpush.bf16.msra.mxu0 %v1786
        %2926 = vmatpush.bf16.msra.mxu0 %v1777
        %2927 = vmatmul.bf16.gmra.mxu0 %v775
        %v2928 = vpop.f32.mrf.mxu0
        %v2929 = vadd.f32 0.0, %v2928
        %v2930 = vpop.f32.mrf.mxu0
        %v2931 = vadd.f32 0.0, %v2930
        %2932 = vmatmul.bf16.gmra.mxu0 %v779
        %v2933 = vpop.f32.mrf.mxu0
        %v2934 = vadd.f32 0.0, %v2933
        %v2935 = vpop.f32.mrf.mxu0
        %v2936 = vadd.f32 0.0, %v2935
        %2937 = vmatmul.bf16.gmra.mxu0 %v783
        %v2938 = vpop.f32.mrf.mxu0
        %v2939 = vadd.f32 0.0, %v2938
        %v2940 = vpop.f32.mrf.mxu0
        %v2941 = vadd.f32 0.0, %v2940
        %2942 = vmatmul.bf16.gmra.mxu0 %v787
        %v2943 = vpop.f32.mrf.mxu0
        %v2944 = vadd.f32 0.0, %v2943
        %v2945 = vpop.f32.mrf.mxu0
        %v2946 = vadd.f32 0.0, %v2945
        %2947 = vmatmul.bf16.gmra.mxu0 %v791
        %v2948 = vpop.f32.mrf.mxu0
        %v2949 = vadd.f32 0.0, %v2948
        %v2950 = vpop.f32.mrf.mxu0
        %v2951 = vadd.f32 0.0, %v2950
        %2952 = vmatmul.bf16.gmra.mxu0 %v795
        %v2953 = vpop.f32.mrf.mxu0
        %v2954 = vadd.f32 0.0, %v2953
        %v2955 = vpop.f32.mrf.mxu0
        %v2956 = vadd.f32 0.0, %v2955
        %2957 = vmatmul.bf16.gmra.mxu0 %v799
        %v2958 = vpop.f32.mrf.mxu0
        %v2959 = vadd.f32 0.0, %v2958
        %v2960 = vpop.f32.mrf.mxu0
        %v2961 = vadd.f32 0.0, %v2960
        %2962 = vmatmul.bf16.gmra.mxu0 %v803
        %v2963 = vpop.f32.mrf.mxu0
        %v2964 = vadd.f32 0.0, %v2963
        %v2965 = vpop.f32.mrf.mxu0
        %v2966 = vadd.f32 0.0, %v2965
        %2967 = vmatmul.bf16.gmra.mxu0 %v807
        %v2968 = vpop.f32.mrf.mxu0
        %v2969 = vadd.f32 0.0, %v2968
        %v2970 = vpop.f32.mrf.mxu0
        %v2971 = vadd.f32 0.0, %v2970
        %2972 = vmatmul.bf16.gmra.mxu0 %v811
        %v2973 = vpop.f32.mrf.mxu0
        %v2974 = vadd.f32 0.0, %v2973
        %v2975 = vpop.f32.mrf.mxu0
        %v2976 = vadd.f32 0.0, %v2975
        %2977 = vmatmul.bf16.gmra.mxu0 %v815
        %v2978 = vpop.f32.mrf.mxu0
        %v2979 = vadd.f32 0.0, %v2978
        %v2980 = vpop.f32.mrf.mxu0
        %v2981 = vadd.f32 0.0, %v2980
        %2982 = vmatmul.bf16.gmra.mxu0 %v819
        %v2983 = vpop.f32.mrf.mxu0
        %v2984 = vadd.f32 0.0, %v2983
        %v2985 = vpop.f32.mrf.mxu0
        %2986 = vmatmul.bf16.gmra.mxu0 %v823
        %v2987 = vpop.f32.mrf.mxu0
        %v2988 = vpop.f32.mrf.mxu0
        %2989 = vdwg.mxu0
        %2990 = vmatpush.bf16.msra.mxu0 %v1912
        %2991 = vmatpush.bf16.msra.mxu0 %v1903
        %2992 = vmatpush.bf16.msra.mxu0 %v1894
        %2993 = vmatpush.bf16.msra.mxu0 %v1885
        %2994 = vmatpush.bf16.msra.mxu0 %v1876
        %2995 = vmatpush.bf16.msra.mxu0 %v1867
        %2996 = vmatpush.bf16.msra.mxu0 %v1858
        %2997 = vmatpush.bf16.msra.mxu0 %v1849
        %2998 = vmatmul.bf16.gmra.mxu0 %v776
        %v2999 = vpop.f32.mrf.mxu0
        %v3000 = vadd.f32 %v2929, %v2999
        %v3001 = vpop.f32.mrf.mxu0
        %v3002 = vadd.f32 %v2931, %v3001
        %3003 = vmatmul.bf16.gmra.mxu0 %v780
        %v3004 = vpop.f32.mrf.mxu0
        %v3005 = vadd.f32 %v2934, %v3004
        %v3006 = vpop.f32.mrf.mxu0
        %v3007 = vadd.f32 %v2936, %v3006
        %3008 = vmatmul.bf16.gmra.mxu0 %v784
        %v3009 = vpop.f32.mrf.mxu0
        %v3010 = vadd.f32 %v2939, %v3009
        %v3011 = vpop.f32.mrf.mxu0
        %v3012 = vadd.f32 %v2941, %v3011
        %3013 = vmatmul.bf16.gmra.mxu0 %v788
        %v3014 = vpop.f32.mrf.mxu0
        %v3015 = vadd.f32 %v2944, %v3014
        %v3016 = vpop.f32.mrf.mxu0
        %v3017 = vadd.f32 %v2946, %v3016
        %3018 = vmatmul.bf16.gmra.mxu0 %v792
        %v3019 = vpop.f32.mrf.mxu0
        %v3020 = vadd.f32 %v2949, %v3019
        %v3021 = vpop.f32.mrf.mxu0
        %v3022 = vadd.f32 %v2951, %v3021
        %3023 = vmatmul.bf16.gmra.mxu0 %v796
        %v3024 = vpop.f32.mrf.mxu0
        %v3025 = vadd.f32 %v2954, %v3024
        %v3026 = vpop.f32.mrf.mxu0
        %v3027 = vadd.f32 %v2956, %v3026
        %3028 = vmatmul.bf16.gmra.mxu0 %v800
        %v3029 = vpop.f32.mrf.mxu0
        %v3030 = vadd.f32 %v2959, %v3029
        %v3031 = vpop.f32.mrf.mxu0
        %v3032 = vadd.f32 %v2961, %v3031
        %3033 = vmatmul.bf16.gmra.mxu0 %v804
        %v3034 = vpop.f32.mrf.mxu0
        %v3035 = vadd.f32 %v2964, %v3034
        %v3036 = vpop.f32.mrf.mxu0
        %v3037 = vadd.f32 %v2966, %v3036
        %3038 = vmatmul.bf16.gmra.mxu0 %v808
        %v3039 = vpop.f32.mrf.mxu0
        %v3040 = vadd.f32 %v2969, %v3039
        %v3041 = vpop.f32.mrf.mxu0
        %v3042 = vadd.f32 %v2971, %v3041
        %3043 = vmatmul.bf16.gmra.mxu0 %v812
        %v3044 = vpop.f32.mrf.mxu0
        %v3045 = vadd.f32 %v2974, %v3044
        %v3046 = vpop.f32.mrf.mxu0
        %v3047 = vadd.f32 %v2976, %v3046
        %3048 = vmatmul.bf16.gmra.mxu0 %v816
        %v3049 = vpop.f32.mrf.mxu0
        %v3050 = vadd.f32 %v2979, %v3049
        %v3051 = vpop.f32.mrf.mxu0
        %v3052 = vadd.f32 %v2981, %v3051
        %3053 = vmatmul.bf16.gmra.mxu0 %v820
        %v3054 = vpop.f32.mrf.mxu0
        %v3055 = vadd.f32 %v2984, %v3054
        %v3056 = vpop.f32.mrf.mxu0
        %3057 = vmatmul.bf16.gmra.mxu0 %v824
        %v3058 = vpop.f32.mrf.mxu0
        %v3059 = vpop.f32.mrf.mxu0
        %3060 = vdwg.mxu0
        %3061 = vmatpush.bf16.msra.mxu0 %v1984
        %3062 = vmatpush.bf16.msra.mxu0 %v1975
        %3063 = vmatpush.bf16.msra.mxu0 %v1966
        %3064 = vmatpush.bf16.msra.mxu0 %v1957
        %3065 = vmatpush.bf16.msra.mxu0 %v1948
        %3066 = vmatpush.bf16.msra.mxu0 %v1939
        %3067 = vmatpush.bf16.msra.mxu0 %v1930
        %3068 = vmatpush.bf16.msra.mxu0 %v1921
        %3069 = vmatmul.bf16.gmra.mxu0 %v777
        %v3070 = vpop.f32.mrf.mxu0
        %v3071 = vadd.f32 %v3000, %v3070
        %v3072 = vpop.f32.mrf.mxu0
        %v3073 = vadd.f32 %v3002, %v3072
        %3074 = vmatmul.bf16.gmra.mxu0 %v781
        %v3075 = vpop.f32.mrf.mxu0
        %v3076 = vadd.f32 %v3005, %v3075
        %v3077 = vpop.f32.mrf.mxu0
        %v3078 = vadd.f32 %v3007, %v3077
        %3079 = vmatmul.bf16.gmra.mxu0 %v785
        %v3080 = vpop.f32.mrf.mxu0
        %v3081 = vadd.f32 %v3010, %v3080
        %v3082 = vpop.f32.mrf.mxu0
        %v3083 = vadd.f32 %v3012, %v3082
        %3084 = vmatmul.bf16.gmra.mxu0 %v789
        %v3085 = vpop.f32.mrf.mxu0
        %v3086 = vadd.f32 %v3015, %v3085
        %v3087 = vpop.f32.mrf.mxu0
        %v3088 = vadd.f32 %v3017, %v3087
        %3089 = vmatmul.bf16.gmra.mxu0 %v793
        %v3090 = vpop.f32.mrf.mxu0
        %v3091 = vadd.f32 %v3020, %v3090
        %v3092 = vpop.f32.mrf.mxu0
        %v3093 = vadd.f32 %v3022, %v3092
        %3094 = vmatmul.bf16.gmra.mxu0 %v797
        %v3095 = vpop.f32.mrf.mxu0
        %v3096 = vadd.f32 %v3025, %v3095
        %v3097 = vpop.f32.mrf.mxu0
        %v3098 = vadd.f32 %v3027, %v3097
        %3099 = vmatmul.bf16.gmra.mxu0 %v801
        %v3100 = vpop.f32.mrf.mxu0
        %v3101 = vadd.f32 %v3030, %v3100
        %v3102 = vpop.f32.mrf.mxu0
        %v3103 = vadd.f32 %v3032, %v3102
        %3104 = vmatmul.bf16.gmra.mxu0 %v805
        %v3105 = vpop.f32.mrf.mxu0
        %v3106 = vadd.f32 %v3035, %v3105
        %v3107 = vpop.f32.mrf.mxu0
        %v3108 = vadd.f32 %v3037, %v3107
        %3109 = vmatmul.bf16.gmra.mxu0 %v809
        %v3110 = vpop.f32.mrf.mxu0
        %v3111 = vadd.f32 %v3040, %v3110
        %v3112 = vpop.f32.mrf.mxu0
        %v3113 = vadd.f32 %v3042, %v3112
        %3114 = vmatmul.bf16.gmra.mxu0 %v813
        %v3115 = vpop.f32.mrf.mxu0
        %v3116 = vadd.f32 %v3045, %v3115
        %v3117 = vpop.f32.mrf.mxu0
        %v3118 = vadd.f32 %v3047, %v3117
        %3119 = vmatmul.bf16.gmra.mxu0 %v817
        %v3120 = vpop.f32.mrf.mxu0
        %v3121 = vadd.f32 %v3050, %v3120
        %v3122 = vpop.f32.mrf.mxu0
        %v3123 = vadd.f32 %v3052, %v3122
        %3124 = vmatmul.bf16.gmra.mxu0 %v821
        %v3125 = vpop.f32.mrf.mxu0
        %v3126 = vadd.f32 %v3055, %v3125
        %v3127 = vpop.f32.mrf.mxu0
        %3128 = vmatmul.bf16.gmra.mxu0 %v825
        %v3129 = vpop.f32.mrf.mxu0
        %v3130 = vpop.f32.mrf.mxu0
        %3131 = vdwg.mxu0
        %3132 = vmatpush.bf16.msra.mxu0 %v2056
        %3133 = vmatpush.bf16.msra.mxu0 %v2047
        %3134 = vmatpush.bf16.msra.mxu0 %v2038
        %3135 = vmatpush.bf16.msra.mxu0 %v2029
        %3136 = vmatpush.bf16.msra.mxu0 %v2020
        %3137 = vmatpush.bf16.msra.mxu0 %v2011
        %3138 = vmatpush.bf16.msra.mxu0 %v2002
        %3139 = vmatpush.bf16.msra.mxu0 %v1993
        %3140 = vmatmul.bf16.gmra.mxu0 %v778
        %v3141 = vpop.f32.mrf.mxu0
        %v3142 = vadd.f32 %v3071, %v3141
        %v3143 = vpop.f32.mrf.mxu0
        %v3144 = vadd.f32 %v3073, %v3143
        %3145 = vmatmul.bf16.gmra.mxu0 %v782
        %v3146 = vpop.f32.mrf.mxu0
        %v3147 = vadd.f32 %v3076, %v3146
        %v3148 = vpop.f32.mrf.mxu0
        %v3149 = vadd.f32 %v3078, %v3148
        %3150 = vmatmul.bf16.gmra.mxu0 %v786
        %v3151 = vpop.f32.mrf.mxu0
        %v3152 = vadd.f32 %v3081, %v3151
        %v3153 = vpop.f32.mrf.mxu0
        %v3154 = vadd.f32 %v3083, %v3153
        %3155 = vmatmul.bf16.gmra.mxu0 %v790
        %v3156 = vpop.f32.mrf.mxu0
        %v3157 = vadd.f32 %v3086, %v3156
        %v3158 = vpop.f32.mrf.mxu0
        %v3159 = vadd.f32 %v3088, %v3158
        %3160 = vmatmul.bf16.gmra.mxu0 %v794
        %v3161 = vpop.f32.mrf.mxu0
        %v3162 = vadd.f32 %v3091, %v3161
        %v3163 = vpop.f32.mrf.mxu0
        %v3164 = vadd.f32 %v3093, %v3163
        %3165 = vmatmul.bf16.gmra.mxu0 %v798
        %v3166 = vpop.f32.mrf.mxu0
        %v3167 = vadd.f32 %v3096, %v3166
        %v3168 = vpop.f32.mrf.mxu0
        %v3169 = vadd.f32 %v3098, %v3168
        %3170 = vmatmul.bf16.gmra.mxu0 %v802
        %v3171 = vpop.f32.mrf.mxu0
        %v3172 = vadd.f32 %v3101, %v3171
        %v3173 = vpop.f32.mrf.mxu0
        %v3174 = vadd.f32 %v3103, %v3173
        %3175 = vmatmul.bf16.gmra.mxu0 %v806
        %v3176 = vpop.f32.mrf.mxu0
        %v3177 = vadd.f32 %v3106, %v3176
        %v3178 = vpop.f32.mrf.mxu0
        %v3179 = vadd.f32 %v3108, %v3178
        %3180 = vmatmul.bf16.gmra.mxu0 %v810
        %v3181 = vpop.f32.mrf.mxu0
        %v3182 = vadd.f32 %v3111, %v3181
        %v3183 = vpop.f32.mrf.mxu0
        %v3184 = vadd.f32 %v3113, %v3183
        %3185 = vmatmul.bf16.gmra.mxu0 %v814
        %v3186 = vpop.f32.mrf.mxu0
        %v3187 = vadd.f32 %v3116, %v3186
        %v3188 = vpop.f32.mrf.mxu0
        %v3189 = vadd.f32 %v3118, %v3188
        %3190 = vmatmul.bf16.gmra.mxu0 %v818
        %v3191 = vpop.f32.mrf.mxu0
        %v3192 = vadd.f32 %v3121, %v3191
        %v3193 = vpop.f32.mrf.mxu0
        %v3194 = vadd.f32 %v3123, %v3193
        %3195 = vmatmul.bf16.gmra.mxu0 %v822
        %v3196 = vpop.f32.mrf.mxu0
        %v3197 = vadd.f32 %v3126, %v3196
        %v3198 = vpop.f32.mrf.mxu0
        %3199 = vmatmul.bf16.gmra.mxu0 %v826
        %v3200 = vpop.f32.mrf.mxu0
        %v3201 = vpop.f32.mrf.mxu0
        %3202 = vdwg.mxu0
        %3203 = vmatpush.bf16.msra.mxu0 %v1841
        %3204 = vmatpush.bf16.msra.mxu0 %v1832
        %3205 = vmatpush.bf16.msra.mxu0 %v1823
        %3206 = vmatpush.bf16.msra.mxu0 %v1814
        %3207 = vmatpush.bf16.msra.mxu0 %v1805
        %3208 = vmatpush.bf16.msra.mxu0 %v1796
        %3209 = vmatpush.bf16.msra.mxu0 %v1787
        %3210 = vmatpush.bf16.msra.mxu0 %v1778
        %3211 = vmatmul.bf16.gmra.mxu0 %v775
        %v3212 = vpop.f32.mrf.mxu0
        %v3213 = vpop.f32.mrf.mxu0
        %v3214 = vadd.f32 0.0, %v3213
        %3215 = vmatmul.bf16.gmra.mxu0 %v779
        %v3216 = vpop.f32.mrf.mxu0
        %v3217 = vadd.f32 0.0, %v3216
        %v3218 = vpop.f32.mrf.mxu0
        %v3219 = vadd.f32 0.0, %v3218
        %3220 = vmatmul.bf16.gmra.mxu0 %v783
        %v3221 = vpop.f32.mrf.mxu0
        %v3222 = vadd.f32 0.0, %v3221
        %v3223 = vpop.f32.mrf.mxu0
        %v3224 = vadd.f32 0.0, %v3223
        %3225 = vmatmul.bf16.gmra.mxu0 %v787
        %v3226 = vpop.f32.mrf.mxu0
        %v3227 = vadd.f32 0.0, %v3226
        %v3228 = vpop.f32.mrf.mxu0
        %v3229 = vadd.f32 0.0, %v3228
        %3230 = vmatmul.bf16.gmra.mxu0 %v791
        %v3231 = vpop.f32.mrf.mxu0
        %v3232 = vadd.f32 0.0, %v3231
        %v3233 = vpop.f32.mrf.mxu0
        %v3234 = vadd.f32 0.0, %v3233
        %3235 = vmatmul.bf16.gmra.mxu0 %v795
        %v3236 = vpop.f32.mrf.mxu0
        %v3237 = vadd.f32 0.0, %v3236
        %v3238 = vpop.f32.mrf.mxu0
        %v3239 = vadd.f32 0.0, %v3238
        %3240 = vmatmul.bf16.gmra.mxu0 %v799
        %v3241 = vpop.f32.mrf.mxu0
        %v3242 = vadd.f32 0.0, %v3241
        %v3243 = vpop.f32.mrf.mxu0
        %v3244 = vadd.f32 0.0, %v3243
        %3245 = vmatmul.bf16.gmra.mxu0 %v803
        %v3246 = vpop.f32.mrf.mxu0
        %v3247 = vadd.f32 0.0, %v3246
        %v3248 = vpop.f32.mrf.mxu0
        %v3249 = vadd.f32 0.0, %v3248
        %3250 = vmatmul.bf16.gmra.mxu0 %v807
        %v3251 = vpop.f32.mrf.mxu0
        %v3252 = vadd.f32 0.0, %v3251
        %v3253 = vpop.f32.mrf.mxu0
        %v3254 = vadd.f32 0.0, %v3253
        %3255 = vmatmul.bf16.gmra.mxu0 %v811
        %v3256 = vpop.f32.mrf.mxu0
        %v3257 = vadd.f32 0.0, %v3256
        %v3258 = vpop.f32.mrf.mxu0
        %v3259 = vadd.f32 0.0, %v3258
        %3260 = vmatmul.bf16.gmra.mxu0 %v815
        %v3261 = vpop.f32.mrf.mxu0
        %v3262 = vadd.f32 0.0, %v3261
        %v3263 = vpop.f32.mrf.mxu0
        %v3264 = vadd.f32 0.0, %v3263
        %3265 = vmatmul.bf16.gmra.mxu0 %v819
        %v3266 = vpop.f32.mrf.mxu0
        %v3267 = vadd.f32 0.0, %v3266
        %v3268 = vpop.f32.mrf.mxu0
        %v3269 = vadd.f32 0.0, %v3268
        %3270 = vmatmul.bf16.gmra.mxu0 %v823
        %v3271 = vpop.f32.mrf.mxu0
        %v3272 = vpop.f32.mrf.mxu0
        %3273 = vdwg.mxu0
        %3274 = vmatpush.bf16.msra.mxu0 %v1913
        %3275 = vmatpush.bf16.msra.mxu0 %v1904
        %3276 = vmatpush.bf16.msra.mxu0 %v1895
        %3277 = vmatpush.bf16.msra.mxu0 %v1886
        %3278 = vmatpush.bf16.msra.mxu0 %v1877
        %3279 = vmatpush.bf16.msra.mxu0 %v1868
        %3280 = vmatpush.bf16.msra.mxu0 %v1859
        %3281 = vmatpush.bf16.msra.mxu0 %v1850
        %3282 = vmatmul.bf16.gmra.mxu0 %v776
        %v3283 = vpop.f32.mrf.mxu0
        %v3284 = vpop.f32.mrf.mxu0
        %v3285 = vadd.f32 %v3214, %v3284
        %3286 = vmatmul.bf16.gmra.mxu0 %v780
        %v3287 = vpop.f32.mrf.mxu0
        %v3288 = vadd.f32 %v3217, %v3287
        %v3289 = vpop.f32.mrf.mxu0
        %v3290 = vadd.f32 %v3219, %v3289
        %3291 = vmatmul.bf16.gmra.mxu0 %v784
        %v3292 = vpop.f32.mrf.mxu0
        %v3293 = vadd.f32 %v3222, %v3292
        %v3294 = vpop.f32.mrf.mxu0
        %v3295 = vadd.f32 %v3224, %v3294
        %3296 = vmatmul.bf16.gmra.mxu0 %v788
        %v3297 = vpop.f32.mrf.mxu0
        %v3298 = vadd.f32 %v3227, %v3297
        %v3299 = vpop.f32.mrf.mxu0
        %v3300 = vadd.f32 %v3229, %v3299
        %3301 = vmatmul.bf16.gmra.mxu0 %v792
        %v3302 = vpop.f32.mrf.mxu0
        %v3303 = vadd.f32 %v3232, %v3302
        %v3304 = vpop.f32.mrf.mxu0
        %v3305 = vadd.f32 %v3234, %v3304
        %3306 = vmatmul.bf16.gmra.mxu0 %v796
        %v3307 = vpop.f32.mrf.mxu0
        %v3308 = vadd.f32 %v3237, %v3307
        %v3309 = vpop.f32.mrf.mxu0
        %v3310 = vadd.f32 %v3239, %v3309
        %3311 = vmatmul.bf16.gmra.mxu0 %v800
        %v3312 = vpop.f32.mrf.mxu0
        %v3313 = vadd.f32 %v3242, %v3312
        %v3314 = vpop.f32.mrf.mxu0
        %v3315 = vadd.f32 %v3244, %v3314
        %3316 = vmatmul.bf16.gmra.mxu0 %v804
        %v3317 = vpop.f32.mrf.mxu0
        %v3318 = vadd.f32 %v3247, %v3317
        %v3319 = vpop.f32.mrf.mxu0
        %v3320 = vadd.f32 %v3249, %v3319
        %3321 = vmatmul.bf16.gmra.mxu0 %v808
        %v3322 = vpop.f32.mrf.mxu0
        %v3323 = vadd.f32 %v3252, %v3322
        %v3324 = vpop.f32.mrf.mxu0
        %v3325 = vadd.f32 %v3254, %v3324
        %3326 = vmatmul.bf16.gmra.mxu0 %v812
        %v3327 = vpop.f32.mrf.mxu0
        %v3328 = vadd.f32 %v3257, %v3327
        %v3329 = vpop.f32.mrf.mxu0
        %v3330 = vadd.f32 %v3259, %v3329
        %3331 = vmatmul.bf16.gmra.mxu0 %v816
        %v3332 = vpop.f32.mrf.mxu0
        %v3333 = vadd.f32 %v3262, %v3332
        %v3334 = vpop.f32.mrf.mxu0
        %v3335 = vadd.f32 %v3264, %v3334
        %3336 = vmatmul.bf16.gmra.mxu0 %v820
        %v3337 = vpop.f32.mrf.mxu0
        %v3338 = vadd.f32 %v3267, %v3337
        %v3339 = vpop.f32.mrf.mxu0
        %v3340 = vadd.f32 %v3269, %v3339
        %3341 = vmatmul.bf16.gmra.mxu0 %v824
        %v3342 = vpop.f32.mrf.mxu0
        %v3343 = vpop.f32.mrf.mxu0
        %3344 = vdwg.mxu0
        %3345 = vmatpush.bf16.msra.mxu0 %v1985
        %3346 = vmatpush.bf16.msra.mxu0 %v1976
        %3347 = vmatpush.bf16.msra.mxu0 %v1967
        %3348 = vmatpush.bf16.msra.mxu0 %v1958
        %3349 = vmatpush.bf16.msra.mxu0 %v1949
        %3350 = vmatpush.bf16.msra.mxu0 %v1940
        %3351 = vmatpush.bf16.msra.mxu0 %v1931
        %3352 = vmatpush.bf16.msra.mxu0 %v1922
        %3353 = vmatmul.bf16.gmra.mxu0 %v777
        %v3354 = vpop.f32.mrf.mxu0
        %v3355 = vpop.f32.mrf.mxu0
        %v3356 = vadd.f32 %v3285, %v3355
        %3357 = vmatmul.bf16.gmra.mxu0 %v781
        %v3358 = vpop.f32.mrf.mxu0
        %v3359 = vadd.f32 %v3288, %v3358
        %v3360 = vpop.f32.mrf.mxu0
        %v3361 = vadd.f32 %v3290, %v3360
        %3362 = vmatmul.bf16.gmra.mxu0 %v785
        %v3363 = vpop.f32.mrf.mxu0
        %v3364 = vadd.f32 %v3293, %v3363
        %v3365 = vpop.f32.mrf.mxu0
        %v3366 = vadd.f32 %v3295, %v3365
        %3367 = vmatmul.bf16.gmra.mxu0 %v789
        %v3368 = vpop.f32.mrf.mxu0
        %v3369 = vadd.f32 %v3298, %v3368
        %v3370 = vpop.f32.mrf.mxu0
        %v3371 = vadd.f32 %v3300, %v3370
        %3372 = vmatmul.bf16.gmra.mxu0 %v793
        %v3373 = vpop.f32.mrf.mxu0
        %v3374 = vadd.f32 %v3303, %v3373
        %v3375 = vpop.f32.mrf.mxu0
        %v3376 = vadd.f32 %v3305, %v3375
        %3377 = vmatmul.bf16.gmra.mxu0 %v797
        %v3378 = vpop.f32.mrf.mxu0
        %v3379 = vadd.f32 %v3308, %v3378
        %v3380 = vpop.f32.mrf.mxu0
        %v3381 = vadd.f32 %v3310, %v3380
        %3382 = vmatmul.bf16.gmra.mxu0 %v801
        %v3383 = vpop.f32.mrf.mxu0
        %v3384 = vadd.f32 %v3313, %v3383
        %v3385 = vpop.f32.mrf.mxu0
        %v3386 = vadd.f32 %v3315, %v3385
        %3387 = vmatmul.bf16.gmra.mxu0 %v805
        %v3388 = vpop.f32.mrf.mxu0
        %v3389 = vadd.f32 %v3318, %v3388
        %v3390 = vpop.f32.mrf.mxu0
        %v3391 = vadd.f32 %v3320, %v3390
        %3392 = vmatmul.bf16.gmra.mxu0 %v809
        %v3393 = vpop.f32.mrf.mxu0
        %v3394 = vadd.f32 %v3323, %v3393
        %v3395 = vpop.f32.mrf.mxu0
        %v3396 = vadd.f32 %v3325, %v3395
        %3397 = vmatmul.bf16.gmra.mxu0 %v813
        %v3398 = vpop.f32.mrf.mxu0
        %v3399 = vadd.f32 %v3328, %v3398
        %v3400 = vpop.f32.mrf.mxu0
        %v3401 = vadd.f32 %v3330, %v3400
        %3402 = vmatmul.bf16.gmra.mxu0 %v817
        %v3403 = vpop.f32.mrf.mxu0
        %v3404 = vadd.f32 %v3333, %v3403
        %v3405 = vpop.f32.mrf.mxu0
        %v3406 = vadd.f32 %v3335, %v3405
        %3407 = vmatmul.bf16.gmra.mxu0 %v821
        %v3408 = vpop.f32.mrf.mxu0
        %v3409 = vadd.f32 %v3338, %v3408
        %v3410 = vpop.f32.mrf.mxu0
        %v3411 = vadd.f32 %v3340, %v3410
        %3412 = vmatmul.bf16.gmra.mxu0 %v825
        %v3413 = vpop.f32.mrf.mxu0
        %v3414 = vpop.f32.mrf.mxu0
        %3415 = vdwg.mxu0
        %3416 = vmatpush.bf16.msra.mxu0 %v2057
        %3417 = vmatpush.bf16.msra.mxu0 %v2048
        %3418 = vmatpush.bf16.msra.mxu0 %v2039
        %3419 = vmatpush.bf16.msra.mxu0 %v2030
        %3420 = vmatpush.bf16.msra.mxu0 %v2021
        %3421 = vmatpush.bf16.msra.mxu0 %v2012
        %3422 = vmatpush.bf16.msra.mxu0 %v2003
        %3423 = vmatpush.bf16.msra.mxu0 %v1994
        %3424 = vmatmul.bf16.gmra.mxu0 %v778
        %v3425 = vpop.f32.mrf.mxu0
        %v3426 = vpop.f32.mrf.mxu0
        %v3427 = vadd.f32 %v3356, %v3426
        %3428 = vmatmul.bf16.gmra.mxu0 %v782
        %v3429 = vpop.f32.mrf.mxu0
        %v3430 = vadd.f32 %v3359, %v3429
        %v3431 = vpop.f32.mrf.mxu0
        %v3432 = vadd.f32 %v3361, %v3431
        %3433 = vmatmul.bf16.gmra.mxu0 %v786
        %v3434 = vpop.f32.mrf.mxu0
        %v3435 = vadd.f32 %v3364, %v3434
        %v3436 = vpop.f32.mrf.mxu0
        %v3437 = vadd.f32 %v3366, %v3436
        %3438 = vmatmul.bf16.gmra.mxu0 %v790
        %v3439 = vpop.f32.mrf.mxu0
        %v3440 = vadd.f32 %v3369, %v3439
        %v3441 = vpop.f32.mrf.mxu0
        %v3442 = vadd.f32 %v3371, %v3441
        %3443 = vmatmul.bf16.gmra.mxu0 %v794
        %v3444 = vpop.f32.mrf.mxu0
        %v3445 = vadd.f32 %v3374, %v3444
        %v3446 = vpop.f32.mrf.mxu0
        %v3447 = vadd.f32 %v3376, %v3446
        %3448 = vmatmul.bf16.gmra.mxu0 %v798
        %v3449 = vpop.f32.mrf.mxu0
        %v3450 = vadd.f32 %v3379, %v3449
        %v3451 = vpop.f32.mrf.mxu0
        %v3452 = vadd.f32 %v3381, %v3451
        %3453 = vmatmul.bf16.gmra.mxu0 %v802
        %v3454 = vpop.f32.mrf.mxu0
        %v3455 = vadd.f32 %v3384, %v3454
        %v3456 = vpop.f32.mrf.mxu0
        %v3457 = vadd.f32 %v3386, %v3456
        %3458 = vmatmul.bf16.gmra.mxu0 %v806
        %v3459 = vpop.f32.mrf.mxu0
        %v3460 = vadd.f32 %v3389, %v3459
        %v3461 = vpop.f32.mrf.mxu0
        %v3462 = vadd.f32 %v3391, %v3461
        %3463 = vmatmul.bf16.gmra.mxu0 %v810
        %v3464 = vpop.f32.mrf.mxu0
        %v3465 = vadd.f32 %v3394, %v3464
        %v3466 = vpop.f32.mrf.mxu0
        %v3467 = vadd.f32 %v3396, %v3466
        %3468 = vmatmul.bf16.gmra.mxu0 %v814
        %v3469 = vpop.f32.mrf.mxu0
        %v3470 = vadd.f32 %v3399, %v3469
        %v3471 = vpop.f32.mrf.mxu0
        %v3472 = vadd.f32 %v3401, %v3471
        %3473 = vmatmul.bf16.gmra.mxu0 %v818
        %v3474 = vpop.f32.mrf.mxu0
        %v3475 = vadd.f32 %v3404, %v3474
        %v3476 = vpop.f32.mrf.mxu0
        %v3477 = vadd.f32 %v3406, %v3476
        %3478 = vmatmul.bf16.gmra.mxu0 %v822
        %v3479 = vpop.f32.mrf.mxu0
        %v3480 = vadd.f32 %v3409, %v3479
        %v3481 = vpop.f32.mrf.mxu0
        %v3482 = vadd.f32 %v3411, %v3481
        %3483 = vmatmul.bf16.gmra.mxu0 %v826
        %v3484 = vpop.f32.mrf.mxu0
        %v3485 = vpop.f32.mrf.mxu0
        %3486 = vdwg.mxu0
        %3487 = vmatpush.bf16.msra.mxu0 %v1842
        %3488 = vmatpush.bf16.msra.mxu0 %v1833
        %3489 = vmatpush.bf16.msra.mxu0 %v1824
        %3490 = vmatpush.bf16.msra.mxu0 %v1815
        %3491 = vmatpush.bf16.msra.mxu0 %v1806
        %3492 = vmatpush.bf16.msra.mxu0 %v1797
        %3493 = vmatpush.bf16.msra.mxu0 %v1788
        %3494 = vmatpush.bf16.msra.mxu0 %v1779
        %3495 = vmatmul.bf16.gmra.mxu0 %v775
        %v3496 = vpop.f32.mrf.mxu0
        %v3497 = vpop.f32.mrf.mxu0
        %v3498 = vadd.f32 0.0, %v3497
        %3499 = vmatmul.bf16.gmra.mxu0 %v779
        %v3500 = vpop.f32.mrf.mxu0
        %v3501 = vadd.f32 0.0, %v3500
        %v3502 = vpop.f32.mrf.mxu0
        %v3503 = vadd.f32 0.0, %v3502
        %3504 = vmatmul.bf16.gmra.mxu0 %v783
        %v3505 = vpop.f32.mrf.mxu0
        %v3506 = vadd.f32 0.0, %v3505
        %v3507 = vpop.f32.mrf.mxu0
        %v3508 = vadd.f32 0.0, %v3507
        %3509 = vmatmul.bf16.gmra.mxu0 %v787
        %v3510 = vpop.f32.mrf.mxu0
        %v3511 = vadd.f32 0.0, %v3510
        %v3512 = vpop.f32.mrf.mxu0
        %v3513 = vadd.f32 0.0, %v3512
        %3514 = vmatmul.bf16.gmra.mxu0 %v791
        %v3515 = vpop.f32.mrf.mxu0
        %v3516 = vadd.f32 0.0, %v3515
        %v3517 = vpop.f32.mrf.mxu0
        %v3518 = vadd.f32 0.0, %v3517
        %3519 = vmatmul.bf16.gmra.mxu0 %v795
        %v3520 = vpop.f32.mrf.mxu0
        %v3521 = vadd.f32 0.0, %v3520
        %v3522 = vpop.f32.mrf.mxu0
        %v3523 = vadd.f32 0.0, %v3522
        %3524 = vmatmul.bf16.gmra.mxu0 %v799
        %v3525 = vpop.f32.mrf.mxu0
        %v3526 = vadd.f32 0.0, %v3525
        %v3527 = vpop.f32.mrf.mxu0
        %v3528 = vadd.f32 0.0, %v3527
        %3529 = vmatmul.bf16.gmra.mxu0 %v803
        %v3530 = vpop.f32.mrf.mxu0
        %v3531 = vadd.f32 0.0, %v3530
        %v3532 = vpop.f32.mrf.mxu0
        %v3533 = vadd.f32 0.0, %v3532
        %3534 = vmatmul.bf16.gmra.mxu0 %v807
        %v3535 = vpop.f32.mrf.mxu0
        %v3536 = vadd.f32 0.0, %v3535
        %v3537 = vpop.f32.mrf.mxu0
        %v3538 = vadd.f32 0.0, %v3537
        %3539 = vmatmul.bf16.gmra.mxu0 %v811
        %v3540 = vpop.f32.mrf.mxu0
        %v3541 = vadd.f32 0.0, %v3540
        %v3542 = vpop.f32.mrf.mxu0
        %v3543 = vadd.f32 0.0, %v3542
        %3544 = vmatmul.bf16.gmra.mxu0 %v815
        %v3545 = vpop.f32.mrf.mxu0
        %v3546 = vadd.f32 0.0, %v3545
        %v3547 = vpop.f32.mrf.mxu0
        %v3548 = vadd.f32 0.0, %v3547
        %3549 = vmatmul.bf16.gmra.mxu0 %v819
        %v3550 = vpop.f32.mrf.mxu0
        %v3551 = vadd.f32 0.0, %v3550
        %v3552 = vpop.f32.mrf.mxu0
        %v3553 = vadd.f32 0.0, %v3552
        %3554 = vmatmul.bf16.gmra.mxu0 %v823
        %v3555 = vpop.f32.mrf.mxu0
        %v3556 = vpop.f32.mrf.mxu0
        %3557 = vdwg.mxu0
        %3558 = vmatpush.bf16.msra.mxu0 %v1914
        %3559 = vmatpush.bf16.msra.mxu0 %v1905
        %3560 = vmatpush.bf16.msra.mxu0 %v1896
        %3561 = vmatpush.bf16.msra.mxu0 %v1887
        %3562 = vmatpush.bf16.msra.mxu0 %v1878
        %3563 = vmatpush.bf16.msra.mxu0 %v1869
        %3564 = vmatpush.bf16.msra.mxu0 %v1860
        %3565 = vmatpush.bf16.msra.mxu0 %v1851
        %3566 = vmatmul.bf16.gmra.mxu0 %v776
        %v3567 = vpop.f32.mrf.mxu0
        %v3568 = vpop.f32.mrf.mxu0
        %v3569 = vadd.f32 %v3498, %v3568
        %3570 = vmatmul.bf16.gmra.mxu0 %v780
        %v3571 = vpop.f32.mrf.mxu0
        %v3572 = vadd.f32 %v3501, %v3571
        %v3573 = vpop.f32.mrf.mxu0
        %v3574 = vadd.f32 %v3503, %v3573
        %3575 = vmatmul.bf16.gmra.mxu0 %v784
        %v3576 = vpop.f32.mrf.mxu0
        %v3577 = vadd.f32 %v3506, %v3576
        %v3578 = vpop.f32.mrf.mxu0
        %v3579 = vadd.f32 %v3508, %v3578
        %3580 = vmatmul.bf16.gmra.mxu0 %v788
        %v3581 = vpop.f32.mrf.mxu0
        %v3582 = vadd.f32 %v3511, %v3581
        %v3583 = vpop.f32.mrf.mxu0
        %v3584 = vadd.f32 %v3513, %v3583
        %3585 = vmatmul.bf16.gmra.mxu0 %v792
        %v3586 = vpop.f32.mrf.mxu0
        %v3587 = vadd.f32 %v3516, %v3586
        %v3588 = vpop.f32.mrf.mxu0
        %v3589 = vadd.f32 %v3518, %v3588
        %3590 = vmatmul.bf16.gmra.mxu0 %v796
        %v3591 = vpop.f32.mrf.mxu0
        %v3592 = vadd.f32 %v3521, %v3591
        %v3593 = vpop.f32.mrf.mxu0
        %v3594 = vadd.f32 %v3523, %v3593
        %3595 = vmatmul.bf16.gmra.mxu0 %v800
        %v3596 = vpop.f32.mrf.mxu0
        %v3597 = vadd.f32 %v3526, %v3596
        %v3598 = vpop.f32.mrf.mxu0
        %v3599 = vadd.f32 %v3528, %v3598
        %3600 = vmatmul.bf16.gmra.mxu0 %v804
        %v3601 = vpop.f32.mrf.mxu0
        %v3602 = vadd.f32 %v3531, %v3601
        %v3603 = vpop.f32.mrf.mxu0
        %v3604 = vadd.f32 %v3533, %v3603
        %3605 = vmatmul.bf16.gmra.mxu0 %v808
        %v3606 = vpop.f32.mrf.mxu0
        %v3607 = vadd.f32 %v3536, %v3606
        %v3608 = vpop.f32.mrf.mxu0
        %v3609 = vadd.f32 %v3538, %v3608
        %3610 = vmatmul.bf16.gmra.mxu0 %v812
        %v3611 = vpop.f32.mrf.mxu0
        %v3612 = vadd.f32 %v3541, %v3611
        %v3613 = vpop.f32.mrf.mxu0
        %v3614 = vadd.f32 %v3543, %v3613
        %3615 = vmatmul.bf16.gmra.mxu0 %v816
        %v3616 = vpop.f32.mrf.mxu0
        %v3617 = vadd.f32 %v3546, %v3616
        %v3618 = vpop.f32.mrf.mxu0
        %v3619 = vadd.f32 %v3548, %v3618
        %3620 = vmatmul.bf16.gmra.mxu0 %v820
        %v3621 = vpop.f32.mrf.mxu0
        %v3622 = vadd.f32 %v3551, %v3621
        %v3623 = vpop.f32.mrf.mxu0
        %v3624 = vadd.f32 %v3553, %v3623
        %3625 = vmatmul.bf16.gmra.mxu0 %v824
        %v3626 = vpop.f32.mrf.mxu0
        %v3627 = vpop.f32.mrf.mxu0
        %3628 = vdwg.mxu0
        %3629 = vmatpush.bf16.msra.mxu0 %v1986
        %3630 = vmatpush.bf16.msra.mxu0 %v1977
        %3631 = vmatpush.bf16.msra.mxu0 %v1968
        %3632 = vmatpush.bf16.msra.mxu0 %v1959
        %3633 = vmatpush.bf16.msra.mxu0 %v1950
        %3634 = vmatpush.bf16.msra.mxu0 %v1941
        %3635 = vmatpush.bf16.msra.mxu0 %v1932
        %3636 = vmatpush.bf16.msra.mxu0 %v1923
        %3637 = vmatmul.bf16.gmra.mxu0 %v777
        %v3638 = vpop.f32.mrf.mxu0
        %v3639 = vpop.f32.mrf.mxu0
        %v3640 = vadd.f32 %v3569, %v3639
        %3641 = vmatmul.bf16.gmra.mxu0 %v781
        %v3642 = vpop.f32.mrf.mxu0
        %v3643 = vadd.f32 %v3572, %v3642
        %v3644 = vpop.f32.mrf.mxu0
        %v3645 = vadd.f32 %v3574, %v3644
        %3646 = vmatmul.bf16.gmra.mxu0 %v785
        %v3647 = vpop.f32.mrf.mxu0
        %v3648 = vadd.f32 %v3577, %v3647
        %v3649 = vpop.f32.mrf.mxu0
        %v3650 = vadd.f32 %v3579, %v3649
        %3651 = vmatmul.bf16.gmra.mxu0 %v789
        %v3652 = vpop.f32.mrf.mxu0
        %v3653 = vadd.f32 %v3582, %v3652
        %v3654 = vpop.f32.mrf.mxu0
        %v3655 = vadd.f32 %v3584, %v3654
        %3656 = vmatmul.bf16.gmra.mxu0 %v793
        %v3657 = vpop.f32.mrf.mxu0
        %v3658 = vadd.f32 %v3587, %v3657
        %v3659 = vpop.f32.mrf.mxu0
        %v3660 = vadd.f32 %v3589, %v3659
        %3661 = vmatmul.bf16.gmra.mxu0 %v797
        %v3662 = vpop.f32.mrf.mxu0
        %v3663 = vadd.f32 %v3592, %v3662
        %v3664 = vpop.f32.mrf.mxu0
        %v3665 = vadd.f32 %v3594, %v3664
        %3666 = vmatmul.bf16.gmra.mxu0 %v801
        %v3667 = vpop.f32.mrf.mxu0
        %v3668 = vadd.f32 %v3597, %v3667
        %v3669 = vpop.f32.mrf.mxu0
        %v3670 = vadd.f32 %v3599, %v3669
        %3671 = vmatmul.bf16.gmra.mxu0 %v805
        %v3672 = vpop.f32.mrf.mxu0
        %v3673 = vadd.f32 %v3602, %v3672
        %v3674 = vpop.f32.mrf.mxu0
        %v3675 = vadd.f32 %v3604, %v3674
        %3676 = vmatmul.bf16.gmra.mxu0 %v809
        %v3677 = vpop.f32.mrf.mxu0
        %v3678 = vadd.f32 %v3607, %v3677
        %v3679 = vpop.f32.mrf.mxu0
        %v3680 = vadd.f32 %v3609, %v3679
        %3681 = vmatmul.bf16.gmra.mxu0 %v813
        %v3682 = vpop.f32.mrf.mxu0
        %v3683 = vadd.f32 %v3612, %v3682
        %v3684 = vpop.f32.mrf.mxu0
        %v3685 = vadd.f32 %v3614, %v3684
        %3686 = vmatmul.bf16.gmra.mxu0 %v817
        %v3687 = vpop.f32.mrf.mxu0
        %v3688 = vadd.f32 %v3617, %v3687
        %v3689 = vpop.f32.mrf.mxu0
        %v3690 = vadd.f32 %v3619, %v3689
        %3691 = vmatmul.bf16.gmra.mxu0 %v821
        %v3692 = vpop.f32.mrf.mxu0
        %v3693 = vadd.f32 %v3622, %v3692
        %v3694 = vpop.f32.mrf.mxu0
        %v3695 = vadd.f32 %v3624, %v3694
        %3696 = vmatmul.bf16.gmra.mxu0 %v825
        %v3697 = vpop.f32.mrf.mxu0
        %v3698 = vpop.f32.mrf.mxu0
        %3699 = vdwg.mxu0
        %3700 = vmatpush.bf16.msra.mxu0 %v2058
        %3701 = vmatpush.bf16.msra.mxu0 %v2049
        %3702 = vmatpush.bf16.msra.mxu0 %v2040
        %3703 = vmatpush.bf16.msra.mxu0 %v2031
        %3704 = vmatpush.bf16.msra.mxu0 %v2022
        %3705 = vmatpush.bf16.msra.mxu0 %v2013
        %3706 = vmatpush.bf16.msra.mxu0 %v2004
        %3707 = vmatpush.bf16.msra.mxu0 %v1995
        %3708 = vmatmul.bf16.gmra.mxu0 %v778
        %v3709 = vpop.f32.mrf.mxu0
        %v3710 = vpop.f32.mrf.mxu0
        %v3711 = vadd.f32 %v3640, %v3710
        %3712 = vmatmul.bf16.gmra.mxu0 %v782
        %v3713 = vpop.f32.mrf.mxu0
        %v3714 = vadd.f32 %v3643, %v3713
        %v3715 = vpop.f32.mrf.mxu0
        %v3716 = vadd.f32 %v3645, %v3715
        %3717 = vmatmul.bf16.gmra.mxu0 %v786
        %v3718 = vpop.f32.mrf.mxu0
        %v3719 = vadd.f32 %v3648, %v3718
        %v3720 = vpop.f32.mrf.mxu0
        %v3721 = vadd.f32 %v3650, %v3720
        %3722 = vmatmul.bf16.gmra.mxu0 %v790
        %v3723 = vpop.f32.mrf.mxu0
        %v3724 = vadd.f32 %v3653, %v3723
        %v3725 = vpop.f32.mrf.mxu0
        %v3726 = vadd.f32 %v3655, %v3725
        %3727 = vmatmul.bf16.gmra.mxu0 %v794
        %v3728 = vpop.f32.mrf.mxu0
        %v3729 = vadd.f32 %v3658, %v3728
        %v3730 = vpop.f32.mrf.mxu0
        %v3731 = vadd.f32 %v3660, %v3730
        %3732 = vmatmul.bf16.gmra.mxu0 %v798
        %v3733 = vpop.f32.mrf.mxu0
        %v3734 = vadd.f32 %v3663, %v3733
        %v3735 = vpop.f32.mrf.mxu0
        %v3736 = vadd.f32 %v3665, %v3735
        %3737 = vmatmul.bf16.gmra.mxu0 %v802
        %v3738 = vpop.f32.mrf.mxu0
        %v3739 = vadd.f32 %v3668, %v3738
        %v3740 = vpop.f32.mrf.mxu0
        %v3741 = vadd.f32 %v3670, %v3740
        %3742 = vmatmul.bf16.gmra.mxu0 %v806
        %v3743 = vpop.f32.mrf.mxu0
        %v3744 = vadd.f32 %v3673, %v3743
        %v3745 = vpop.f32.mrf.mxu0
        %v3746 = vadd.f32 %v3675, %v3745
        %3747 = vmatmul.bf16.gmra.mxu0 %v810
        %v3748 = vpop.f32.mrf.mxu0
        %v3749 = vadd.f32 %v3678, %v3748
        %v3750 = vpop.f32.mrf.mxu0
        %v3751 = vadd.f32 %v3680, %v3750
        %3752 = vmatmul.bf16.gmra.mxu0 %v814
        %v3753 = vpop.f32.mrf.mxu0
        %v3754 = vadd.f32 %v3683, %v3753
        %v3755 = vpop.f32.mrf.mxu0
        %v3756 = vadd.f32 %v3685, %v3755
        %3757 = vmatmul.bf16.gmra.mxu0 %v818
        %v3758 = vpop.f32.mrf.mxu0
        %v3759 = vadd.f32 %v3688, %v3758
        %v3760 = vpop.f32.mrf.mxu0
        %v3761 = vadd.f32 %v3690, %v3760
        %3762 = vmatmul.bf16.gmra.mxu0 %v822
        %v3763 = vpop.f32.mrf.mxu0
        %v3764 = vadd.f32 %v3693, %v3763
        %v3765 = vpop.f32.mrf.mxu0
        %v3766 = vadd.f32 %v3695, %v3765
        %3767 = vmatmul.bf16.gmra.mxu0 %v826
        %v3768 = vpop.f32.mrf.mxu0
        %v3769 = vpop.f32.mrf.mxu0
        %3770 = vdwg.mxu0
        %3771 = vmatpush.bf16.msra.mxu0 %v1843
        %3772 = vmatpush.bf16.msra.mxu0 %v1834
        %3773 = vmatpush.bf16.msra.mxu0 %v1825
        %3774 = vmatpush.bf16.msra.mxu0 %v1816
        %3775 = vmatpush.bf16.msra.mxu0 %v1807
        %3776 = vmatpush.bf16.msra.mxu0 %v1798
        %3777 = vmatpush.bf16.msra.mxu0 %v1789
        %3778 = vmatpush.bf16.msra.mxu0 %v1780
        %3779 = vmatmul.bf16.gmra.mxu0 %v775
        %v3780 = vpop.f32.mrf.mxu0
        %v3781 = vpop.f32.mrf.mxu0
        %v3782 = vadd.f32 0.0, %v3781
        %3783 = vmatmul.bf16.gmra.mxu0 %v779
        %v3784 = vpop.f32.mrf.mxu0
        %v3785 = vadd.f32 0.0, %v3784
        %v3786 = vpop.f32.mrf.mxu0
        %v3787 = vadd.f32 0.0, %v3786
        %3788 = vmatmul.bf16.gmra.mxu0 %v783
        %v3789 = vpop.f32.mrf.mxu0
        %v3790 = vadd.f32 0.0, %v3789
        %v3791 = vpop.f32.mrf.mxu0
        %v3792 = vadd.f32 0.0, %v3791
        %3793 = vmatmul.bf16.gmra.mxu0 %v787
        %v3794 = vpop.f32.mrf.mxu0
        %v3795 = vadd.f32 0.0, %v3794
        %v3796 = vpop.f32.mrf.mxu0
        %v3797 = vadd.f32 0.0, %v3796
        %3798 = vmatmul.bf16.gmra.mxu0 %v791
        %v3799 = vpop.f32.mrf.mxu0
        %v3800 = vadd.f32 0.0, %v3799
        %v3801 = vpop.f32.mrf.mxu0
        %v3802 = vadd.f32 0.0, %v3801
        %3803 = vmatmul.bf16.gmra.mxu0 %v795
        %v3804 = vpop.f32.mrf.mxu0
        %v3805 = vadd.f32 0.0, %v3804
        %v3806 = vpop.f32.mrf.mxu0
        %v3807 = vadd.f32 0.0, %v3806
        %3808 = vmatmul.bf16.gmra.mxu0 %v799
        %v3809 = vpop.f32.mrf.mxu0
        %v3810 = vadd.f32 0.0, %v3809
        %v3811 = vpop.f32.mrf.mxu0
        %v3812 = vadd.f32 0.0, %v3811
        %3813 = vmatmul.bf16.gmra.mxu0 %v803
        %v3814 = vpop.f32.mrf.mxu0
        %v3815 = vadd.f32 0.0, %v3814
        %v3816 = vpop.f32.mrf.mxu0
        %v3817 = vadd.f32 0.0, %v3816
        %3818 = vmatmul.bf16.gmra.mxu0 %v807
        %v3819 = vpop.f32.mrf.mxu0
        %v3820 = vadd.f32 0.0, %v3819
        %v3821 = vpop.f32.mrf.mxu0
        %v3822 = vadd.f32 0.0, %v3821
        %3823 = vmatmul.bf16.gmra.mxu0 %v811
        %v3824 = vpop.f32.mrf.mxu0
        %v3825 = vadd.f32 0.0, %v3824
        %v3826 = vpop.f32.mrf.mxu0
        %v3827 = vadd.f32 0.0, %v3826
        %3828 = vmatmul.bf16.gmra.mxu0 %v815
        %v3829 = vpop.f32.mrf.mxu0
        %v3830 = vadd.f32 0.0, %v3829
        %v3831 = vpop.f32.mrf.mxu0
        %v3832 = vadd.f32 0.0, %v3831
        %3833 = vmatmul.bf16.gmra.mxu0 %v819
        %v3834 = vpop.f32.mrf.mxu0
        %v3835 = vadd.f32 0.0, %v3834
        %v3836 = vpop.f32.mrf.mxu0
        %v3837 = vadd.f32 0.0, %v3836
        %3838 = vmatmul.bf16.gmra.mxu0 %v823
        %v3839 = vpop.f32.mrf.mxu0
        %v3840 = vpop.f32.mrf.mxu0
        %3841 = vdwg.mxu0
        %3842 = vmatpush.bf16.msra.mxu0 %v1915
        %3843 = vmatpush.bf16.msra.mxu0 %v1906
        %3844 = vmatpush.bf16.msra.mxu0 %v1897
        %3845 = vmatpush.bf16.msra.mxu0 %v1888
        %3846 = vmatpush.bf16.msra.mxu0 %v1879
        %3847 = vmatpush.bf16.msra.mxu0 %v1870
        %3848 = vmatpush.bf16.msra.mxu0 %v1861
        %3849 = vmatpush.bf16.msra.mxu0 %v1852
        %3850 = vmatmul.bf16.gmra.mxu0 %v776
        %v3851 = vpop.f32.mrf.mxu0
        %v3852 = vpop.f32.mrf.mxu0
        %v3853 = vadd.f32 %v3782, %v3852
        %3854 = vmatmul.bf16.gmra.mxu0 %v780
        %v3855 = vpop.f32.mrf.mxu0
        %v3856 = vadd.f32 %v3785, %v3855
        %v3857 = vpop.f32.mrf.mxu0
        %v3858 = vadd.f32 %v3787, %v3857
        %3859 = vmatmul.bf16.gmra.mxu0 %v784
        %v3860 = vpop.f32.mrf.mxu0
        %v3861 = vadd.f32 %v3790, %v3860
        %v3862 = vpop.f32.mrf.mxu0
        %v3863 = vadd.f32 %v3792, %v3862
        %3864 = vmatmul.bf16.gmra.mxu0 %v788
        %v3865 = vpop.f32.mrf.mxu0
        %v3866 = vadd.f32 %v3795, %v3865
        %v3867 = vpop.f32.mrf.mxu0
        %v3868 = vadd.f32 %v3797, %v3867
        %3869 = vmatmul.bf16.gmra.mxu0 %v792
        %v3870 = vpop.f32.mrf.mxu0
        %v3871 = vadd.f32 %v3800, %v3870
        %v3872 = vpop.f32.mrf.mxu0
        %v3873 = vadd.f32 %v3802, %v3872
        %3874 = vmatmul.bf16.gmra.mxu0 %v796
        %v3875 = vpop.f32.mrf.mxu0
        %v3876 = vadd.f32 %v3805, %v3875
        %v3877 = vpop.f32.mrf.mxu0
        %v3878 = vadd.f32 %v3807, %v3877
        %3879 = vmatmul.bf16.gmra.mxu0 %v800
        %v3880 = vpop.f32.mrf.mxu0
        %v3881 = vadd.f32 %v3810, %v3880
        %v3882 = vpop.f32.mrf.mxu0
        %v3883 = vadd.f32 %v3812, %v3882
        %3884 = vmatmul.bf16.gmra.mxu0 %v804
        %v3885 = vpop.f32.mrf.mxu0
        %v3886 = vadd.f32 %v3815, %v3885
        %v3887 = vpop.f32.mrf.mxu0
        %v3888 = vadd.f32 %v3817, %v3887
        %3889 = vmatmul.bf16.gmra.mxu0 %v808
        %v3890 = vpop.f32.mrf.mxu0
        %v3891 = vadd.f32 %v3820, %v3890
        %v3892 = vpop.f32.mrf.mxu0
        %v3893 = vadd.f32 %v3822, %v3892
        %3894 = vmatmul.bf16.gmra.mxu0 %v812
        %v3895 = vpop.f32.mrf.mxu0
        %v3896 = vadd.f32 %v3825, %v3895
        %v3897 = vpop.f32.mrf.mxu0
        %v3898 = vadd.f32 %v3827, %v3897
        %3899 = vmatmul.bf16.gmra.mxu0 %v816
        %v3900 = vpop.f32.mrf.mxu0
        %v3901 = vadd.f32 %v3830, %v3900
        %v3902 = vpop.f32.mrf.mxu0
        %v3903 = vadd.f32 %v3832, %v3902
        %3904 = vmatmul.bf16.gmra.mxu0 %v820
        %v3905 = vpop.f32.mrf.mxu0
        %v3906 = vadd.f32 %v3835, %v3905
        %v3907 = vpop.f32.mrf.mxu0
        %v3908 = vadd.f32 %v3837, %v3907
        %3909 = vmatmul.bf16.gmra.mxu0 %v824
        %v3910 = vpop.f32.mrf.mxu0
        %v3911 = vpop.f32.mrf.mxu0
        %3912 = vdwg.mxu0
        %3913 = vmatpush.bf16.msra.mxu0 %v1987
        %3914 = vmatpush.bf16.msra.mxu0 %v1978
        %3915 = vmatpush.bf16.msra.mxu0 %v1969
        %3916 = vmatpush.bf16.msra.mxu0 %v1960
        %3917 = vmatpush.bf16.msra.mxu0 %v1951
        %3918 = vmatpush.bf16.msra.mxu0 %v1942
        %3919 = vmatpush.bf16.msra.mxu0 %v1933
        %3920 = vmatpush.bf16.msra.mxu0 %v1924
        %3921 = vmatmul.bf16.gmra.mxu0 %v777
        %v3922 = vpop.f32.mrf.mxu0
        %v3923 = vpop.f32.mrf.mxu0
        %v3924 = vadd.f32 %v3853, %v3923
        %3925 = vmatmul.bf16.gmra.mxu0 %v781
        %v3926 = vpop.f32.mrf.mxu0
        %v3927 = vadd.f32 %v3856, %v3926
        %v3928 = vpop.f32.mrf.mxu0
        %v3929 = vadd.f32 %v3858, %v3928
        %3930 = vmatmul.bf16.gmra.mxu0 %v785
        %v3931 = vpop.f32.mrf.mxu0
        %v3932 = vadd.f32 %v3861, %v3931
        %v3933 = vpop.f32.mrf.mxu0
        %v3934 = vadd.f32 %v3863, %v3933
        %3935 = vmatmul.bf16.gmra.mxu0 %v789
        %v3936 = vpop.f32.mrf.mxu0
        %v3937 = vadd.f32 %v3866, %v3936
        %v3938 = vpop.f32.mrf.mxu0
        %v3939 = vadd.f32 %v3868, %v3938
        %3940 = vmatmul.bf16.gmra.mxu0 %v793
        %v3941 = vpop.f32.mrf.mxu0
        %v3942 = vadd.f32 %v3871, %v3941
        %v3943 = vpop.f32.mrf.mxu0
        %v3944 = vadd.f32 %v3873, %v3943
        %3945 = vmatmul.bf16.gmra.mxu0 %v797
        %v3946 = vpop.f32.mrf.mxu0
        %v3947 = vadd.f32 %v3876, %v3946
        %v3948 = vpop.f32.mrf.mxu0
        %v3949 = vadd.f32 %v3878, %v3948
        %3950 = vmatmul.bf16.gmra.mxu0 %v801
        %v3951 = vpop.f32.mrf.mxu0
        %v3952 = vadd.f32 %v3881, %v3951
        %v3953 = vpop.f32.mrf.mxu0
        %v3954 = vadd.f32 %v3883, %v3953
        %3955 = vmatmul.bf16.gmra.mxu0 %v805
        %v3956 = vpop.f32.mrf.mxu0
        %v3957 = vadd.f32 %v3886, %v3956
        %v3958 = vpop.f32.mrf.mxu0
        %v3959 = vadd.f32 %v3888, %v3958
        %3960 = vmatmul.bf16.gmra.mxu0 %v809
        %v3961 = vpop.f32.mrf.mxu0
        %v3962 = vadd.f32 %v3891, %v3961
        %v3963 = vpop.f32.mrf.mxu0
        %v3964 = vadd.f32 %v3893, %v3963
        %3965 = vmatmul.bf16.gmra.mxu0 %v813
        %v3966 = vpop.f32.mrf.mxu0
        %v3967 = vadd.f32 %v3896, %v3966
        %v3968 = vpop.f32.mrf.mxu0
        %v3969 = vadd.f32 %v3898, %v3968
        %3970 = vmatmul.bf16.gmra.mxu0 %v817
        %v3971 = vpop.f32.mrf.mxu0
        %v3972 = vadd.f32 %v3901, %v3971
        %v3973 = vpop.f32.mrf.mxu0
        %v3974 = vadd.f32 %v3903, %v3973
        %3975 = vmatmul.bf16.gmra.mxu0 %v821
        %v3976 = vpop.f32.mrf.mxu0
        %v3977 = vadd.f32 %v3906, %v3976
        %v3978 = vpop.f32.mrf.mxu0
        %v3979 = vadd.f32 %v3908, %v3978
        %3980 = vmatmul.bf16.gmra.mxu0 %v825
        %v3981 = vpop.f32.mrf.mxu0
        %v3982 = vpop.f32.mrf.mxu0
        %3983 = vdwg.mxu0
        %3984 = vmatpush.bf16.msra.mxu0 %v2059
        %3985 = vmatpush.bf16.msra.mxu0 %v2050
        %3986 = vmatpush.bf16.msra.mxu0 %v2041
        %3987 = vmatpush.bf16.msra.mxu0 %v2032
        %3988 = vmatpush.bf16.msra.mxu0 %v2023
        %3989 = vmatpush.bf16.msra.mxu0 %v2014
        %3990 = vmatpush.bf16.msra.mxu0 %v2005
        %3991 = vmatpush.bf16.msra.mxu0 %v1996
        %3992 = vmatmul.bf16.gmra.mxu0 %v778
        %v3993 = vpop.f32.mrf.mxu0
        %v3994 = vpop.f32.mrf.mxu0
        %v3995 = vadd.f32 %v3924, %v3994
        %3996 = vmatmul.bf16.gmra.mxu0 %v782
        %v3997 = vpop.f32.mrf.mxu0
        %v3998 = vadd.f32 %v3927, %v3997
        %v3999 = vpop.f32.mrf.mxu0
        %v4000 = vadd.f32 %v3929, %v3999
        %4001 = vmatmul.bf16.gmra.mxu0 %v786
        %v4002 = vpop.f32.mrf.mxu0
        %v4003 = vadd.f32 %v3932, %v4002
        %v4004 = vpop.f32.mrf.mxu0
        %v4005 = vadd.f32 %v3934, %v4004
        %4006 = vmatmul.bf16.gmra.mxu0 %v790
        %v4007 = vpop.f32.mrf.mxu0
        %v4008 = vadd.f32 %v3937, %v4007
        %v4009 = vpop.f32.mrf.mxu0
        %v4010 = vadd.f32 %v3939, %v4009
        %4011 = vmatmul.bf16.gmra.mxu0 %v794
        %v4012 = vpop.f32.mrf.mxu0
        %v4013 = vadd.f32 %v3942, %v4012
        %v4014 = vpop.f32.mrf.mxu0
        %v4015 = vadd.f32 %v3944, %v4014
        %4016 = vmatmul.bf16.gmra.mxu0 %v798
        %v4017 = vpop.f32.mrf.mxu0
        %v4018 = vadd.f32 %v3947, %v4017
        %v4019 = vpop.f32.mrf.mxu0
        %v4020 = vadd.f32 %v3949, %v4019
        %4021 = vmatmul.bf16.gmra.mxu0 %v802
        %v4022 = vpop.f32.mrf.mxu0
        %v4023 = vadd.f32 %v3952, %v4022
        %v4024 = vpop.f32.mrf.mxu0
        %v4025 = vadd.f32 %v3954, %v4024
        %4026 = vmatmul.bf16.gmra.mxu0 %v806
        %v4027 = vpop.f32.mrf.mxu0
        %v4028 = vadd.f32 %v3957, %v4027
        %v4029 = vpop.f32.mrf.mxu0
        %v4030 = vadd.f32 %v3959, %v4029
        %4031 = vmatmul.bf16.gmra.mxu0 %v810
        %v4032 = vpop.f32.mrf.mxu0
        %v4033 = vadd.f32 %v3962, %v4032
        %v4034 = vpop.f32.mrf.mxu0
        %v4035 = vadd.f32 %v3964, %v4034
        %4036 = vmatmul.bf16.gmra.mxu0 %v814
        %v4037 = vpop.f32.mrf.mxu0
        %v4038 = vadd.f32 %v3967, %v4037
        %v4039 = vpop.f32.mrf.mxu0
        %v4040 = vadd.f32 %v3969, %v4039
        %4041 = vmatmul.bf16.gmra.mxu0 %v818
        %v4042 = vpop.f32.mrf.mxu0
        %v4043 = vadd.f32 %v3972, %v4042
        %v4044 = vpop.f32.mrf.mxu0
        %v4045 = vadd.f32 %v3974, %v4044
        %4046 = vmatmul.bf16.gmra.mxu0 %v822
        %v4047 = vpop.f32.mrf.mxu0
        %v4048 = vadd.f32 %v3977, %v4047
        %v4049 = vpop.f32.mrf.mxu0
        %v4050 = vadd.f32 %v3979, %v4049
        %4051 = vmatmul.bf16.gmra.mxu0 %v826
        %v4052 = vpop.f32.mrf.mxu0
        %v4053 = vpop.f32.mrf.mxu0
        %4054 = vdwg.mxu0
        %4055 = vmatpush.bf16.msra.mxu0 %v1844
        %4056 = vmatpush.bf16.msra.mxu0 %v1835
        %4057 = vmatpush.bf16.msra.mxu0 %v1826
        %4058 = vmatpush.bf16.msra.mxu0 %v1817
        %4059 = vmatpush.bf16.msra.mxu0 %v1808
        %4060 = vmatpush.bf16.msra.mxu0 %v1799
        %4061 = vmatpush.bf16.msra.mxu0 %v1790
        %4062 = vmatpush.bf16.msra.mxu0 %v1781
        %4063 = vmatmul.bf16.gmra.mxu0 %v775
        %v4064 = vpop.f32.mrf.mxu0
        %v4065 = vpop.f32.mrf.mxu0
        %4066 = vmatmul.bf16.gmra.mxu0 %v779
        %v4067 = vpop.f32.mrf.mxu0
        %v4068 = vadd.f32 0.0, %v4067
        %v4069 = vpop.f32.mrf.mxu0
        %v4070 = vadd.f32 0.0, %v4069
        %4071 = vmatmul.bf16.gmra.mxu0 %v783
        %v4072 = vpop.f32.mrf.mxu0
        %v4073 = vadd.f32 0.0, %v4072
        %v4074 = vpop.f32.mrf.mxu0
        %v4075 = vadd.f32 0.0, %v4074
        %4076 = vmatmul.bf16.gmra.mxu0 %v787
        %v4077 = vpop.f32.mrf.mxu0
        %v4078 = vadd.f32 0.0, %v4077
        %v4079 = vpop.f32.mrf.mxu0
        %v4080 = vadd.f32 0.0, %v4079
        %4081 = vmatmul.bf16.gmra.mxu0 %v791
        %v4082 = vpop.f32.mrf.mxu0
        %v4083 = vadd.f32 0.0, %v4082
        %v4084 = vpop.f32.mrf.mxu0
        %v4085 = vadd.f32 0.0, %v4084
        %4086 = vmatmul.bf16.gmra.mxu0 %v795
        %v4087 = vpop.f32.mrf.mxu0
        %v4088 = vadd.f32 0.0, %v4087
        %v4089 = vpop.f32.mrf.mxu0
        %v4090 = vadd.f32 0.0, %v4089
        %4091 = vmatmul.bf16.gmra.mxu0 %v799
        %v4092 = vpop.f32.mrf.mxu0
        %v4093 = vadd.f32 0.0, %v4092
        %v4094 = vpop.f32.mrf.mxu0
        %v4095 = vadd.f32 0.0, %v4094
        %4096 = vmatmul.bf16.gmra.mxu0 %v803
        %v4097 = vpop.f32.mrf.mxu0
        %v4098 = vadd.f32 0.0, %v4097
        %v4099 = vpop.f32.mrf.mxu0
        %v4100 = vadd.f32 0.0, %v4099
        %4101 = vmatmul.bf16.gmra.mxu0 %v807
        %v4102 = vpop.f32.mrf.mxu0
        %v4103 = vadd.f32 0.0, %v4102
        %v4104 = vpop.f32.mrf.mxu0
        %v4105 = vadd.f32 0.0, %v4104
        %4106 = vmatmul.bf16.gmra.mxu0 %v811
        %v4107 = vpop.f32.mrf.mxu0
        %v4108 = vadd.f32 0.0, %v4107
        %v4109 = vpop.f32.mrf.mxu0
        %v4110 = vadd.f32 0.0, %v4109
        %4111 = vmatmul.bf16.gmra.mxu0 %v815
        %v4112 = vpop.f32.mrf.mxu0
        %v4113 = vadd.f32 0.0, %v4112
        %v4114 = vpop.f32.mrf.mxu0
        %v4115 = vadd.f32 0.0, %v4114
        %4116 = vmatmul.bf16.gmra.mxu0 %v819
        %v4117 = vpop.f32.mrf.mxu0
        %v4118 = vadd.f32 0.0, %v4117
        %v4119 = vpop.f32.mrf.mxu0
        %v4120 = vadd.f32 0.0, %v4119
        %4121 = vmatmul.bf16.gmra.mxu0 %v823
        %v4122 = vpop.f32.mrf.mxu0
        %v4123 = vadd.f32 0.0, %v4122
        %v4124 = vpop.f32.mrf.mxu0
        %4125 = vdwg.mxu0
        %4126 = vmatpush.bf16.msra.mxu0 %v1916
        %4127 = vmatpush.bf16.msra.mxu0 %v1907
        %4128 = vmatpush.bf16.msra.mxu0 %v1898
        %4129 = vmatpush.bf16.msra.mxu0 %v1889
        %4130 = vmatpush.bf16.msra.mxu0 %v1880
        %4131 = vmatpush.bf16.msra.mxu0 %v1871
        %4132 = vmatpush.bf16.msra.mxu0 %v1862
        %4133 = vmatpush.bf16.msra.mxu0 %v1853
        %4134 = vmatmul.bf16.gmra.mxu0 %v776
        %v4135 = vpop.f32.mrf.mxu0
        %v4136 = vpop.f32.mrf.mxu0
        %4137 = vmatmul.bf16.gmra.mxu0 %v780
        %v4138 = vpop.f32.mrf.mxu0
        %v4139 = vadd.f32 %v4068, %v4138
        %v4140 = vpop.f32.mrf.mxu0
        %v4141 = vadd.f32 %v4070, %v4140
        %4142 = vmatmul.bf16.gmra.mxu0 %v784
        %v4143 = vpop.f32.mrf.mxu0
        %v4144 = vadd.f32 %v4073, %v4143
        %v4145 = vpop.f32.mrf.mxu0
        %v4146 = vadd.f32 %v4075, %v4145
        %4147 = vmatmul.bf16.gmra.mxu0 %v788
        %v4148 = vpop.f32.mrf.mxu0
        %v4149 = vadd.f32 %v4078, %v4148
        %v4150 = vpop.f32.mrf.mxu0
        %v4151 = vadd.f32 %v4080, %v4150
        %4152 = vmatmul.bf16.gmra.mxu0 %v792
        %v4153 = vpop.f32.mrf.mxu0
        %v4154 = vadd.f32 %v4083, %v4153
        %v4155 = vpop.f32.mrf.mxu0
        %v4156 = vadd.f32 %v4085, %v4155
        %4157 = vmatmul.bf16.gmra.mxu0 %v796
        %v4158 = vpop.f32.mrf.mxu0
        %v4159 = vadd.f32 %v4088, %v4158
        %v4160 = vpop.f32.mrf.mxu0
        %v4161 = vadd.f32 %v4090, %v4160
        %4162 = vmatmul.bf16.gmra.mxu0 %v800
        %v4163 = vpop.f32.mrf.mxu0
        %v4164 = vadd.f32 %v4093, %v4163
        %v4165 = vpop.f32.mrf.mxu0
        %v4166 = vadd.f32 %v4095, %v4165
        %4167 = vmatmul.bf16.gmra.mxu0 %v804
        %v4168 = vpop.f32.mrf.mxu0
        %v4169 = vadd.f32 %v4098, %v4168
        %v4170 = vpop.f32.mrf.mxu0
        %v4171 = vadd.f32 %v4100, %v4170
        %4172 = vmatmul.bf16.gmra.mxu0 %v808
        %v4173 = vpop.f32.mrf.mxu0
        %v4174 = vadd.f32 %v4103, %v4173
        %v4175 = vpop.f32.mrf.mxu0
        %v4176 = vadd.f32 %v4105, %v4175
        %4177 = vmatmul.bf16.gmra.mxu0 %v812
        %v4178 = vpop.f32.mrf.mxu0
        %v4179 = vadd.f32 %v4108, %v4178
        %v4180 = vpop.f32.mrf.mxu0
        %v4181 = vadd.f32 %v4110, %v4180
        %4182 = vmatmul.bf16.gmra.mxu0 %v816
        %v4183 = vpop.f32.mrf.mxu0
        %v4184 = vadd.f32 %v4113, %v4183
        %v4185 = vpop.f32.mrf.mxu0
        %v4186 = vadd.f32 %v4115, %v4185
        %4187 = vmatmul.bf16.gmra.mxu0 %v820
        %v4188 = vpop.f32.mrf.mxu0
        %v4189 = vadd.f32 %v4118, %v4188
        %v4190 = vpop.f32.mrf.mxu0
        %v4191 = vadd.f32 %v4120, %v4190
        %4192 = vmatmul.bf16.gmra.mxu0 %v824
        %v4193 = vpop.f32.mrf.mxu0
        %v4194 = vadd.f32 %v4123, %v4193
        %v4195 = vpop.f32.mrf.mxu0
        %4196 = vdwg.mxu0
        %4197 = vmatpush.bf16.msra.mxu0 %v1988
        %4198 = vmatpush.bf16.msra.mxu0 %v1979
        %4199 = vmatpush.bf16.msra.mxu0 %v1970
        %4200 = vmatpush.bf16.msra.mxu0 %v1961
        %4201 = vmatpush.bf16.msra.mxu0 %v1952
        %4202 = vmatpush.bf16.msra.mxu0 %v1943
        %4203 = vmatpush.bf16.msra.mxu0 %v1934
        %4204 = vmatpush.bf16.msra.mxu0 %v1925
        %4205 = vmatmul.bf16.gmra.mxu0 %v777
        %v4206 = vpop.f32.mrf.mxu0
        %v4207 = vpop.f32.mrf.mxu0
        %4208 = vmatmul.bf16.gmra.mxu0 %v781
        %v4209 = vpop.f32.mrf.mxu0
        %v4210 = vadd.f32 %v4139, %v4209
        %v4211 = vpop.f32.mrf.mxu0
        %v4212 = vadd.f32 %v4141, %v4211
        %4213 = vmatmul.bf16.gmra.mxu0 %v785
        %v4214 = vpop.f32.mrf.mxu0
        %v4215 = vadd.f32 %v4144, %v4214
        %v4216 = vpop.f32.mrf.mxu0
        %v4217 = vadd.f32 %v4146, %v4216
        %4218 = vmatmul.bf16.gmra.mxu0 %v789
        %v4219 = vpop.f32.mrf.mxu0
        %v4220 = vadd.f32 %v4149, %v4219
        %v4221 = vpop.f32.mrf.mxu0
        %v4222 = vadd.f32 %v4151, %v4221
        %4223 = vmatmul.bf16.gmra.mxu0 %v793
        %v4224 = vpop.f32.mrf.mxu0
        %v4225 = vadd.f32 %v4154, %v4224
        %v4226 = vpop.f32.mrf.mxu0
        %v4227 = vadd.f32 %v4156, %v4226
        %4228 = vmatmul.bf16.gmra.mxu0 %v797
        %v4229 = vpop.f32.mrf.mxu0
        %v4230 = vadd.f32 %v4159, %v4229
        %v4231 = vpop.f32.mrf.mxu0
        %v4232 = vadd.f32 %v4161, %v4231
        %4233 = vmatmul.bf16.gmra.mxu0 %v801
        %v4234 = vpop.f32.mrf.mxu0
        %v4235 = vadd.f32 %v4164, %v4234
        %v4236 = vpop.f32.mrf.mxu0
        %v4237 = vadd.f32 %v4166, %v4236
        %4238 = vmatmul.bf16.gmra.mxu0 %v805
        %v4239 = vpop.f32.mrf.mxu0
        %v4240 = vadd.f32 %v4169, %v4239
        %v4241 = vpop.f32.mrf.mxu0
        %v4242 = vadd.f32 %v4171, %v4241
        %4243 = vmatmul.bf16.gmra.mxu0 %v809
        %v4244 = vpop.f32.mrf.mxu0
        %v4245 = vadd.f32 %v4174, %v4244
        %v4246 = vpop.f32.mrf.mxu0
        %v4247 = vadd.f32 %v4176, %v4246
        %4248 = vmatmul.bf16.gmra.mxu0 %v813
        %v4249 = vpop.f32.mrf.mxu0
        %v4250 = vadd.f32 %v4179, %v4249
        %v4251 = vpop.f32.mrf.mxu0
        %v4252 = vadd.f32 %v4181, %v4251
        %4253 = vmatmul.bf16.gmra.mxu0 %v817
        %v4254 = vpop.f32.mrf.mxu0
        %v4255 = vadd.f32 %v4184, %v4254
        %v4256 = vpop.f32.mrf.mxu0
        %v4257 = vadd.f32 %v4186, %v4256
        %4258 = vmatmul.bf16.gmra.mxu0 %v821
        %v4259 = vpop.f32.mrf.mxu0
        %v4260 = vadd.f32 %v4189, %v4259
        %v4261 = vpop.f32.mrf.mxu0
        %v4262 = vadd.f32 %v4191, %v4261
        %4263 = vmatmul.bf16.gmra.mxu0 %v825
        %v4264 = vpop.f32.mrf.mxu0
        %v4265 = vadd.f32 %v4194, %v4264
        %v4266 = vpop.f32.mrf.mxu0
        %4267 = vdwg.mxu0
        %4268 = vmatpush.bf16.msra.mxu0 %v2060
        %4269 = vmatpush.bf16.msra.mxu0 %v2051
        %4270 = vmatpush.bf16.msra.mxu0 %v2042
        %4271 = vmatpush.bf16.msra.mxu0 %v2033
        %4272 = vmatpush.bf16.msra.mxu0 %v2024
        %4273 = vmatpush.bf16.msra.mxu0 %v2015
        %4274 = vmatpush.bf16.msra.mxu0 %v2006
        %4275 = vmatpush.bf16.msra.mxu0 %v1997
        %4276 = vmatmul.bf16.gmra.mxu0 %v778
        %v4277 = vpop.f32.mrf.mxu0
        %v4278 = vpop.f32.mrf.mxu0
        %4279 = vmatmul.bf16.gmra.mxu0 %v782
        %v4280 = vpop.f32.mrf.mxu0
        %v4281 = vadd.f32 %v4210, %v4280
        %v4282 = vpop.f32.mrf.mxu0
        %v4283 = vadd.f32 %v4212, %v4282
        %4284 = vmatmul.bf16.gmra.mxu0 %v786
        %v4285 = vpop.f32.mrf.mxu0
        %v4286 = vadd.f32 %v4215, %v4285
        %v4287 = vpop.f32.mrf.mxu0
        %v4288 = vadd.f32 %v4217, %v4287
        %4289 = vmatmul.bf16.gmra.mxu0 %v790
        %v4290 = vpop.f32.mrf.mxu0
        %v4291 = vadd.f32 %v4220, %v4290
        %v4292 = vpop.f32.mrf.mxu0
        %v4293 = vadd.f32 %v4222, %v4292
        %4294 = vmatmul.bf16.gmra.mxu0 %v794
        %v4295 = vpop.f32.mrf.mxu0
        %v4296 = vadd.f32 %v4225, %v4295
        %v4297 = vpop.f32.mrf.mxu0
        %v4298 = vadd.f32 %v4227, %v4297
        %4299 = vmatmul.bf16.gmra.mxu0 %v798
        %v4300 = vpop.f32.mrf.mxu0
        %v4301 = vadd.f32 %v4230, %v4300
        %v4302 = vpop.f32.mrf.mxu0
        %v4303 = vadd.f32 %v4232, %v4302
        %4304 = vmatmul.bf16.gmra.mxu0 %v802
        %v4305 = vpop.f32.mrf.mxu0
        %v4306 = vadd.f32 %v4235, %v4305
        %v4307 = vpop.f32.mrf.mxu0
        %v4308 = vadd.f32 %v4237, %v4307
        %4309 = vmatmul.bf16.gmra.mxu0 %v806
        %v4310 = vpop.f32.mrf.mxu0
        %v4311 = vadd.f32 %v4240, %v4310
        %v4312 = vpop.f32.mrf.mxu0
        %v4313 = vadd.f32 %v4242, %v4312
        %4314 = vmatmul.bf16.gmra.mxu0 %v810
        %v4315 = vpop.f32.mrf.mxu0
        %v4316 = vadd.f32 %v4245, %v4315
        %v4317 = vpop.f32.mrf.mxu0
        %v4318 = vadd.f32 %v4247, %v4317
        %4319 = vmatmul.bf16.gmra.mxu0 %v814
        %v4320 = vpop.f32.mrf.mxu0
        %v4321 = vadd.f32 %v4250, %v4320
        %v4322 = vpop.f32.mrf.mxu0
        %v4323 = vadd.f32 %v4252, %v4322
        %4324 = vmatmul.bf16.gmra.mxu0 %v818
        %v4325 = vpop.f32.mrf.mxu0
        %v4326 = vadd.f32 %v4255, %v4325
        %v4327 = vpop.f32.mrf.mxu0
        %v4328 = vadd.f32 %v4257, %v4327
        %4329 = vmatmul.bf16.gmra.mxu0 %v822
        %v4330 = vpop.f32.mrf.mxu0
        %v4331 = vadd.f32 %v4260, %v4330
        %v4332 = vpop.f32.mrf.mxu0
        %v4333 = vadd.f32 %v4262, %v4332
        %4334 = vmatmul.bf16.gmra.mxu0 %v826
        %v4335 = vpop.f32.mrf.mxu0
        %v4336 = vadd.f32 %v4265, %v4335
        %v4337 = vpop.f32.mrf.mxu0
        %4338 = vdwg.mxu0
        %4339 = vmatpush.bf16.msra.mxu0 %v1845
        %4340 = vmatpush.bf16.msra.mxu0 %v1836
        %4341 = vmatpush.bf16.msra.mxu0 %v1827
        %4342 = vmatpush.bf16.msra.mxu0 %v1818
        %4343 = vmatpush.bf16.msra.mxu0 %v1809
        %4344 = vmatpush.bf16.msra.mxu0 %v1800
        %4345 = vmatpush.bf16.msra.mxu0 %v1791
        %4346 = vmatpush.bf16.msra.mxu0 %v1782
        %4347 = vmatmul.bf16.gmra.mxu0 %v775
        %v4348 = vpop.f32.mrf.mxu0
        %v4349 = vpop.f32.mrf.mxu0
        %4350 = vmatmul.bf16.gmra.mxu0 %v779
        %v4351 = vpop.f32.mrf.mxu0
        %v4352 = vadd.f32 0.0, %v4351
        %v4353 = vpop.f32.mrf.mxu0
        %v4354 = vadd.f32 0.0, %v4353
        %4355 = vmatmul.bf16.gmra.mxu0 %v783
        %v4356 = vpop.f32.mrf.mxu0
        %v4357 = vadd.f32 0.0, %v4356
        %v4358 = vpop.f32.mrf.mxu0
        %v4359 = vadd.f32 0.0, %v4358
        %4360 = vmatmul.bf16.gmra.mxu0 %v787
        %v4361 = vpop.f32.mrf.mxu0
        %v4362 = vadd.f32 0.0, %v4361
        %v4363 = vpop.f32.mrf.mxu0
        %v4364 = vadd.f32 0.0, %v4363
        %4365 = vmatmul.bf16.gmra.mxu0 %v791
        %v4366 = vpop.f32.mrf.mxu0
        %v4367 = vadd.f32 0.0, %v4366
        %v4368 = vpop.f32.mrf.mxu0
        %v4369 = vadd.f32 0.0, %v4368
        %4370 = vmatmul.bf16.gmra.mxu0 %v795
        %v4371 = vpop.f32.mrf.mxu0
        %v4372 = vadd.f32 0.0, %v4371
        %v4373 = vpop.f32.mrf.mxu0
        %v4374 = vadd.f32 0.0, %v4373
        %4375 = vmatmul.bf16.gmra.mxu0 %v799
        %v4376 = vpop.f32.mrf.mxu0
        %v4377 = vadd.f32 0.0, %v4376
        %v4378 = vpop.f32.mrf.mxu0
        %v4379 = vadd.f32 0.0, %v4378
        %4380 = vmatmul.bf16.gmra.mxu0 %v803
        %v4381 = vpop.f32.mrf.mxu0
        %v4382 = vadd.f32 0.0, %v4381
        %v4383 = vpop.f32.mrf.mxu0
        %v4384 = vadd.f32 0.0, %v4383
        %4385 = vmatmul.bf16.gmra.mxu0 %v807
        %v4386 = vpop.f32.mrf.mxu0
        %v4387 = vadd.f32 0.0, %v4386
        %v4388 = vpop.f32.mrf.mxu0
        %v4389 = vadd.f32 0.0, %v4388
        %4390 = vmatmul.bf16.gmra.mxu0 %v811
        %v4391 = vpop.f32.mrf.mxu0
        %v4392 = vadd.f32 0.0, %v4391
        %v4393 = vpop.f32.mrf.mxu0
        %v4394 = vadd.f32 0.0, %v4393
        %4395 = vmatmul.bf16.gmra.mxu0 %v815
        %v4396 = vpop.f32.mrf.mxu0
        %v4397 = vadd.f32 0.0, %v4396
        %v4398 = vpop.f32.mrf.mxu0
        %v4399 = vadd.f32 0.0, %v4398
        %4400 = vmatmul.bf16.gmra.mxu0 %v819
        %v4401 = vpop.f32.mrf.mxu0
        %v4402 = vadd.f32 0.0, %v4401
        %v4403 = vpop.f32.mrf.mxu0
        %v4404 = vadd.f32 0.0, %v4403
        %4405 = vmatmul.bf16.gmra.mxu0 %v823
        %v4406 = vpop.f32.mrf.mxu0
        %v4407 = vadd.f32 0.0, %v4406
        %v4408 = vpop.f32.mrf.mxu0
        %4409 = vdwg.mxu0
        %4410 = vmatpush.bf16.msra.mxu0 %v1917
        %4411 = vmatpush.bf16.msra.mxu0 %v1908
        %4412 = vmatpush.bf16.msra.mxu0 %v1899
        %4413 = vmatpush.bf16.msra.mxu0 %v1890
        %4414 = vmatpush.bf16.msra.mxu0 %v1881
        %4415 = vmatpush.bf16.msra.mxu0 %v1872
        %4416 = vmatpush.bf16.msra.mxu0 %v1863
        %4417 = vmatpush.bf16.msra.mxu0 %v1854
        %4418 = vmatmul.bf16.gmra.mxu0 %v776
        %v4419 = vpop.f32.mrf.mxu0
        %v4420 = vpop.f32.mrf.mxu0
        %4421 = vmatmul.bf16.gmra.mxu0 %v780
        %v4422 = vpop.f32.mrf.mxu0
        %v4423 = vadd.f32 %v4352, %v4422
        %v4424 = vpop.f32.mrf.mxu0
        %v4425 = vadd.f32 %v4354, %v4424
        %4426 = vmatmul.bf16.gmra.mxu0 %v784
        %v4427 = vpop.f32.mrf.mxu0
        %v4428 = vadd.f32 %v4357, %v4427
        %v4429 = vpop.f32.mrf.mxu0
        %v4430 = vadd.f32 %v4359, %v4429
        %4431 = vmatmul.bf16.gmra.mxu0 %v788
        %v4432 = vpop.f32.mrf.mxu0
        %v4433 = vadd.f32 %v4362, %v4432
        %v4434 = vpop.f32.mrf.mxu0
        %v4435 = vadd.f32 %v4364, %v4434
        %4436 = vmatmul.bf16.gmra.mxu0 %v792
        %v4437 = vpop.f32.mrf.mxu0
        %v4438 = vadd.f32 %v4367, %v4437
        %v4439 = vpop.f32.mrf.mxu0
        %v4440 = vadd.f32 %v4369, %v4439
        %4441 = vmatmul.bf16.gmra.mxu0 %v796
        %v4442 = vpop.f32.mrf.mxu0
        %v4443 = vadd.f32 %v4372, %v4442
        %v4444 = vpop.f32.mrf.mxu0
        %v4445 = vadd.f32 %v4374, %v4444
        %4446 = vmatmul.bf16.gmra.mxu0 %v800
        %v4447 = vpop.f32.mrf.mxu0
        %v4448 = vadd.f32 %v4377, %v4447
        %v4449 = vpop.f32.mrf.mxu0
        %v4450 = vadd.f32 %v4379, %v4449
        %4451 = vmatmul.bf16.gmra.mxu0 %v804
        %v4452 = vpop.f32.mrf.mxu0
        %v4453 = vadd.f32 %v4382, %v4452
        %v4454 = vpop.f32.mrf.mxu0
        %v4455 = vadd.f32 %v4384, %v4454
        %4456 = vmatmul.bf16.gmra.mxu0 %v808
        %v4457 = vpop.f32.mrf.mxu0
        %v4458 = vadd.f32 %v4387, %v4457
        %v4459 = vpop.f32.mrf.mxu0
        %v4460 = vadd.f32 %v4389, %v4459
        %4461 = vmatmul.bf16.gmra.mxu0 %v812
        %v4462 = vpop.f32.mrf.mxu0
        %v4463 = vadd.f32 %v4392, %v4462
        %v4464 = vpop.f32.mrf.mxu0
        %v4465 = vadd.f32 %v4394, %v4464
        %4466 = vmatmul.bf16.gmra.mxu0 %v816
        %v4467 = vpop.f32.mrf.mxu0
        %v4468 = vadd.f32 %v4397, %v4467
        %v4469 = vpop.f32.mrf.mxu0
        %v4470 = vadd.f32 %v4399, %v4469
        %4471 = vmatmul.bf16.gmra.mxu0 %v820
        %v4472 = vpop.f32.mrf.mxu0
        %v4473 = vadd.f32 %v4402, %v4472
        %v4474 = vpop.f32.mrf.mxu0
        %v4475 = vadd.f32 %v4404, %v4474
        %4476 = vmatmul.bf16.gmra.mxu0 %v824
        %v4477 = vpop.f32.mrf.mxu0
        %v4478 = vadd.f32 %v4407, %v4477
        %v4479 = vpop.f32.mrf.mxu0
        %4480 = vdwg.mxu0
        %4481 = vmatpush.bf16.msra.mxu0 %v1989
        %4482 = vmatpush.bf16.msra.mxu0 %v1980
        %4483 = vmatpush.bf16.msra.mxu0 %v1971
        %4484 = vmatpush.bf16.msra.mxu0 %v1962
        %4485 = vmatpush.bf16.msra.mxu0 %v1953
        %4486 = vmatpush.bf16.msra.mxu0 %v1944
        %4487 = vmatpush.bf16.msra.mxu0 %v1935
        %4488 = vmatpush.bf16.msra.mxu0 %v1926
        %4489 = vmatmul.bf16.gmra.mxu0 %v777
        %v4490 = vpop.f32.mrf.mxu0
        %v4491 = vpop.f32.mrf.mxu0
        %4492 = vmatmul.bf16.gmra.mxu0 %v781
        %v4493 = vpop.f32.mrf.mxu0
        %v4494 = vadd.f32 %v4423, %v4493
        %v4495 = vpop.f32.mrf.mxu0
        %v4496 = vadd.f32 %v4425, %v4495
        %4497 = vmatmul.bf16.gmra.mxu0 %v785
        %v4498 = vpop.f32.mrf.mxu0
        %v4499 = vadd.f32 %v4428, %v4498
        %v4500 = vpop.f32.mrf.mxu0
        %v4501 = vadd.f32 %v4430, %v4500
        %4502 = vmatmul.bf16.gmra.mxu0 %v789
        %v4503 = vpop.f32.mrf.mxu0
        %v4504 = vadd.f32 %v4433, %v4503
        %v4505 = vpop.f32.mrf.mxu0
        %v4506 = vadd.f32 %v4435, %v4505
        %4507 = vmatmul.bf16.gmra.mxu0 %v793
        %v4508 = vpop.f32.mrf.mxu0
        %v4509 = vadd.f32 %v4438, %v4508
        %v4510 = vpop.f32.mrf.mxu0
        %v4511 = vadd.f32 %v4440, %v4510
        %4512 = vmatmul.bf16.gmra.mxu0 %v797
        %v4513 = vpop.f32.mrf.mxu0
        %v4514 = vadd.f32 %v4443, %v4513
        %v4515 = vpop.f32.mrf.mxu0
        %v4516 = vadd.f32 %v4445, %v4515
        %4517 = vmatmul.bf16.gmra.mxu0 %v801
        %v4518 = vpop.f32.mrf.mxu0
        %v4519 = vadd.f32 %v4448, %v4518
        %v4520 = vpop.f32.mrf.mxu0
        %v4521 = vadd.f32 %v4450, %v4520
        %4522 = vmatmul.bf16.gmra.mxu0 %v805
        %v4523 = vpop.f32.mrf.mxu0
        %v4524 = vadd.f32 %v4453, %v4523
        %v4525 = vpop.f32.mrf.mxu0
        %v4526 = vadd.f32 %v4455, %v4525
        %4527 = vmatmul.bf16.gmra.mxu0 %v809
        %v4528 = vpop.f32.mrf.mxu0
        %v4529 = vadd.f32 %v4458, %v4528
        %v4530 = vpop.f32.mrf.mxu0
        %v4531 = vadd.f32 %v4460, %v4530
        %4532 = vmatmul.bf16.gmra.mxu0 %v813
        %v4533 = vpop.f32.mrf.mxu0
        %v4534 = vadd.f32 %v4463, %v4533
        %v4535 = vpop.f32.mrf.mxu0
        %v4536 = vadd.f32 %v4465, %v4535
        %4537 = vmatmul.bf16.gmra.mxu0 %v817
        %v4538 = vpop.f32.mrf.mxu0
        %v4539 = vadd.f32 %v4468, %v4538
        %v4540 = vpop.f32.mrf.mxu0
        %v4541 = vadd.f32 %v4470, %v4540
        %4542 = vmatmul.bf16.gmra.mxu0 %v821
        %v4543 = vpop.f32.mrf.mxu0
        %v4544 = vadd.f32 %v4473, %v4543
        %v4545 = vpop.f32.mrf.mxu0
        %v4546 = vadd.f32 %v4475, %v4545
        %4547 = vmatmul.bf16.gmra.mxu0 %v825
        %v4548 = vpop.f32.mrf.mxu0
        %v4549 = vadd.f32 %v4478, %v4548
        %v4550 = vpop.f32.mrf.mxu0
        %4551 = vdwg.mxu0
        %4552 = vmatpush.bf16.msra.mxu0 %v2061
        %4553 = vmatpush.bf16.msra.mxu0 %v2052
        %4554 = vmatpush.bf16.msra.mxu0 %v2043
        %4555 = vmatpush.bf16.msra.mxu0 %v2034
        %4556 = vmatpush.bf16.msra.mxu0 %v2025
        %4557 = vmatpush.bf16.msra.mxu0 %v2016
        %4558 = vmatpush.bf16.msra.mxu0 %v2007
        %4559 = vmatpush.bf16.msra.mxu0 %v1998
        %4560 = vmatmul.bf16.gmra.mxu0 %v778
        %v4561 = vpop.f32.mrf.mxu0
        %v4562 = vpop.f32.mrf.mxu0
        %4563 = vmatmul.bf16.gmra.mxu0 %v782
        %v4564 = vpop.f32.mrf.mxu0
        %v4565 = vadd.f32 %v4494, %v4564
        %v4566 = vpop.f32.mrf.mxu0
        %v4567 = vadd.f32 %v4496, %v4566
        %4568 = vmatmul.bf16.gmra.mxu0 %v786
        %v4569 = vpop.f32.mrf.mxu0
        %v4570 = vadd.f32 %v4499, %v4569
        %v4571 = vpop.f32.mrf.mxu0
        %v4572 = vadd.f32 %v4501, %v4571
        %4573 = vmatmul.bf16.gmra.mxu0 %v790
        %v4574 = vpop.f32.mrf.mxu0
        %v4575 = vadd.f32 %v4504, %v4574
        %v4576 = vpop.f32.mrf.mxu0
        %v4577 = vadd.f32 %v4506, %v4576
        %4578 = vmatmul.bf16.gmra.mxu0 %v794
        %v4579 = vpop.f32.mrf.mxu0
        %v4580 = vadd.f32 %v4509, %v4579
        %v4581 = vpop.f32.mrf.mxu0
        %v4582 = vadd.f32 %v4511, %v4581
        %4583 = vmatmul.bf16.gmra.mxu0 %v798
        %v4584 = vpop.f32.mrf.mxu0
        %v4585 = vadd.f32 %v4514, %v4584
        %v4586 = vpop.f32.mrf.mxu0
        %v4587 = vadd.f32 %v4516, %v4586
        %4588 = vmatmul.bf16.gmra.mxu0 %v802
        %v4589 = vpop.f32.mrf.mxu0
        %v4590 = vadd.f32 %v4519, %v4589
        %v4591 = vpop.f32.mrf.mxu0
        %v4592 = vadd.f32 %v4521, %v4591
        %4593 = vmatmul.bf16.gmra.mxu0 %v806
        %v4594 = vpop.f32.mrf.mxu0
        %v4595 = vadd.f32 %v4524, %v4594
        %v4596 = vpop.f32.mrf.mxu0
        %v4597 = vadd.f32 %v4526, %v4596
        %4598 = vmatmul.bf16.gmra.mxu0 %v810
        %v4599 = vpop.f32.mrf.mxu0
        %v4600 = vadd.f32 %v4529, %v4599
        %v4601 = vpop.f32.mrf.mxu0
        %v4602 = vadd.f32 %v4531, %v4601
        %4603 = vmatmul.bf16.gmra.mxu0 %v814
        %v4604 = vpop.f32.mrf.mxu0
        %v4605 = vadd.f32 %v4534, %v4604
        %v4606 = vpop.f32.mrf.mxu0
        %v4607 = vadd.f32 %v4536, %v4606
        %4608 = vmatmul.bf16.gmra.mxu0 %v818
        %v4609 = vpop.f32.mrf.mxu0
        %v4610 = vadd.f32 %v4539, %v4609
        %v4611 = vpop.f32.mrf.mxu0
        %v4612 = vadd.f32 %v4541, %v4611
        %4613 = vmatmul.bf16.gmra.mxu0 %v822
        %v4614 = vpop.f32.mrf.mxu0
        %v4615 = vadd.f32 %v4544, %v4614
        %v4616 = vpop.f32.mrf.mxu0
        %v4617 = vadd.f32 %v4546, %v4616
        %4618 = vmatmul.bf16.gmra.mxu0 %v826
        %v4619 = vpop.f32.mrf.mxu0
        %v4620 = vadd.f32 %v4549, %v4619
        %v4621 = vpop.f32.mrf.mxu0
        %4622 = vdwg.mxu0
        %4623 = vmatpush.bf16.msra.mxu0 %v1846
        %4624 = vmatpush.bf16.msra.mxu0 %v1837
        %4625 = vmatpush.bf16.msra.mxu0 %v1828
        %4626 = vmatpush.bf16.msra.mxu0 %v1819
        %4627 = vmatpush.bf16.msra.mxu0 %v1810
        %4628 = vmatpush.bf16.msra.mxu0 %v1801
        %4629 = vmatpush.bf16.msra.mxu0 %v1792
        %4630 = vmatpush.bf16.msra.mxu0 %v1783
        %4631 = vmatmul.bf16.gmra.mxu0 %v775
        %v4632 = vpop.f32.mrf.mxu0
        %v4633 = vpop.f32.mrf.mxu0
        %4634 = vmatmul.bf16.gmra.mxu0 %v779
        %v4635 = vpop.f32.mrf.mxu0
        %v4636 = vadd.f32 0.0, %v4635
        %v4637 = vpop.f32.mrf.mxu0
        %v4638 = vadd.f32 0.0, %v4637
        %4639 = vmatmul.bf16.gmra.mxu0 %v783
        %v4640 = vpop.f32.mrf.mxu0
        %v4641 = vadd.f32 0.0, %v4640
        %v4642 = vpop.f32.mrf.mxu0
        %v4643 = vadd.f32 0.0, %v4642
        %4644 = vmatmul.bf16.gmra.mxu0 %v787
        %v4645 = vpop.f32.mrf.mxu0
        %v4646 = vadd.f32 0.0, %v4645
        %v4647 = vpop.f32.mrf.mxu0
        %v4648 = vadd.f32 0.0, %v4647
        %4649 = vmatmul.bf16.gmra.mxu0 %v791
        %v4650 = vpop.f32.mrf.mxu0
        %v4651 = vadd.f32 0.0, %v4650
        %v4652 = vpop.f32.mrf.mxu0
        %v4653 = vadd.f32 0.0, %v4652
        %4654 = vmatmul.bf16.gmra.mxu0 %v795
        %v4655 = vpop.f32.mrf.mxu0
        %v4656 = vadd.f32 0.0, %v4655
        %v4657 = vpop.f32.mrf.mxu0
        %v4658 = vadd.f32 0.0, %v4657
        %4659 = vmatmul.bf16.gmra.mxu0 %v799
        %v4660 = vpop.f32.mrf.mxu0
        %v4661 = vadd.f32 0.0, %v4660
        %v4662 = vpop.f32.mrf.mxu0
        %v4663 = vadd.f32 0.0, %v4662
        %4664 = vmatmul.bf16.gmra.mxu0 %v803
        %v4665 = vpop.f32.mrf.mxu0
        %v4666 = vadd.f32 0.0, %v4665
        %v4667 = vpop.f32.mrf.mxu0
        %v4668 = vadd.f32 0.0, %v4667
        %4669 = vmatmul.bf16.gmra.mxu0 %v807
        %v4670 = vpop.f32.mrf.mxu0
        %v4671 = vadd.f32 0.0, %v4670
        %v4672 = vpop.f32.mrf.mxu0
        %v4673 = vadd.f32 0.0, %v4672
        %4674 = vmatmul.bf16.gmra.mxu0 %v811
        %v4675 = vpop.f32.mrf.mxu0
        %v4676 = vadd.f32 0.0, %v4675
        %v4677 = vpop.f32.mrf.mxu0
        %v4678 = vadd.f32 0.0, %v4677
        %4679 = vmatmul.bf16.gmra.mxu0 %v815
        %v4680 = vpop.f32.mrf.mxu0
        %v4681 = vadd.f32 0.0, %v4680
        %v4682 = vpop.f32.mrf.mxu0
        %v4683 = vadd.f32 0.0, %v4682
        %4684 = vmatmul.bf16.gmra.mxu0 %v819
        %v4685 = vpop.f32.mrf.mxu0
        %v4686 = vadd.f32 0.0, %v4685
        %v4687 = vpop.f32.mrf.mxu0
        %v4688 = vadd.f32 0.0, %v4687
        %4689 = vmatmul.bf16.gmra.mxu0 %v823
        %v4690 = vpop.f32.mrf.mxu0
        %v4691 = vadd.f32 0.0, %v4690
        %v4692 = vpop.f32.mrf.mxu0
        %4693 = vdwg.mxu0
        %4694 = vmatpush.bf16.msra.mxu0 %v1918
        %4695 = vmatpush.bf16.msra.mxu0 %v1909
        %4696 = vmatpush.bf16.msra.mxu0 %v1900
        %4697 = vmatpush.bf16.msra.mxu0 %v1891
        %4698 = vmatpush.bf16.msra.mxu0 %v1882
        %4699 = vmatpush.bf16.msra.mxu0 %v1873
        %4700 = vmatpush.bf16.msra.mxu0 %v1864
        %4701 = vmatpush.bf16.msra.mxu0 %v1855
        %4702 = vmatmul.bf16.gmra.mxu0 %v776
        %v4703 = vpop.f32.mrf.mxu0
        %v4704 = vpop.f32.mrf.mxu0
        %4705 = vmatmul.bf16.gmra.mxu0 %v780
        %v4706 = vpop.f32.mrf.mxu0
        %v4707 = vadd.f32 %v4636, %v4706
        %v4708 = vpop.f32.mrf.mxu0
        %v4709 = vadd.f32 %v4638, %v4708
        %4710 = vmatmul.bf16.gmra.mxu0 %v784
        %v4711 = vpop.f32.mrf.mxu0
        %v4712 = vadd.f32 %v4641, %v4711
        %v4713 = vpop.f32.mrf.mxu0
        %v4714 = vadd.f32 %v4643, %v4713
        %4715 = vmatmul.bf16.gmra.mxu0 %v788
        %v4716 = vpop.f32.mrf.mxu0
        %v4717 = vadd.f32 %v4646, %v4716
        %v4718 = vpop.f32.mrf.mxu0
        %v4719 = vadd.f32 %v4648, %v4718
        %4720 = vmatmul.bf16.gmra.mxu0 %v792
        %v4721 = vpop.f32.mrf.mxu0
        %v4722 = vadd.f32 %v4651, %v4721
        %v4723 = vpop.f32.mrf.mxu0
        %v4724 = vadd.f32 %v4653, %v4723
        %4725 = vmatmul.bf16.gmra.mxu0 %v796
        %v4726 = vpop.f32.mrf.mxu0
        %v4727 = vadd.f32 %v4656, %v4726
        %v4728 = vpop.f32.mrf.mxu0
        %v4729 = vadd.f32 %v4658, %v4728
        %4730 = vmatmul.bf16.gmra.mxu0 %v800
        %v4731 = vpop.f32.mrf.mxu0
        %v4732 = vadd.f32 %v4661, %v4731
        %v4733 = vpop.f32.mrf.mxu0
        %v4734 = vadd.f32 %v4663, %v4733
        %4735 = vmatmul.bf16.gmra.mxu0 %v804
        %v4736 = vpop.f32.mrf.mxu0
        %v4737 = vadd.f32 %v4666, %v4736
        %v4738 = vpop.f32.mrf.mxu0
        %v4739 = vadd.f32 %v4668, %v4738
        %4740 = vmatmul.bf16.gmra.mxu0 %v808
        %v4741 = vpop.f32.mrf.mxu0
        %v4742 = vadd.f32 %v4671, %v4741
        %v4743 = vpop.f32.mrf.mxu0
        %v4744 = vadd.f32 %v4673, %v4743
        %4745 = vmatmul.bf16.gmra.mxu0 %v812
        %v4746 = vpop.f32.mrf.mxu0
        %v4747 = vadd.f32 %v4676, %v4746
        %v4748 = vpop.f32.mrf.mxu0
        %v4749 = vadd.f32 %v4678, %v4748
        %4750 = vmatmul.bf16.gmra.mxu0 %v816
        %v4751 = vpop.f32.mrf.mxu0
        %v4752 = vadd.f32 %v4681, %v4751
        %v4753 = vpop.f32.mrf.mxu0
        %v4754 = vadd.f32 %v4683, %v4753
        %4755 = vmatmul.bf16.gmra.mxu0 %v820
        %v4756 = vpop.f32.mrf.mxu0
        %v4757 = vadd.f32 %v4686, %v4756
        %v4758 = vpop.f32.mrf.mxu0
        %v4759 = vadd.f32 %v4688, %v4758
        %4760 = vmatmul.bf16.gmra.mxu0 %v824
        %v4761 = vpop.f32.mrf.mxu0
        %v4762 = vadd.f32 %v4691, %v4761
        %v4763 = vpop.f32.mrf.mxu0
        %4764 = vdwg.mxu0
        %4765 = vmatpush.bf16.msra.mxu0 %v1990
        %4766 = vmatpush.bf16.msra.mxu0 %v1981
        %4767 = vmatpush.bf16.msra.mxu0 %v1972
        %4768 = vmatpush.bf16.msra.mxu0 %v1963
        %4769 = vmatpush.bf16.msra.mxu0 %v1954
        %4770 = vmatpush.bf16.msra.mxu0 %v1945
        %4771 = vmatpush.bf16.msra.mxu0 %v1936
        %4772 = vmatpush.bf16.msra.mxu0 %v1927
        %4773 = vmatmul.bf16.gmra.mxu0 %v777
        %v4774 = vpop.f32.mrf.mxu0
        %v4775 = vpop.f32.mrf.mxu0
        %4776 = vmatmul.bf16.gmra.mxu0 %v781
        %v4777 = vpop.f32.mrf.mxu0
        %v4778 = vadd.f32 %v4707, %v4777
        %v4779 = vpop.f32.mrf.mxu0
        %v4780 = vadd.f32 %v4709, %v4779
        %4781 = vmatmul.bf16.gmra.mxu0 %v785
        %v4782 = vpop.f32.mrf.mxu0
        %v4783 = vadd.f32 %v4712, %v4782
        %v4784 = vpop.f32.mrf.mxu0
        %v4785 = vadd.f32 %v4714, %v4784
        %4786 = vmatmul.bf16.gmra.mxu0 %v789
        %v4787 = vpop.f32.mrf.mxu0
        %v4788 = vadd.f32 %v4717, %v4787
        %v4789 = vpop.f32.mrf.mxu0
        %v4790 = vadd.f32 %v4719, %v4789
        %4791 = vmatmul.bf16.gmra.mxu0 %v793
        %v4792 = vpop.f32.mrf.mxu0
        %v4793 = vadd.f32 %v4722, %v4792
        %v4794 = vpop.f32.mrf.mxu0
        %v4795 = vadd.f32 %v4724, %v4794
        %4796 = vmatmul.bf16.gmra.mxu0 %v797
        %v4797 = vpop.f32.mrf.mxu0
        %v4798 = vadd.f32 %v4727, %v4797
        %v4799 = vpop.f32.mrf.mxu0
        %v4800 = vadd.f32 %v4729, %v4799
        %4801 = vmatmul.bf16.gmra.mxu0 %v801
        %v4802 = vpop.f32.mrf.mxu0
        %v4803 = vadd.f32 %v4732, %v4802
        %v4804 = vpop.f32.mrf.mxu0
        %v4805 = vadd.f32 %v4734, %v4804
        %4806 = vmatmul.bf16.gmra.mxu0 %v805
        %v4807 = vpop.f32.mrf.mxu0
        %v4808 = vadd.f32 %v4737, %v4807
        %v4809 = vpop.f32.mrf.mxu0
        %v4810 = vadd.f32 %v4739, %v4809
        %4811 = vmatmul.bf16.gmra.mxu0 %v809
        %v4812 = vpop.f32.mrf.mxu0
        %v4813 = vadd.f32 %v4742, %v4812
        %v4814 = vpop.f32.mrf.mxu0
        %v4815 = vadd.f32 %v4744, %v4814
        %4816 = vmatmul.bf16.gmra.mxu0 %v813
        %v4817 = vpop.f32.mrf.mxu0
        %v4818 = vadd.f32 %v4747, %v4817
        %v4819 = vpop.f32.mrf.mxu0
        %v4820 = vadd.f32 %v4749, %v4819
        %4821 = vmatmul.bf16.gmra.mxu0 %v817
        %v4822 = vpop.f32.mrf.mxu0
        %v4823 = vadd.f32 %v4752, %v4822
        %v4824 = vpop.f32.mrf.mxu0
        %v4825 = vadd.f32 %v4754, %v4824
        %4826 = vmatmul.bf16.gmra.mxu0 %v821
        %v4827 = vpop.f32.mrf.mxu0
        %v4828 = vadd.f32 %v4757, %v4827
        %v4829 = vpop.f32.mrf.mxu0
        %v4830 = vadd.f32 %v4759, %v4829
        %4831 = vmatmul.bf16.gmra.mxu0 %v825
        %v4832 = vpop.f32.mrf.mxu0
        %v4833 = vadd.f32 %v4762, %v4832
        %v4834 = vpop.f32.mrf.mxu0
        %4835 = vdwg.mxu0
        %4836 = vmatpush.bf16.msra.mxu0 %v2062
        %4837 = vmatpush.bf16.msra.mxu0 %v2053
        %4838 = vmatpush.bf16.msra.mxu0 %v2044
        %4839 = vmatpush.bf16.msra.mxu0 %v2035
        %4840 = vmatpush.bf16.msra.mxu0 %v2026
        %4841 = vmatpush.bf16.msra.mxu0 %v2017
        %4842 = vmatpush.bf16.msra.mxu0 %v2008
        %4843 = vmatpush.bf16.msra.mxu0 %v1999
        %4844 = vmatmul.bf16.gmra.mxu0 %v778
        %v4845 = vpop.f32.mrf.mxu0
        %v4846 = vpop.f32.mrf.mxu0
        %4847 = vmatmul.bf16.gmra.mxu0 %v782
        %v4848 = vpop.f32.mrf.mxu0
        %v4849 = vadd.f32 %v4778, %v4848
        %v4850 = vpop.f32.mrf.mxu0
        %v4851 = vadd.f32 %v4780, %v4850
        %4852 = vmatmul.bf16.gmra.mxu0 %v786
        %v4853 = vpop.f32.mrf.mxu0
        %v4854 = vadd.f32 %v4783, %v4853
        %v4855 = vpop.f32.mrf.mxu0
        %v4856 = vadd.f32 %v4785, %v4855
        %4857 = vmatmul.bf16.gmra.mxu0 %v790
        %v4858 = vpop.f32.mrf.mxu0
        %v4859 = vadd.f32 %v4788, %v4858
        %v4860 = vpop.f32.mrf.mxu0
        %v4861 = vadd.f32 %v4790, %v4860
        %4862 = vmatmul.bf16.gmra.mxu0 %v794
        %v4863 = vpop.f32.mrf.mxu0
        %v4864 = vadd.f32 %v4793, %v4863
        %v4865 = vpop.f32.mrf.mxu0
        %v4866 = vadd.f32 %v4795, %v4865
        %4867 = vmatmul.bf16.gmra.mxu0 %v798
        %v4868 = vpop.f32.mrf.mxu0
        %v4869 = vadd.f32 %v4798, %v4868
        %v4870 = vpop.f32.mrf.mxu0
        %v4871 = vadd.f32 %v4800, %v4870
        %4872 = vmatmul.bf16.gmra.mxu0 %v802
        %v4873 = vpop.f32.mrf.mxu0
        %v4874 = vadd.f32 %v4803, %v4873
        %v4875 = vpop.f32.mrf.mxu0
        %v4876 = vadd.f32 %v4805, %v4875
        %4877 = vmatmul.bf16.gmra.mxu0 %v806
        %v4878 = vpop.f32.mrf.mxu0
        %v4879 = vadd.f32 %v4808, %v4878
        %v4880 = vpop.f32.mrf.mxu0
        %v4881 = vadd.f32 %v4810, %v4880
        %4882 = vmatmul.bf16.gmra.mxu0 %v810
        %v4883 = vpop.f32.mrf.mxu0
        %v4884 = vadd.f32 %v4813, %v4883
        %v4885 = vpop.f32.mrf.mxu0
        %v4886 = vadd.f32 %v4815, %v4885
        %4887 = vmatmul.bf16.gmra.mxu0 %v814
        %v4888 = vpop.f32.mrf.mxu0
        %v4889 = vadd.f32 %v4818, %v4888
        %v4890 = vpop.f32.mrf.mxu0
        %v4891 = vadd.f32 %v4820, %v4890
        %4892 = vmatmul.bf16.gmra.mxu0 %v818
        %v4893 = vpop.f32.mrf.mxu0
        %v4894 = vadd.f32 %v4823, %v4893
        %v4895 = vpop.f32.mrf.mxu0
        %v4896 = vadd.f32 %v4825, %v4895
        %4897 = vmatmul.bf16.gmra.mxu0 %v822
        %v4898 = vpop.f32.mrf.mxu0
        %v4899 = vadd.f32 %v4828, %v4898
        %v4900 = vpop.f32.mrf.mxu0
        %v4901 = vadd.f32 %v4830, %v4900
        %4902 = vmatmul.bf16.gmra.mxu0 %v826
        %v4903 = vpop.f32.mrf.mxu0
        %v4904 = vadd.f32 %v4833, %v4903
        %v4905 = vpop.f32.mrf.mxu0
        %4906 = vdwg.mxu0
        %vm4930 = vcmask 1046528
        %v4931 = vrot.slane %v2858, 1
        %v4932 = vrot.slane %v2860, 1
        %v4933 = vsel %vm4930, %v4931, %v4932
        %v4934 = vrot.slane %v2863, 1
        %v4935 = vsel %vm4930, %v4932, %v4934
        %v4936 = vrot.slane %v2865, 1
        %v4937 = vsel %vm4930, %v4934, %v4936
        %v4938 = vrot.slane %v2868, 1
        %v4939 = vsel %vm4930, %v4936, %v4938
        %v4940 = vrot.slane %v2870, 1
        %v4941 = vsel %vm4930, %v4938, %v4940
        %v4942 = vrot.slane %v2873, 1
        %v4943 = vsel %vm4930, %v4940, %v4942
        %v4944 = vrot.slane %v2875, 1
        %v4945 = vsel %vm4930, %v4942, %v4944
        %v4946 = vrot.slane %v2878, 1
        %v4947 = vsel %vm4930, %v4944, %v4946
        %v4948 = vrot.slane %v2880, 1
        %v4949 = vsel %vm4930, %v4946, %v4948
        %v4950 = vrot.slane %v2883, 1
        %v4951 = vsel %vm4930, %v4948, %v4950
        %v4952 = vrot.slane %v2885, 1
        %v4953 = vsel %vm4930, %v4950, %v4952
        %v4954 = vrot.slane %v2888, 1
        %v4955 = vsel %vm4930, %v4952, %v4954
        %v4956 = vrot.slane %v2890, 1
        %v4957 = vsel %vm4930, %v4954, %v4956
        %v4958 = vrot.slane %v2893, 1
        %v4959 = vsel %vm4930, %v4956, %v4958
        %v4960 = vrot.slane %v2895, 1
        %v4961 = vsel %vm4930, %v4958, %v4960
        %v4962 = vrot.slane %v2898, 1
        %v4963 = vsel %vm4930, %v4960, %v4962
        %v4964 = vrot.slane %v2900, 1
        %v4965 = vsel %vm4930, %v4962, %v4964
        %v4966 = vrot.slane %v2903, 1
        %v4967 = vsel %vm4930, %v4964, %v4966
        %v4968 = vrot.slane %v2905, 1
        %v4969 = vsel %vm4930, %v4966, %v4968
        %v4970 = vrot.slane %v2908, 1
        %v4971 = vsel %vm4930, %v4968, %v4970
        %v4972 = vrot.slane %v2910, 1
        %v4973 = vsel %vm4930, %v4970, %v4972
        %v4974 = vrot.slane %v2913, 1
        %v4975 = vsel %vm4930, %v4972, %v4974
        %v4999 = vadd.f32 %v2574, %v4933
        %v5000 = vadd.f32 %v2576, %v4935
        %v5001 = vadd.f32 %v2579, %v4937
        %v5002 = vadd.f32 %v2581, %v4939
        %v5003 = vadd.f32 %v2584, %v4941
        %v5004 = vadd.f32 %v2586, %v4943
        %v5005 = vadd.f32 %v2589, %v4945
        %v5006 = vadd.f32 %v2591, %v4947
        %v5007 = vadd.f32 %v2594, %v4949
        %v5008 = vadd.f32 %v2596, %v4951
        %v5009 = vadd.f32 %v2599, %v4953
        %v5010 = vadd.f32 %v2601, %v4955
        %v5011 = vadd.f32 %v2604, %v4957
        %v5012 = vadd.f32 %v2606, %v4959
        %v5013 = vadd.f32 %v2609, %v4961
        %v5014 = vadd.f32 %v2611, %v4963
        %v5015 = vadd.f32 %v2614, %v4965
        %v5016 = vadd.f32 %v2616, %v4967
        %v5017 = vadd.f32 %v2619, %v4969
        %v5018 = vadd.f32 %v2621, %v4971
        %v5019 = vadd.f32 %v2624, %v4973
        %v5020 = vadd.f32 %v2626, %v4975
        %v5021 = vadd.f32 %v2629, %v4974
        %v5022 = vadd.f32 %v3142, %v3427
        %v5023 = vadd.f32 %v3144, %v3430
        %v5024 = vadd.f32 %v3147, %v3432
        %v5025 = vadd.f32 %v3149, %v3435
        %v5026 = vadd.f32 %v3152, %v3437
        %v5027 = vadd.f32 %v3154, %v3440
        %v5028 = vadd.f32 %v3157, %v3442
        %v5029 = vadd.f32 %v3159, %v3445
        %v5030 = vadd.f32 %v3162, %v3447
        %v5031 = vadd.f32 %v3164, %v3450
        %v5032 = vadd.f32 %v3167, %v3452
        %v5033 = vadd.f32 %v3169, %v3455
        %v5034 = vadd.f32 %v3172, %v3457
        %v5035 = vadd.f32 %v3174, %v3460
        %v5036 = vadd.f32 %v3177, %v3462
        %v5037 = vadd.f32 %v3179, %v3465
        %v5038 = vadd.f32 %v3182, %v3467
        %v5039 = vadd.f32 %v3184, %v3470
        %v5040 = vadd.f32 %v3187, %v3472
        %v5041 = vadd.f32 %v3189, %v3475
        %v5042 = vadd.f32 %v3192, %v3477
        %v5043 = vadd.f32 %v3194, %v3480
        %v5044 = vadd.f32 %v3197, %v3482
        %v5068 = vrot.slane %v3995, 1
        %v5069 = vrot.slane %v3998, 1
        %v5070 = vsel %vm4930, %v5068, %v5069
        %v5071 = vrot.slane %v4000, 1
        %v5072 = vsel %vm4930, %v5069, %v5071
        %v5073 = vrot.slane %v4003, 1
        %v5074 = vsel %vm4930, %v5071, %v5073
        %v5075 = vrot.slane %v4005, 1
        %v5076 = vsel %vm4930, %v5073, %v5075
        %v5077 = vrot.slane %v4008, 1
        %v5078 = vsel %vm4930, %v5075, %v5077
        %v5079 = vrot.slane %v4010, 1
        %v5080 = vsel %vm4930, %v5077, %v5079
        %v5081 = vrot.slane %v4013, 1
        %v5082 = vsel %vm4930, %v5079, %v5081
        %v5083 = vrot.slane %v4015, 1
        %v5084 = vsel %vm4930, %v5081, %v5083
        %v5085 = vrot.slane %v4018, 1
        %v5086 = vsel %vm4930, %v5083, %v5085
        %v5087 = vrot.slane %v4020, 1
        %v5088 = vsel %vm4930, %v5085, %v5087
        %v5089 = vrot.slane %v4023, 1
        %v5090 = vsel %vm4930, %v5087, %v5089
        %v5091 = vrot.slane %v4025, 1
        %v5092 = vsel %vm4930, %v5089, %v5091
        %v5093 = vrot.slane %v4028, 1
        %v5094 = vsel %vm4930, %v5091, %v5093
        %v5095 = vrot.slane %v4030, 1
        %v5096 = vsel %vm4930, %v5093, %v5095
        %v5097 = vrot.slane %v4033, 1
        %v5098 = vsel %vm4930, %v5095, %v5097
        %v5099 = vrot.slane %v4035, 1
        %v5100 = vsel %vm4930, %v5097, %v5099
        %v5101 = vrot.slane %v4038, 1
        %v5102 = vsel %vm4930, %v5099, %v5101
        %v5103 = vrot.slane %v4040, 1
        %v5104 = vsel %vm4930, %v5101, %v5103
        %v5105 = vrot.slane %v4043, 1
        %v5106 = vsel %vm4930, %v5103, %v5105
        %v5107 = vrot.slane %v4045, 1
        %v5108 = vsel %vm4930, %v5105, %v5107
        %v5109 = vrot.slane %v4048, 1
        %v5110 = vsel %vm4930, %v5107, %v5109
        %v5111 = vrot.slane %v4050, 1
        %v5112 = vsel %vm4930, %v5109, %v5111
        %v5136 = vadd.f32 %v3711, %v5070
        %v5137 = vadd.f32 %v3714, %v5072
        %v5138 = vadd.f32 %v3716, %v5074
        %v5139 = vadd.f32 %v3719, %v5076
        %v5140 = vadd.f32 %v3721, %v5078
        %v5141 = vadd.f32 %v3724, %v5080
        %v5142 = vadd.f32 %v3726, %v5082
        %v5143 = vadd.f32 %v3729, %v5084
        %v5144 = vadd.f32 %v3731, %v5086
        %v5145 = vadd.f32 %v3734, %v5088
        %v5146 = vadd.f32 %v3736, %v5090
        %v5147 = vadd.f32 %v3739, %v5092
        %v5148 = vadd.f32 %v3741, %v5094
        %v5149 = vadd.f32 %v3744, %v5096
        %v5150 = vadd.f32 %v3746, %v5098
        %v5151 = vadd.f32 %v3749, %v5100
        %v5152 = vadd.f32 %v3751, %v5102
        %v5153 = vadd.f32 %v3754, %v5104
        %v5154 = vadd.f32 %v3756, %v5106
        %v5155 = vadd.f32 %v3759, %v5108
        %v5156 = vadd.f32 %v3761, %v5110
        %v5157 = vadd.f32 %v3764, %v5112
        %v5158 = vadd.f32 %v3766, %v5111
        %v5182 = vrot.slane %v4565, 1
        %v5183 = vrot.slane %v4567, 1
        %v5184 = vsel %vm4930, %v5182, %v5183
        %v5185 = vrot.slane %v4570, 1
        %v5186 = vsel %vm4930, %v5183, %v5185
        %v5187 = vrot.slane %v4572, 1
        %v5188 = vsel %vm4930, %v5185, %v5187
        %v5189 = vrot.slane %v4575, 1
        %v5190 = vsel %vm4930, %v5187, %v5189
        %v5191 = vrot.slane %v4577, 1
        %v5192 = vsel %vm4930, %v5189, %v5191
        %v5193 = vrot.slane %v4580, 1
        %v5194 = vsel %vm4930, %v5191, %v5193
        %v5195 = vrot.slane %v4582, 1
        %v5196 = vsel %vm4930, %v5193, %v5195
        %v5197 = vrot.slane %v4585, 1
        %v5198 = vsel %vm4930, %v5195, %v5197
        %v5199 = vrot.slane %v4587, 1
        %v5200 = vsel %vm4930, %v5197, %v5199
        %v5201 = vrot.slane %v4590, 1
        %v5202 = vsel %vm4930, %v5199, %v5201
        %v5203 = vrot.slane %v4592, 1
        %v5204 = vsel %vm4930, %v5201, %v5203
        %v5205 = vrot.slane %v4595, 1
        %v5206 = vsel %vm4930, %v5203, %v5205
        %v5207 = vrot.slane %v4597, 1
        %v5208 = vsel %vm4930, %v5205, %v5207
        %v5209 = vrot.slane %v4600, 1
        %v5210 = vsel %vm4930, %v5207, %v5209
        %v5211 = vrot.slane %v4602, 1
        %v5212 = vsel %vm4930, %v5209, %v5211
        %v5213 = vrot.slane %v4605, 1
        %v5214 = vsel %vm4930, %v5211, %v5213
        %v5215 = vrot.slane %v4607, 1
        %v5216 = vsel %vm4930, %v5213, %v5215
        %v5217 = vrot.slane %v4610, 1
        %v5218 = vsel %vm4930, %v5215, %v5217
        %v5219 = vrot.slane %v4612, 1
        %v5220 = vsel %vm4930, %v5217, %v5219
        %v5221 = vrot.slane %v4615, 1
        %v5222 = vsel %vm4930, %v5219, %v5221
        %v5223 = vrot.slane %v4617, 1
        %v5224 = vsel %vm4930, %v5221, %v5223
        %v5225 = vrot.slane %v4620, 1
        %v5226 = vsel %vm4930, %v5223, %v5225
        %v5250 = vadd.f32 %v4281, %v5184
        %v5251 = vadd.f32 %v4283, %v5186
        %v5252 = vadd.f32 %v4286, %v5188
        %v5253 = vadd.f32 %v4288, %v5190
        %v5254 = vadd.f32 %v4291, %v5192
        %v5255 = vadd.f32 %v4293, %v5194
        %v5256 = vadd.f32 %v4296, %v5196
        %v5257 = vadd.f32 %v4298, %v5198
        %v5258 = vadd.f32 %v4301, %v5200
        %v5259 = vadd.f32 %v4303, %v5202
        %v5260 = vadd.f32 %v4306, %v5204
        %v5261 = vadd.f32 %v4308, %v5206
        %v5262 = vadd.f32 %v4311, %v5208
        %v5263 = vadd.f32 %v4313, %v5210
        %v5264 = vadd.f32 %v4316, %v5212
        %v5265 = vadd.f32 %v4318, %v5214
        %v5266 = vadd.f32 %v4321, %v5216
        %v5267 = vadd.f32 %v4323, %v5218
        %v5268 = vadd.f32 %v4326, %v5220
        %v5269 = vadd.f32 %v4328, %v5222
        %v5270 = vadd.f32 %v4331, %v5224
        %v5271 = vadd.f32 %v4333, %v5226
        %v5272 = vadd.f32 %v4336, %v5225
        %vm5296 = vcmask 1045504
        %v5297 = vrot.slane %v5022, 2
        %v5298 = vrot.slane %v5023, 2
        %v5299 = vsel %vm5296, %v5297, %v5298
        %v5300 = vrot.slane %v5024, 2
        %v5301 = vsel %vm5296, %v5298, %v5300
        %v5302 = vrot.slane %v5025, 2
        %v5303 = vsel %vm5296, %v5300, %v5302
        %v5304 = vrot.slane %v5026, 2
        %v5305 = vsel %vm5296, %v5302, %v5304
        %v5306 = vrot.slane %v5027, 2
        %v5307 = vsel %vm5296, %v5304, %v5306
        %v5308 = vrot.slane %v5028, 2
        %v5309 = vsel %vm5296, %v5306, %v5308
        %v5310 = vrot.slane %v5029, 2
        %v5311 = vsel %vm5296, %v5308, %v5310
        %v5312 = vrot.slane %v5030, 2
        %v5313 = vsel %vm5296, %v5310, %v5312
        %v5314 = vrot.slane %v5031, 2
        %v5315 = vsel %vm5296, %v5312, %v5314
        %v5316 = vrot.slane %v5032, 2
        %v5317 = vsel %vm5296, %v5314, %v5316
        %v5318 = vrot.slane %v5033, 2
        %v5319 = vsel %vm5296, %v5316, %v5318
        %v5320 = vrot.slane %v5034, 2
        %v5321 = vsel %vm5296, %v5318, %v5320
        %v5322 = vrot.slane %v5035, 2
        %v5323 = vsel %vm5296, %v5320, %v5322
        %v5324 = vrot.slane %v5036, 2
        %v5325 = vsel %vm5296, %v5322, %v5324
        %v5326 = vrot.slane %v5037, 2
        %v5327 = vsel %vm5296, %v5324, %v5326
        %v5328 = vrot.slane %v5038, 2
        %v5329 = vsel %vm5296, %v5326, %v5328
        %v5330 = vrot.slane %v5039, 2
        %v5331 = vsel %vm5296, %v5328, %v5330
        %v5332 = vrot.slane %v5040, 2
        %v5333 = vsel %vm5296, %v5330, %v5332
        %v5334 = vrot.slane %v5041, 2
        %v5335 = vsel %vm5296, %v5332, %v5334
        %v5336 = vrot.slane %v5042, 2
        %v5337 = vsel %vm5296, %v5334, %v5336
        %v5338 = vrot.slane %v5043, 2
        %v5339 = vsel %vm5296, %v5336, %v5338
        %v5340 = vrot.slane %v5044, 2
        %v5341 = vsel %vm5296, %v5338, %v5340
        %v5365 = vadd.f32 %v4999, %v5299
        %v5366 = vadd.f32 %v5000, %v5301
        %v5367 = vadd.f32 %v5001, %v5303
        %v5368 = vadd.f32 %v5002, %v5305
        %v5369 = vadd.f32 %v5003, %v5307
        %v5370 = vadd.f32 %v5004, %v5309
        %v5371 = vadd.f32 %v5005, %v5311
        %v5372 = vadd.f32 %v5006, %v5313
        %v5373 = vadd.f32 %v5007, %v5315
        %v5374 = vadd.f32 %v5008, %v5317
        %v5375 = vadd.f32 %v5009, %v5319
        %v5376 = vadd.f32 %v5010, %v5321
        %v5377 = vadd.f32 %v5011, %v5323
        %v5378 = vadd.f32 %v5012, %v5325
        %v5379 = vadd.f32 %v5013, %v5327
        %v5380 = vadd.f32 %v5014, %v5329
        %v5381 = vadd.f32 %v5015, %v5331
        %v5382 = vadd.f32 %v5016, %v5333
        %v5383 = vadd.f32 %v5017, %v5335
        %v5384 = vadd.f32 %v5018, %v5337
        %v5385 = vadd.f32 %v5019, %v5339
        %v5386 = vadd.f32 %v5020, %v5341
        %v5387 = vadd.f32 %v5021, %v5340
        %v5411 = vrot.slane %v5250, 1
        %v5412 = vrot.slane %v5251, 1
        %v5413 = vsel %vm4930, %v5411, %v5412
        %v5414 = vrot.slane %v5252, 1
        %v5415 = vsel %vm4930, %v5412, %v5414
        %v5416 = vrot.slane %v5253, 1
        %v5417 = vsel %vm4930, %v5414, %v5416
        %v5418 = vrot.slane %v5254, 1
        %v5419 = vsel %vm4930, %v5416, %v5418
        %v5420 = vrot.slane %v5255, 1
        %v5421 = vsel %vm4930, %v5418, %v5420
        %v5422 = vrot.slane %v5256, 1
        %v5423 = vsel %vm4930, %v5420, %v5422
        %v5424 = vrot.slane %v5257, 1
        %v5425 = vsel %vm4930, %v5422, %v5424
        %v5426 = vrot.slane %v5258, 1
        %v5427 = vsel %vm4930, %v5424, %v5426
        %v5428 = vrot.slane %v5259, 1
        %v5429 = vsel %vm4930, %v5426, %v5428
        %v5430 = vrot.slane %v5260, 1
        %v5431 = vsel %vm4930, %v5428, %v5430
        %v5432 = vrot.slane %v5261, 1
        %v5433 = vsel %vm4930, %v5430, %v5432
        %v5434 = vrot.slane %v5262, 1
        %v5435 = vsel %vm4930, %v5432, %v5434
        %v5436 = vrot.slane %v5263, 1
        %v5437 = vsel %vm4930, %v5434, %v5436
        %v5438 = vrot.slane %v5264, 1
        %v5439 = vsel %vm4930, %v5436, %v5438
        %v5440 = vrot.slane %v5265, 1
        %v5441 = vsel %vm4930, %v5438, %v5440
        %v5442 = vrot.slane %v5266, 1
        %v5443 = vsel %vm4930, %v5440, %v5442
        %v5444 = vrot.slane %v5267, 1
        %v5445 = vsel %vm4930, %v5442, %v5444
        %v5446 = vrot.slane %v5268, 1
        %v5447 = vsel %vm4930, %v5444, %v5446
        %v5448 = vrot.slane %v5269, 1
        %v5449 = vsel %vm4930, %v5446, %v5448
        %v5450 = vrot.slane %v5270, 1
        %v5451 = vsel %vm4930, %v5448, %v5450
        %v5452 = vrot.slane %v5271, 1
        %v5453 = vsel %vm4930, %v5450, %v5452
        %v5454 = vrot.slane %v5272, 1
        %v5455 = vsel %vm4930, %v5452, %v5454
        %v5479 = vadd.f32 %v5136, %v5413
        %v5480 = vadd.f32 %v5137, %v5415
        %v5481 = vadd.f32 %v5138, %v5417
        %v5482 = vadd.f32 %v5139, %v5419
        %v5483 = vadd.f32 %v5140, %v5421
        %v5484 = vadd.f32 %v5141, %v5423
        %v5485 = vadd.f32 %v5142, %v5425
        %v5486 = vadd.f32 %v5143, %v5427
        %v5487 = vadd.f32 %v5144, %v5429
        %v5488 = vadd.f32 %v5145, %v5431
        %v5489 = vadd.f32 %v5146, %v5433
        %v5490 = vadd.f32 %v5147, %v5435
        %v5491 = vadd.f32 %v5148, %v5437
        %v5492 = vadd.f32 %v5149, %v5439
        %v5493 = vadd.f32 %v5150, %v5441
        %v5494 = vadd.f32 %v5151, %v5443
        %v5495 = vadd.f32 %v5152, %v5445
        %v5496 = vadd.f32 %v5153, %v5447
        %v5497 = vadd.f32 %v5154, %v5449
        %v5498 = vadd.f32 %v5155, %v5451
        %v5499 = vadd.f32 %v5156, %v5453
        %v5500 = vadd.f32 %v5157, %v5455
        %v5501 = vadd.f32 %v5158, %v5454
        %vm5525 = vcmask 1044480
        %v5526 = vrot.slane %v5479, 3
        %v5527 = vrot.slane %v5480, 3
        %v5528 = vsel %vm5525, %v5526, %v5527
        %v5529 = vrot.slane %v5481, 3
        %v5530 = vsel %vm5525, %v5527, %v5529
        %v5531 = vrot.slane %v5482, 3
        %v5532 = vsel %vm5525, %v5529, %v5531
        %v5533 = vrot.slane %v5483, 3
        %v5534 = vsel %vm5525, %v5531, %v5533
        %v5535 = vrot.slane %v5484, 3
        %v5536 = vsel %vm5525, %v5533, %v5535
        %v5537 = vrot.slane %v5485, 3
        %v5538 = vsel %vm5525, %v5535, %v5537
        %v5539 = vrot.slane %v5486, 3
        %v5540 = vsel %vm5525, %v5537, %v5539
        %v5541 = vrot.slane %v5487, 3
        %v5542 = vsel %vm5525, %v5539, %v5541
        %v5543 = vrot.slane %v5488, 3
        %v5544 = vsel %vm5525, %v5541, %v5543
        %v5545 = vrot.slane %v5489, 3
        %v5546 = vsel %vm5525, %v5543, %v5545
        %v5547 = vrot.slane %v5490, 3
        %v5548 = vsel %vm5525, %v5545, %v5547
        %v5549 = vrot.slane %v5491, 3
        %v5550 = vsel %vm5525, %v5547, %v5549
        %v5551 = vrot.slane %v5492, 3
        %v5552 = vsel %vm5525, %v5549, %v5551
        %v5553 = vrot.slane %v5493, 3
        %v5554 = vsel %vm5525, %v5551, %v5553
        %v5555 = vrot.slane %v5494, 3
        %v5556 = vsel %vm5525, %v5553, %v5555
        %v5557 = vrot.slane %v5495, 3
        %v5558 = vsel %vm5525, %v5555, %v5557
        %v5559 = vrot.slane %v5496, 3
        %v5560 = vsel %vm5525, %v5557, %v5559
        %v5561 = vrot.slane %v5497, 3
        %v5562 = vsel %vm5525, %v5559, %v5561
        %v5563 = vrot.slane %v5498, 3
        %v5564 = vsel %vm5525, %v5561, %v5563
        %v5565 = vrot.slane %v5499, 3
        %v5566 = vsel %vm5525, %v5563, %v5565
        %v5567 = vrot.slane %v5500, 3
        %v5568 = vsel %vm5525, %v5565, %v5567
        %v5569 = vrot.slane %v5501, 3
        %v5570 = vsel %vm5525, %v5567, %v5569
        %v5594 = vadd.f32 %v5365, %v5528
        %v5595 = vadd.f32 %v5366, %v5530
        %v5596 = vadd.f32 %v5367, %v5532
        %v5597 = vadd.f32 %v5368, %v5534
        %v5598 = vadd.f32 %v5369, %v5536
        %v5599 = vadd.f32 %v5370, %v5538
        %v5600 = vadd.f32 %v5371, %v5540
        %v5601 = vadd.f32 %v5372, %v5542
        %v5602 = vadd.f32 %v5373, %v5544
        %v5603 = vadd.f32 %v5374, %v5546
        %v5604 = vadd.f32 %v5375, %v5548
        %v5605 = vadd.f32 %v5376, %v5550
        %v5606 = vadd.f32 %v5377, %v5552
        %v5607 = vadd.f32 %v5378, %v5554
        %v5608 = vadd.f32 %v5379, %v5556
        %v5609 = vadd.f32 %v5380, %v5558
        %v5610 = vadd.f32 %v5381, %v5560
        %v5611 = vadd.f32 %v5382, %v5562
        %v5612 = vadd.f32 %v5383, %v5564
        %v5613 = vadd.f32 %v5384, %v5566
        %v5614 = vadd.f32 %v5385, %v5568
        %v5615 = vadd.f32 %v5386, %v5570
        %v5616 = vadd.f32 %v5387, %v5569
        %vm5640 = vcmask 1041408
        %v5641 = vrot.slane %v4849, 6
        %v5642 = vrot.slane %v4851, 6
        %v5643 = vsel %vm5640, %v5641, %v5642
        %v5644 = vrot.slane %v4854, 6
        %v5645 = vsel %vm5640, %v5642, %v5644
        %v5646 = vrot.slane %v4856, 6
        %v5647 = vsel %vm5640, %v5644, %v5646
        %v5648 = vrot.slane %v4859, 6
        %v5649 = vsel %vm5640, %v5646, %v5648
        %v5650 = vrot.slane %v4861, 6
        %v5651 = vsel %vm5640, %v5648, %v5650
        %v5652 = vrot.slane %v4864, 6
        %v5653 = vsel %vm5640, %v5650, %v5652
        %v5654 = vrot.slane %v4866, 6
        %v5655 = vsel %vm5640, %v5652, %v5654
        %v5656 = vrot.slane %v4869, 6
        %v5657 = vsel %vm5640, %v5654, %v5656
        %v5658 = vrot.slane %v4871, 6
        %v5659 = vsel %vm5640, %v5656, %v5658
        %v5660 = vrot.slane %v4874, 6
        %v5661 = vsel %vm5640, %v5658, %v5660
        %v5662 = vrot.slane %v4876, 6
        %v5663 = vsel %vm5640, %v5660, %v5662
        %v5664 = vrot.slane %v4879, 6
        %v5665 = vsel %vm5640, %v5662, %v5664
        %v5666 = vrot.slane %v4881, 6
        %v5667 = vsel %vm5640, %v5664, %v5666
        %v5668 = vrot.slane %v4884, 6
        %v5669 = vsel %vm5640, %v5666, %v5668
        %v5670 = vrot.slane %v4886, 6
        %v5671 = vsel %vm5640, %v5668, %v5670
        %v5672 = vrot.slane %v4889, 6
        %v5673 = vsel %vm5640, %v5670, %v5672
        %v5674 = vrot.slane %v4891, 6
        %v5675 = vsel %vm5640, %v5672, %v5674
        %v5676 = vrot.slane %v4894, 6
        %v5677 = vsel %vm5640, %v5674, %v5676
        %v5678 = vrot.slane %v4896, 6
        %v5679 = vsel %vm5640, %v5676, %v5678
        %v5680 = vrot.slane %v4899, 6
        %v5681 = vsel %vm5640, %v5678, %v5680
        %v5682 = vrot.slane %v4901, 6
        %v5683 = vsel %vm5640, %v5680, %v5682
        %v5684 = vrot.slane %v4904, 6
        %v5685 = vsel %vm5640, %v5682, %v5684
        %v5709 = vadd.f32 %v5594, %v5643
        %v5710 = vadd.f32 %v5595, %v5645
        %v5711 = vadd.f32 %v5596, %v5647
        %v5712 = vadd.f32 %v5597, %v5649
        %v5713 = vadd.f32 %v5598, %v5651
        %v5714 = vadd.f32 %v5599, %v5653
        %v5715 = vadd.f32 %v5600, %v5655
        %v5716 = vadd.f32 %v5601, %v5657
        %v5717 = vadd.f32 %v5602, %v5659
        %v5718 = vadd.f32 %v5603, %v5661
        %v5719 = vadd.f32 %v5604, %v5663
        %v5720 = vadd.f32 %v5605, %v5665
        %v5721 = vadd.f32 %v5606, %v5667
        %v5722 = vadd.f32 %v5607, %v5669
        %v5723 = vadd.f32 %v5608, %v5671
        %v5724 = vadd.f32 %v5609, %v5673
        %v5725 = vadd.f32 %v5610, %v5675
        %v5726 = vadd.f32 %v5611, %v5677
        %v5727 = vadd.f32 %v5612, %v5679
        %v5728 = vadd.f32 %v5613, %v5681
        %v5729 = vadd.f32 %v5614, %v5683
        %v5730 = vadd.f32 %v5615, %v5685
        %v5731 = vadd.f32 %v5616, %v5684
        %v5755 = vrot.slane %v5709, 1
        %v5756 = vrot.slane %v5710, 1
        %v5757 = vsel %vm4930, %v5755, %v5756
        %v5758 = vrot.slane %v5711, 1
        %v5759 = vsel %vm4930, %v5756, %v5758
        %v5760 = vrot.slane %v5712, 1
        %v5761 = vsel %vm4930, %v5758, %v5760
        %v5762 = vrot.slane %v5713, 1
        %v5763 = vsel %vm4930, %v5760, %v5762
        %v5764 = vrot.slane %v5714, 1
        %v5765 = vsel %vm4930, %v5762, %v5764
        %v5766 = vrot.slane %v5715, 1
        %v5767 = vsel %vm4930, %v5764, %v5766
        %v5768 = vrot.slane %v5716, 1
        %v5769 = vsel %vm4930, %v5766, %v5768
        %v5770 = vrot.slane %v5717, 1
        %v5771 = vsel %vm4930, %v5768, %v5770
        %v5772 = vrot.slane %v5718, 1
        %v5773 = vsel %vm4930, %v5770, %v5772
        %v5774 = vrot.slane %v5719, 1
        %v5775 = vsel %vm4930, %v5772, %v5774
        %v5776 = vrot.slane %v5720, 1
        %v5777 = vsel %vm4930, %v5774, %v5776
        %v5778 = vrot.slane %v5721, 1
        %v5779 = vsel %vm4930, %v5776, %v5778
        %v5780 = vrot.slane %v5722, 1
        %v5781 = vsel %vm4930, %v5778, %v5780
        %v5782 = vrot.slane %v5723, 1
        %v5783 = vsel %vm4930, %v5780, %v5782
        %v5784 = vrot.slane %v5724, 1
        %v5785 = vsel %vm4930, %v5782, %v5784
        %v5786 = vrot.slane %v5725, 1
        %v5787 = vsel %vm4930, %v5784, %v5786
        %v5788 = vrot.slane %v5726, 1
        %v5789 = vsel %vm4930, %v5786, %v5788
        %v5790 = vrot.slane %v5727, 1
        %v5791 = vsel %vm4930, %v5788, %v5790
        %v5792 = vrot.slane %v5728, 1
        %v5793 = vsel %vm4930, %v5790, %v5792
        %v5794 = vrot.slane %v5729, 1
        %v5795 = vsel %vm4930, %v5792, %v5794
        %v5796 = vrot.slane %v5730, 1
        %v5797 = vsel %vm4930, %v5794, %v5796
        %v5798 = vrot.slane %v5731, 1
        %v5799 = vsel %vm4930, %v5796, %v5798
        %v5823 = vmax.f32 %v5709, %v5757
        %v5824 = vmax.f32 %v5710, %v5759
        %v5825 = vmax.f32 %v5711, %v5761
        %v5826 = vmax.f32 %v5712, %v5763
        %v5827 = vmax.f32 %v5713, %v5765
        %v5828 = vmax.f32 %v5714, %v5767
        %v5829 = vmax.f32 %v5715, %v5769
        %v5830 = vmax.f32 %v5716, %v5771
        %v5831 = vmax.f32 %v5717, %v5773
        %v5832 = vmax.f32 %v5718, %v5775
        %v5833 = vmax.f32 %v5719, %v5777
        %v5834 = vmax.f32 %v5720, %v5779
        %v5835 = vmax.f32 %v5721, %v5781
        %v5836 = vmax.f32 %v5722, %v5783
        %v5837 = vmax.f32 %v5723, %v5785
        %v5838 = vmax.f32 %v5724, %v5787
        %v5839 = vmax.f32 %v5725, %v5789
        %v5840 = vmax.f32 %v5726, %v5791
        %v5841 = vmax.f32 %v5727, %v5793
        %v5842 = vmax.f32 %v5728, %v5795
        %v5843 = vmax.f32 %v5729, %v5797
        %v5844 = vmax.f32 %v5730, %v5799
        %v5845 = vmax.f32 %v5731, %v5798
        %v5868 = vrot.slane %v5824, 2
        %v5869 = vrot.slane %v5825, 2
        %v5870 = vsel %vm5296, %v5868, %v5869
        %v5871 = vrot.slane %v5826, 2
        %v5872 = vsel %vm5296, %v5869, %v5871
        %v5873 = vrot.slane %v5827, 2
        %v5874 = vsel %vm5296, %v5871, %v5873
        %v5875 = vrot.slane %v5828, 2
        %v5876 = vsel %vm5296, %v5873, %v5875
        %v5877 = vrot.slane %v5829, 2
        %v5878 = vsel %vm5296, %v5875, %v5877
        %v5879 = vrot.slane %v5830, 2
        %v5880 = vsel %vm5296, %v5877, %v5879
        %v5881 = vrot.slane %v5831, 2
        %v5882 = vsel %vm5296, %v5879, %v5881
        %v5883 = vrot.slane %v5832, 2
        %v5884 = vsel %vm5296, %v5881, %v5883
        %v5885 = vrot.slane %v5833, 2
        %v5886 = vsel %vm5296, %v5883, %v5885
        %v5887 = vrot.slane %v5834, 2
        %v5888 = vsel %vm5296, %v5885, %v5887
        %v5889 = vrot.slane %v5835, 2
        %v5890 = vsel %vm5296, %v5887, %v5889
        %v5891 = vrot.slane %v5836, 2
        %v5892 = vsel %vm5296, %v5889, %v5891
        %v5893 = vrot.slane %v5837, 2
        %v5894 = vsel %vm5296, %v5891, %v5893
        %v5895 = vrot.slane %v5838, 2
        %v5896 = vsel %vm5296, %v5893, %v5895
        %v5897 = vrot.slane %v5839, 2
        %v5898 = vsel %vm5296, %v5895, %v5897
        %v5899 = vrot.slane %v5840, 2
        %v5900 = vsel %vm5296, %v5897, %v5899
        %v5901 = vrot.slane %v5841, 2
        %v5902 = vsel %vm5296, %v5899, %v5901
        %v5903 = vrot.slane %v5842, 2
        %v5904 = vsel %vm5296, %v5901, %v5903
        %v5905 = vrot.slane %v5843, 2
        %v5906 = vsel %vm5296, %v5903, %v5905
        %v5907 = vrot.slane %v5844, 2
        %v5908 = vsel %vm5296, %v5905, %v5907
        %v5909 = vrot.slane %v5845, 2
        %v5910 = vsel %vm5296, %v5907, %v5909
        %v5932 = vmax.f32 %v5823, %v5870
        %v5933 = vmax.f32 %v5824, %v5872
        %v5934 = vmax.f32 %v5825, %v5874
        %v5935 = vmax.f32 %v5826, %v5876
        %v5936 = vmax.f32 %v5827, %v5878
        %v5937 = vmax.f32 %v5828, %v5880
        %v5938 = vmax.f32 %v5829, %v5882
        %v5939 = vmax.f32 %v5830, %v5884
        %v5940 = vmax.f32 %v5831, %v5886
        %v5941 = vmax.f32 %v5832, %v5888
        %v5942 = vmax.f32 %v5833, %v5890
        %v5943 = vmax.f32 %v5834, %v5892
        %v5944 = vmax.f32 %v5835, %v5894
        %v5945 = vmax.f32 %v5836, %v5896
        %v5946 = vmax.f32 %v5837, %v5898
        %v5947 = vmax.f32 %v5838, %v5900
        %v5948 = vmax.f32 %v5839, %v5902
        %v5949 = vmax.f32 %v5840, %v5904
        %v5950 = vmax.f32 %v5841, %v5906
        %v5951 = vmax.f32 %v5842, %v5908
        %v5952 = vmax.f32 %v5843, %v5910
        %v5953 = vld [vmem:[%s2] sm:$0x1]
        %v5955 = vperm.slane %v5953, 0
        %v5957 = vadd.f32 %v5932, %v5955
        %v5958 = vadd.f32 %v5933, %v5955
        %v5959 = vadd.f32 %v5934, %v5955
        %v5960 = vadd.f32 %v5935, %v5955
        %v5961 = vadd.f32 %v5936, %v5955
        %v5962 = vadd.f32 %v5937, %v5955
        %v5963 = vadd.f32 %v5938, %v5955
        %v5964 = vadd.f32 %v5939, %v5955
        %v5965 = vadd.f32 %v5940, %v5955
        %v5966 = vadd.f32 %v5941, %v5955
        %v5967 = vadd.f32 %v5942, %v5955
        %v5968 = vadd.f32 %v5943, %v5955
        %v5969 = vadd.f32 %v5944, %v5955
        %v5970 = vadd.f32 %v5945, %v5955
        %v5971 = vadd.f32 %v5946, %v5955
        %v5972 = vadd.f32 %v5947, %v5955
        %v5973 = vadd.f32 %v5948, %v5955
        %v5974 = vadd.f32 %v5949, %v5955
        %v5975 = vadd.f32 %v5950, %v5955
        %v5976 = vadd.f32 %v5951, %v5955
        %v5977 = vadd.f32 %v5952, %v5955
        %5978 = vst [vmem:[#allocation2] sm:$0xff] %v5957
        %5979 = vst [vmem:[#allocation2 + $0x8] sm:$0xff] %v5958
        %5980 = vst [vmem:[#allocation2 + $0x10] sm:$0xff] %v5959
        %5981 = vst [vmem:[#allocation2 + $0x18] sm:$0xff] %v5960
        %5982 = vst [vmem:[#allocation2 + $0x20] sm:$0xff] %v5961
        %5983 = vst [vmem:[#allocation2 + $0x28] sm:$0xff] %v5962
        %5984 = vst [vmem:[#allocation2 + $0x30] sm:$0xff] %v5963
        %5985 = vst [vmem:[#allocation2 + $0x38] sm:$0xff] %v5964
        %5986 = vst [vmem:[#allocation2 + $0x40] sm:$0xff] %v5965
        %5987 = vst [vmem:[#allocation2 + $0x48] sm:$0xff] %v5966
        %5988 = vst [vmem:[#allocation2 + $0x50] sm:$0xff] %v5967
        %5989 = vst [vmem:[#allocation2 + $0x58] sm:$0xff] %v5968
        %5990 = vst [vmem:[#allocation2 + $0x60] sm:$0xff] %v5969
        %5991 = vst [vmem:[#allocation2 + $0x68] sm:$0xff] %v5970
        %5992 = vst [vmem:[#allocation2 + $0x70] sm:$0xff] %v5971
        %5993 = vst [vmem:[#allocation2 + $0x78] sm:$0xff] %v5972
        %5994 = vst [vmem:[#allocation2 + $0x80] sm:$0xff] %v5973
        %5995 = vst [vmem:[#allocation2 + $0x88] sm:$0xff] %v5974
        %5996 = vst [vmem:[#allocation2 + $0x90] sm:$0xff] %v5975
        %5997 = vst [vmem:[#allocation2 + $0x98] sm:$0xff] %v5976
        %5998 = vst [vmem:[#allocation2 + $0xa0] sm:$0x7f] %v5977
        %5999 = vst [vmem:[#allocation2 + $0xa7] sm:$0xff] 0.0
        %6000 = vst [vmem:[#allocation2 + $0xaf] sm:$0xff] 0.0
        %6001 = vst [vmem:[#allocation2 + $0xb7] sm:$0xff] 0.0
        %6002 = vst [vmem:[#allocation2 + $0xbf] sm:$0xff] 0.0
        %6003 = vst [vmem:[#allocation2 + $0xc7] sm:$0xff] 0.0
        %6004 = vst [vmem:[#allocation2 + $0xcf] sm:$0xff] 0.0
        %6005 = vst [vmem:[#allocation2 + $0xd7] sm:$0xff] 0.0
        %6006 = vst [vmem:[#allocation2 + $0xdf] sm:$0xff] 0.0
        %6007 = vst [vmem:[#allocation2 + $0xe7] sm:$0xff] 0.0
        %6008 = vst [vmem:[#allocation2 + $0xef] sm:$0xff] 0.0
        %6009 = vst [vmem:[#allocation2 + $0xf7] sm:$0xff] 0.0
        %6010 = vst [vmem:[#allocation2 + $0xff] sm:$0x1] 0.0
        %v6011 = vld [vmem:[%s3] sm:$0xff]
        %v6012 = vld [vmem:[%s3 + $0x8] sm:$0xff]
        %v6013 = vld [vmem:[%s3 + $0x10] sm:$0xff]
        %v6014 = vld [vmem:[%s3 + $0x18] sm:$0xff]
        %v6015 = vld [vmem:[%s3 + $0x20] sm:$0xff]
        %v6016 = vld [vmem:[%s3 + $0x28] sm:$0xff]
        %v6017 = vld [vmem:[%s3 + $0x30] sm:$0xff]
        %v6018 = vld [vmem:[%s3 + $0x38] sm:$0xff]
        %v6019 = vld [vmem:[%s3 + $0x40] sm:$0xff]
        %v6020 = vld [vmem:[#allocation2] sm:$0xff]
        %v6021 = vld [vmem:[#allocation2 + $0x8] sm:$0xff]
        %v6022 = vld [vmem:[#allocation2 + $0x10] sm:$0xff]
        %v6023 = vld [vmem:[#allocation2 + $0x18] sm:$0xff]
        %v6024 = vld [vmem:[#allocation2 + $0x20] sm:$0xff]
        %v6025 = vld [vmem:[#allocation2 + $0x28] sm:$0xff]
        %v6026 = vld [vmem:[#allocation2 + $0x30] sm:$0xff]
        %v6027 = vld [vmem:[#allocation2 + $0x38] sm:$0xff]
        %v6028 = vld [vmem:[#allocation2 + $0x40] sm:$0xff]
        %v6029 = vld [vmem:[#allocation2 + $0x48] sm:$0xff]
        %v6030 = vld [vmem:[#allocation2 + $0x50] sm:$0xff]
        %v6031 = vld [vmem:[#allocation2 + $0x58] sm:$0xff]
        %v6032 = vld [vmem:[#allocation2 + $0x60] sm:$0xff]
        %v6033 = vld [vmem:[#allocation2 + $0x68] sm:$0xff]
        %v6034 = vld [vmem:[#allocation2 + $0x70] sm:$0xff]
        %v6035 = vld [vmem:[#allocation2 + $0x78] sm:$0xff]
        %v6036 = vld [vmem:[#allocation2 + $0x80] sm:$0xff]
        %v6037 = vld [vmem:[#allocation2 + $0x88] sm:$0xff]
        %v6038 = vld [vmem:[#allocation2 + $0x90] sm:$0xff]
        %v6039 = vld [vmem:[#allocation2 + $0x98] sm:$0xff]
        %v6040 = vld [vmem:[#allocation2 + $0xa0] sm:$0xff]
        %v6041 = vld [vmem:[#allocation2 + $0xa8] sm:$0xff]
        %v6042 = vld [vmem:[#allocation2 + $0xb0] sm:$0xff]
        %v6043 = vld [vmem:[#allocation2 + $0xb8] sm:$0xff]
        %v6044 = vld [vmem:[#allocation2 + $0xc0] sm:$0xff]
        %v6045 = vld [vmem:[#allocation2 + $0xc8] sm:$0xff]
        %v6046 = vld [vmem:[#allocation2 + $0xd0] sm:$0xff]
        %v6047 = vld [vmem:[#allocation2 + $0xd8] sm:$0xff]
        %v6048 = vld [vmem:[#allocation2 + $0xe0] sm:$0xff]
        %v6049 = vld [vmem:[#allocation2 + $0xe8] sm:$0xff]
        %v6050 = vld [vmem:[#allocation2 + $0xf0] sm:$0xff]
        %v6051 = vld [vmem:[#allocation2 + $0xf8] sm:$0xff]
        %v6052 = vpack.c.bf16 %v6021, %v6020
        %v6053 = vpack.c.bf16 %v6023, %v6022
        %v6054 = vpack.c.bf16 %v6025, %v6024
        %v6055 = vpack.c.bf16 %v6027, %v6026
        %v6056 = vpack.c.bf16 %v6029, %v6028
        %v6057 = vpack.c.bf16 %v6031, %v6030
        %v6058 = vpack.c.bf16 %v6033, %v6032
        %v6059 = vpack.c.bf16 %v6035, %v6034
        %v6060 = vpack.c.bf16 %v6037, %v6036
        %v6061 = vpack.c.bf16 %v6039, %v6038
        %v6062 = vpack.c.bf16 %v6041, %v6040
        %v6063 = vpack.c.bf16 %v6043, %v6042
        %v6064 = vpack.c.bf16 %v6045, %v6044
        %v6065 = vpack.c.bf16 %v6047, %v6046
        %v6066 = vpack.c.bf16 %v6049, %v6048
        %v6067 = vpack.c.bf16 %v6051, %v6050
        %v6077 = vunpack.c.l.b16 %v6011
        %v6078 = vunpack.c.h.b16 %v6011
        %v6079 = vunpack.c.l.b16 %v6012
        %v6080 = vunpack.c.h.b16 %v6012
        %v6081 = vunpack.c.l.b16 %v6013
        %v6082 = vunpack.c.h.b16 %v6013
        %v6083 = vunpack.c.l.b16 %v6014
        %v6084 = vunpack.c.h.b16 %v6014
        %v6085 = vunpack.c.l.b16 %v6015
        %v6086 = vunpack.c.h.b16 %v6015
        %v6087 = vunpack.c.l.b16 %v6016
        %v6088 = vunpack.c.h.b16 %v6016
        %v6089 = vunpack.c.l.b16 %v6017
        %v6090 = vunpack.c.h.b16 %v6017
        %v6091 = vunpack.c.l.b16 %v6018
        %v6092 = vunpack.c.h.b16 %v6018
        %v6093 = vunpack.c.l.b16 %v6019
        %v6094 = vunpack.c.h.b16 %v6019
        %v6095 = vpack.c.b16 %v6079, %v6077
        %v6096 = vpack.c.b16 %v6080, %v6078
        %v6097 = vpack.c.b16 %v6083, %v6081
        %v6098 = vpack.c.b16 %v6084, %v6082
        %v6099 = vpack.c.b16 %v6087, %v6085
        %v6100 = vpack.c.b16 %v6088, %v6086
        %v6101 = vpack.c.b16 %v6091, %v6089
        %v6102 = vpack.c.b16 %v6092, %v6090
        %v6103 = vpack.c.b16 %v6093, %v6093
        %v6104 = vpack.c.b16 %v6094, %v6094
        %6115 = vmatpush.bf16.msra.mxu0 %v6059
        %6116 = vmatpush.bf16.msra.mxu0 %v6058
        %6117 = vmatpush.bf16.msra.mxu0 %v6057
        %6118 = vmatpush.bf16.msra.mxu0 %v6056
        %6119 = vmatpush.bf16.msra.mxu0 %v6055
        %6120 = vmatpush.bf16.msra.mxu0 %v6054
        %6121 = vmatpush.bf16.msra.mxu0 %v6053
        %6122 = vmatpush.bf16.msra.mxu0 %v6052
        %6123 = vmatmul.bf16.gmra.mxu0 %v6095
        %v6124 = vpop.f32.mrf.mxu0
        %v6125 = vadd.f32 0.0, %v6124
        %v6126 = vpop.f32.mrf.mxu0
        %v6127 = vadd.f32 0.0, %v6126
        %6128 = vmatmul.bf16.gmra.mxu0 %v6097
        %v6129 = vpop.f32.mrf.mxu0
        %v6130 = vadd.f32 0.0, %v6129
        %v6131 = vpop.f32.mrf.mxu0
        %v6132 = vadd.f32 0.0, %v6131
        %6133 = vmatmul.bf16.gmra.mxu0 %v6099
        %v6134 = vpop.f32.mrf.mxu0
        %v6135 = vadd.f32 0.0, %v6134
        %v6136 = vpop.f32.mrf.mxu0
        %v6137 = vadd.f32 0.0, %v6136
        %6138 = vmatmul.bf16.gmra.mxu0 %v6101
        %v6139 = vpop.f32.mrf.mxu0
        %v6140 = vadd.f32 0.0, %v6139
        %v6141 = vpop.f32.mrf.mxu0
        %v6142 = vadd.f32 0.0, %v6141
        %6143 = vmatmul.bf16.gmra.mxu0 %v6103
        %v6144 = vpop.f32.mrf.mxu0
        %v6145 = vadd.f32 0.0, %v6144
        %v6146 = vpop.f32.mrf.mxu0
        %6147 = vdwg.mxu0
        %6148 = vmatpush.bf16.msra.mxu0 %v6067
        %6149 = vmatpush.bf16.msra.mxu0 %v6066
        %6150 = vmatpush.bf16.msra.mxu0 %v6065
        %6151 = vmatpush.bf16.msra.mxu0 %v6064
        %6152 = vmatpush.bf16.msra.mxu0 %v6063
        %6153 = vmatpush.bf16.msra.mxu0 %v6062
        %6154 = vmatpush.bf16.msra.mxu0 %v6061
        %6155 = vmatpush.bf16.msra.mxu0 %v6060
        %6156 = vmatmul.bf16.gmra.mxu0 %v6096
        %v6157 = vpop.f32.mrf.mxu0
        %v6158 = vadd.f32 %v6125, %v6157
        %v6159 = vpop.f32.mrf.mxu0
        %v6160 = vadd.f32 %v6127, %v6159
        %6161 = vmatmul.bf16.gmra.mxu0 %v6098
        %v6162 = vpop.f32.mrf.mxu0
        %v6163 = vadd.f32 %v6130, %v6162
        %v6164 = vpop.f32.mrf.mxu0
        %v6165 = vadd.f32 %v6132, %v6164
        %6166 = vmatmul.bf16.gmra.mxu0 %v6100
        %v6167 = vpop.f32.mrf.mxu0
        %v6168 = vadd.f32 %v6135, %v6167
        %v6169 = vpop.f32.mrf.mxu0
        %v6170 = vadd.f32 %v6137, %v6169
        %6171 = vmatmul.bf16.gmra.mxu0 %v6102
        %v6172 = vpop.f32.mrf.mxu0
        %v6173 = vadd.f32 %v6140, %v6172
        %v6174 = vpop.f32.mrf.mxu0
        %v6175 = vadd.f32 %v6142, %v6174
        %6176 = vmatmul.bf16.gmra.mxu0 %v6104
        %v6177 = vpop.f32.mrf.mxu0
        %v6178 = vadd.f32 %v6145, %v6177
        %v6179 = vpop.f32.mrf.mxu0
        %6180 = vdwg.mxu0
        %v6181 = vpack.c.bf16 %v6160, %v6158
        %v6182 = vpack.c.bf16 %v6165, %v6163
        %v6183 = vpack.c.bf16 %v6170, %v6168
        %v6184 = vpack.c.bf16 %v6175, %v6173
        %v6185 = vpack.c.bf16 %v6178, %v6178
        %v6186 = vld [vmem:[%s4] sm:$0xff]
        %v6187 = vld [vmem:[%s4 + $0x8] sm:$0xff]
        %v6188 = vld [vmem:[%s4 + $0x10] sm:$0xff]
        %v6189 = vld [vmem:[%s4 + $0x18] sm:$0xff]
        %v6190 = vld [vmem:[%s4 + $0x20] sm:$0xf]
        %v6191 = vld [vmem:[%s4 + $0x24] sm:$0xff]
        %v6192 = vld [vmem:[%s4 + $0x2c] sm:$0xff]
        %v6193 = vld [vmem:[%s4 + $0x34] sm:$0xff]
        %v6194 = vld [vmem:[%s4 + $0x3c] sm:$0xff]
        %v6195 = vld [vmem:[%s4 + $0x44] sm:$0xf]
        %v6196 = vld [vmem:[%s4 + $0x48] sm:$0xff]
        %v6197 = vld [vmem:[%s4 + $0x50] sm:$0xff]
        %v6198 = vld [vmem:[%s4 + $0x58] sm:$0xff]
        %v6199 = vld [vmem:[%s4 + $0x60] sm:$0xff]
        %v6200 = vld [vmem:[%s4 + $0x68] sm:$0xf]
        %v6201 = vld [vmem:[%s4 + $0x6c] sm:$0xff]
        %v6202 = vld [vmem:[%s4 + $0x74] sm:$0xff]
        %v6203 = vld [vmem:[%s4 + $0x7c] sm:$0xff]
        %v6204 = vld [vmem:[%s4 + $0x84] sm:$0xff]
        %v6205 = vld [vmem:[%s4 + $0x8c] sm:$0xf]
        %v6206 = vld [vmem:[%s4 + $0x90] sm:$0xff]
        %v6207 = vld [vmem:[%s4 + $0x98] sm:$0xff]
        %v6208 = vld [vmem:[%s4 + $0xa0] sm:$0xff]
        %v6209 = vld [vmem:[%s4 + $0xa8] sm:$0xff]
        %v6210 = vld [vmem:[%s4 + $0xb0] sm:$0xf]
        %v6211 = vld [vmem:[%s4 + $0xb4] sm:$0xff]
        %v6212 = vld [vmem:[%s4 + $0xbc] sm:$0xff]
        %v6213 = vld [vmem:[%s4 + $0xc4] sm:$0xff]
        %v6214 = vld [vmem:[%s4 + $0xcc] sm:$0xff]
        %v6215 = vld [vmem:[%s4 + $0xd4] sm:$0xf]
        %v6216 = vld [vmem:[%s4 + $0xd8] sm:$0xff]
        %v6217 = vld [vmem:[%s4 + $0xe0] sm:$0xff]
        %v6218 = vld [vmem:[%s4 + $0xe8] sm:$0xff]
        %v6219 = vld [vmem:[%s4 + $0xf0] sm:$0xff]
        %v6220 = vld [vmem:[%s4 + $0xf8] sm:$0xf]
        %v6221 = vld [vmem:[%s4 + $0xfc] sm:$0xff]
        %v6222 = vld [vmem:[%s4 + $0x104] sm:$0xff]
        %v6223 = vld [vmem:[%s4 + $0x10c] sm:$0xff]
        %v6224 = vld [vmem:[%s4 + $0x114] sm:$0xff]
        %v6225 = vld [vmem:[%s4 + $0x11c] sm:$0xf]
        %v6226 = vld [vmem:[%s4 + $0x120] sm:$0xff]
        %v6227 = vld [vmem:[%s4 + $0x128] sm:$0xff]
        %v6228 = vld [vmem:[%s4 + $0x130] sm:$0xff]
        %v6229 = vld [vmem:[%s4 + $0x138] sm:$0xff]
        %v6230 = vld [vmem:[%s4 + $0x140] sm:$0xf]
        %v6231 = vld [vmem:[%s4 + $0x144] sm:$0xff]
        %v6232 = vld [vmem:[%s4 + $0x14c] sm:$0xff]
        %v6233 = vld [vmem:[%s4 + $0x154] sm:$0xff]
        %v6234 = vld [vmem:[%s4 + $0x15c] sm:$0xff]
        %v6235 = vld [vmem:[%s4 + $0x164] sm:$0xf]
        %v6236 = vld [vmem:[%s4 + $0x168] sm:$0xff]
        %v6237 = vld [vmem:[%s4 + $0x170] sm:$0xff]
        %v6238 = vld [vmem:[%s4 + $0x178] sm:$0xff]
        %v6239 = vld [vmem:[%s4 + $0x180] sm:$0xff]
        %v6240 = vld [vmem:[%s4 + $0x188] sm:$0xf]
        %v6241 = vld [vmem:[%s4 + $0x18c] sm:$0xff]
        %v6242 = vld [vmem:[%s4 + $0x194] sm:$0xff]
        %v6243 = vld [vmem:[%s4 + $0x19c] sm:$0xff]
        %v6244 = vld [vmem:[%s4 + $0x1a4] sm:$0xff]
        %v6245 = vld [vmem:[%s4 + $0x1ac] sm:$0xf]
        %v6246 = vld [vmem:[%s4 + $0x1b0] sm:$0xff]
        %v6247 = vld [vmem:[%s4 + $0x1b8] sm:$0xff]
        %v6248 = vld [vmem:[%s4 + $0x1c0] sm:$0xff]
        %v6249 = vld [vmem:[%s4 + $0x1c8] sm:$0xff]
        %v6250 = vld [vmem:[%s4 + $0x1d0] sm:$0xf]
        %v6251 = vld [vmem:[%s4 + $0x1d4] sm:$0xff]
        %v6252 = vld [vmem:[%s4 + $0x1dc] sm:$0xff]
        %v6253 = vld [vmem:[%s4 + $0x1e4] sm:$0xff]
        %v6254 = vld [vmem:[%s4 + $0x1ec] sm:$0xff]
        %v6255 = vld [vmem:[%s4 + $0x1f4] sm:$0xf]
        %v6256 = vld [vmem:[%s4 + $0x1f8] sm:$0xff]
        %v6257 = vld [vmem:[%s4 + $0x200] sm:$0xff]
        %v6258 = vld [vmem:[%s4 + $0x208] sm:$0xff]
        %v6259 = vld [vmem:[%s4 + $0x210] sm:$0xff]
        %v6260 = vld [vmem:[%s4 + $0x218] sm:$0xf]
        %v6261 = vld [vmem:[%s4 + $0x21c] sm:$0xff]
        %v6262 = vld [vmem:[%s4 + $0x224] sm:$0xff]
        %v6263 = vld [vmem:[%s4 + $0x22c] sm:$0xff]
        %v6264 = vld [vmem:[%s4 + $0x234] sm:$0xff]
        %v6265 = vld [vmem:[%s4 + $0x23c] sm:$0xf]
        %v6346 = vunpack.c.l.b16 %v6186
        %v6347 = vunpack.c.h.b16 %v6186
        %v6348 = vunpack.c.l.b16 %v6187
        %v6349 = vunpack.c.h.b16 %v6187
        %v6350 = vunpack.c.l.b16 %v6188
        %v6351 = vunpack.c.h.b16 %v6188
        %v6352 = vunpack.c.l.b16 %v6189
        %v6353 = vunpack.c.h.b16 %v6189
        %v6354 = vunpack.c.l.b16 %v6190
        %v6355 = vunpack.c.l.b16 %v6191
        %v6356 = vunpack.c.h.b16 %v6191
        %v6357 = vunpack.c.l.b16 %v6192
        %v6358 = vunpack.c.h.b16 %v6192
        %v6359 = vunpack.c.l.b16 %v6193
        %v6360 = vunpack.c.h.b16 %v6193
        %v6361 = vunpack.c.l.b16 %v6194
        %v6362 = vunpack.c.h.b16 %v6194
        %v6363 = vunpack.c.l.b16 %v6195
        %v6364 = vunpack.c.l.b16 %v6196
        %v6365 = vunpack.c.h.b16 %v6196
        %v6366 = vunpack.c.l.b16 %v6197
        %v6367 = vunpack.c.h.b16 %v6197
        %v6368 = vunpack.c.l.b16 %v6198
        %v6369 = vunpack.c.h.b16 %v6198
        %v6370 = vunpack.c.l.b16 %v6199
        %v6371 = vunpack.c.h.b16 %v6199
        %v6372 = vunpack.c.l.b16 %v6200
        %v6373 = vunpack.c.l.b16 %v6201
        %v6374 = vunpack.c.h.b16 %v6201
        %v6375 = vunpack.c.l.b16 %v6202
        %v6376 = vunpack.c.h.b16 %v6202
        %v6377 = vunpack.c.l.b16 %v6203
        %v6378 = vunpack.c.h.b16 %v6203
        %v6379 = vunpack.c.l.b16 %v6204
        %v6380 = vunpack.c.h.b16 %v6204
        %v6381 = vunpack.c.l.b16 %v6205
        %v6382 = vunpack.c.l.b16 %v6206
        %v6383 = vunpack.c.h.b16 %v6206
        %v6384 = vunpack.c.l.b16 %v6207
        %v6385 = vunpack.c.h.b16 %v6207
        %v6386 = vunpack.c.l.b16 %v6208
        %v6387 = vunpack.c.h.b16 %v6208
        %v6388 = vunpack.c.l.b16 %v6209
        %v6389 = vunpack.c.h.b16 %v6209
        %v6390 = vunpack.c.l.b16 %v6210
        %v6391 = vunpack.c.l.b16 %v6211
        %v6392 = vunpack.c.h.b16 %v6211
        %v6393 = vunpack.c.l.b16 %v6212
        %v6394 = vunpack.c.h.b16 %v6212
        %v6395 = vunpack.c.l.b16 %v6213
        %v6396 = vunpack.c.h.b16 %v6213
        %v6397 = vunpack.c.l.b16 %v6214
        %v6398 = vunpack.c.h.b16 %v6214
        %v6399 = vunpack.c.l.b16 %v6215
        %v6400 = vunpack.c.l.b16 %v6216
        %v6401 = vunpack.c.h.b16 %v6216
        %v6402 = vunpack.c.l.b16 %v6217
        %v6403 = vunpack.c.h.b16 %v6217
        %v6404 = vunpack.c.l.b16 %v6218
        %v6405 = vunpack.c.h.b16 %v6218
        %v6406 = vunpack.c.l.b16 %v6219
        %v6407 = vunpack.c.h.b16 %v6219
        %v6408 = vunpack.c.l.b16 %v6220
        %v6409 = vunpack.c.l.b16 %v6221
        %v6410 = vunpack.c.h.b16 %v6221
        %v6411 = vunpack.c.l.b16 %v6222
        %v6412 = vunpack.c.h.b16 %v6222
        %v6413 = vunpack.c.l.b16 %v6223
        %v6414 = vunpack.c.h.b16 %v6223
        %v6415 = vunpack.c.l.b16 %v6224
        %v6416 = vunpack.c.h.b16 %v6224
        %v6417 = vunpack.c.l.b16 %v6225
        %v6418 = vunpack.c.l.b16 %v6226
        %v6419 = vunpack.c.h.b16 %v6226
        %v6420 = vunpack.c.l.b16 %v6227
        %v6421 = vunpack.c.h.b16 %v6227
        %v6422 = vunpack.c.l.b16 %v6228
        %v6423 = vunpack.c.h.b16 %v6228
        %v6424 = vunpack.c.l.b16 %v6229
        %v6425 = vunpack.c.h.b16 %v6229
        %v6426 = vunpack.c.l.b16 %v6230
        %v6427 = vunpack.c.l.b16 %v6231
        %v6428 = vunpack.c.h.b16 %v6231
        %v6429 = vunpack.c.l.b16 %v6232
        %v6430 = vunpack.c.h.b16 %v6232
        %v6431 = vunpack.c.l.b16 %v6233
        %v6432 = vunpack.c.h.b16 %v6233
        %v6433 = vunpack.c.l.b16 %v6234
        %v6434 = vunpack.c.h.b16 %v6234
        %v6435 = vunpack.c.l.b16 %v6235
        %v6436 = vunpack.c.l.b16 %v6236
        %v6437 = vunpack.c.h.b16 %v6236
        %v6438 = vunpack.c.l.b16 %v6237
        %v6439 = vunpack.c.h.b16 %v6237
        %v6440 = vunpack.c.l.b16 %v6238
        %v6441 = vunpack.c.h.b16 %v6238
        %v6442 = vunpack.c.l.b16 %v6239
        %v6443 = vunpack.c.h.b16 %v6239
        %v6444 = vunpack.c.l.b16 %v6240
        %v6445 = vunpack.c.l.b16 %v6241
        %v6446 = vunpack.c.h.b16 %v6241
        %v6447 = vunpack.c.l.b16 %v6242
        %v6448 = vunpack.c.h.b16 %v6242
        %v6449 = vunpack.c.l.b16 %v6243
        %v6450 = vunpack.c.h.b16 %v6243
        %v6451 = vunpack.c.l.b16 %v6244
        %v6452 = vunpack.c.h.b16 %v6244
        %v6453 = vunpack.c.l.b16 %v6245
        %v6454 = vunpack.c.l.b16 %v6246
        %v6455 = vunpack.c.h.b16 %v6246
        %v6456 = vunpack.c.l.b16 %v6247
        %v6457 = vunpack.c.h.b16 %v6247
        %v6458 = vunpack.c.l.b16 %v6248
        %v6459 = vunpack.c.h.b16 %v6248
        %v6460 = vunpack.c.l.b16 %v6249
        %v6461 = vunpack.c.h.b16 %v6249
        %v6462 = vunpack.c.l.b16 %v6250
        %v6463 = vunpack.c.l.b16 %v6251
        %v6464 = vunpack.c.h.b16 %v6251
        %v6465 = vunpack.c.l.b16 %v6252
        %v6466 = vunpack.c.h.b16 %v6252
        %v6467 = vunpack.c.l.b16 %v6253
        %v6468 = vunpack.c.h.b16 %v6253
        %v6469 = vunpack.c.l.b16 %v6254
        %v6470 = vunpack.c.h.b16 %v6254
        %v6471 = vunpack.c.l.b16 %v6255
        %v6472 = vunpack.c.l.b16 %v6256
        %v6473 = vunpack.c.h.b16 %v6256
        %v6474 = vunpack.c.l.b16 %v6257
        %v6475 = vunpack.c.h.b16 %v6257
        %v6476 = vunpack.c.l.b16 %v6258
        %v6477 = vunpack.c.h.b16 %v6258
        %v6478 = vunpack.c.l.b16 %v6259
        %v6479 = vunpack.c.h.b16 %v6259
        %v6480 = vunpack.c.l.b16 %v6260
        %v6481 = vunpack.c.l.b16 %v6261
        %v6482 = vunpack.c.h.b16 %v6261
        %v6483 = vunpack.c.l.b16 %v6262
        %v6484 = vunpack.c.h.b16 %v6262
        %v6485 = vunpack.c.l.b16 %v6263
        %v6486 = vunpack.c.h.b16 %v6263
        %v6487 = vunpack.c.l.b16 %v6264
        %v6488 = vunpack.c.h.b16 %v6264
        %v6489 = vunpack.c.l.b16 %v6265
        %v6490 = vpack.c.b16 %v6355, %v6346
        %v6491 = vpack.c.b16 %v6356, %v6347
        %v6492 = vpack.c.b16 %v6357, %v6348
        %v6493 = vpack.c.b16 %v6358, %v6349
        %v6494 = vpack.c.b16 %v6359, %v6350
        %v6495 = vpack.c.b16 %v6360, %v6351
        %v6496 = vpack.c.b16 %v6361, %v6352
        %v6497 = vpack.c.b16 %v6362, %v6353
        %v6498 = vpack.c.b16 %v6363, %v6354
        %v6499 = vpack.c.b16 %v6373, %v6364
        %v6500 = vpack.c.b16 %v6374, %v6365
        %v6501 = vpack.c.b16 %v6375, %v6366
        %v6502 = vpack.c.b16 %v6376, %v6367
        %v6503 = vpack.c.b16 %v6377, %v6368
        %v6504 = vpack.c.b16 %v6378, %v6369
        %v6505 = vpack.c.b16 %v6379, %v6370
        %v6506 = vpack.c.b16 %v6380, %v6371
        %v6507 = vpack.c.b16 %v6381, %v6372
        %v6508 = vpack.c.b16 %v6391, %v6382
        %v6509 = vpack.c.b16 %v6392, %v6383
        %v6510 = vpack.c.b16 %v6393, %v6384
        %v6511 = vpack.c.b16 %v6394, %v6385
        %v6512 = vpack.c.b16 %v6395, %v6386
        %v6513 = vpack.c.b16 %v6396, %v6387
        %v6514 = vpack.c.b16 %v6397, %v6388
        %v6515 = vpack.c.b16 %v6398, %v6389
        %v6516 = vpack.c.b16 %v6399, %v6390
        %v6517 = vpack.c.b16 %v6409, %v6400
        %v6518 = vpack.c.b16 %v6410, %v6401
        %v6519 = vpack.c.b16 %v6411, %v6402
        %v6520 = vpack.c.b16 %v6412, %v6403
        %v6521 = vpack.c.b16 %v6413, %v6404
        %v6522 = vpack.c.b16 %v6414, %v6405
        %v6523 = vpack.c.b16 %v6415, %v6406
        %v6524 = vpack.c.b16 %v6416, %v6407
        %v6525 = vpack.c.b16 %v6417, %v6408
        %v6526 = vpack.c.b16 %v6427, %v6418
        %v6527 = vpack.c.b16 %v6428, %v6419
        %v6528 = vpack.c.b16 %v6429, %v6420
        %v6529 = vpack.c.b16 %v6430, %v6421
        %v6530 = vpack.c.b16 %v6431, %v6422
        %v6531 = vpack.c.b16 %v6432, %v6423
        %v6532 = vpack.c.b16 %v6433, %v6424
        %v6533 = vpack.c.b16 %v6434, %v6425
        %v6534 = vpack.c.b16 %v6435, %v6426
        %v6535 = vpack.c.b16 %v6445, %v6436
        %v6536 = vpack.c.b16 %v6446, %v6437
        %v6537 = vpack.c.b16 %v6447, %v6438
        %v6538 = vpack.c.b16 %v6448, %v6439
        %v6539 = vpack.c.b16 %v6449, %v6440
        %v6540 = vpack.c.b16 %v6450, %v6441
        %v6541 = vpack.c.b16 %v6451, %v6442
        %v6542 = vpack.c.b16 %v6452, %v6443
        %v6543 = vpack.c.b16 %v6453, %v6444
        %v6544 = vpack.c.b16 %v6463, %v6454
        %v6545 = vpack.c.b16 %v6464, %v6455
        %v6546 = vpack.c.b16 %v6465, %v6456
        %v6547 = vpack.c.b16 %v6466, %v6457
        %v6548 = vpack.c.b16 %v6467, %v6458
        %v6549 = vpack.c.b16 %v6468, %v6459
        %v6550 = vpack.c.b16 %v6469, %v6460
        %v6551 = vpack.c.b16 %v6470, %v6461
        %v6552 = vpack.c.b16 %v6471, %v6462
        %v6553 = vpack.c.b16 %v6481, %v6472
        %v6554 = vpack.c.b16 %v6482, %v6473
        %v6555 = vpack.c.b16 %v6483, %v6474
        %v6556 = vpack.c.b16 %v6484, %v6475
        %v6557 = vpack.c.b16 %v6485, %v6476
        %v6558 = vpack.c.b16 %v6486, %v6477
        %v6559 = vpack.c.b16 %v6487, %v6478
        %v6560 = vpack.c.b16 %v6488, %v6479
        %v6561 = vpack.c.b16 %v6489, %v6480
        %6634 = vmatpush.bf16.msra.mxu0 %v6553
        %6635 = vmatpush.bf16.msra.mxu0 %v6544
        %6636 = vmatpush.bf16.msra.mxu0 %v6535
        %6637 = vmatpush.bf16.msra.mxu0 %v6526
        %6638 = vmatpush.bf16.msra.mxu0 %v6517
        %6639 = vmatpush.bf16.msra.mxu0 %v6508
        %6640 = vmatpush.bf16.msra.mxu0 %v6499
        %6641 = vmatpush.bf16.msra.mxu0 %v6490
        %6642 = vmatmul.bf16.gmra.mxu0 %v6181
        %v6643 = vpop.f32.mrf.mxu0
        %v6644 = vadd.f32 0.0, %v6643
        %v6645 = vpop.f32.mrf.mxu0
        %v6646 = vadd.f32 0.0, %v6645
        %6647 = vmatmul.bf16.gmra.mxu0 %v6182
        %v6648 = vpop.f32.mrf.mxu0
        %v6649 = vadd.f32 0.0, %v6648
        %v6650 = vpop.f32.mrf.mxu0
        %v6651 = vadd.f32 0.0, %v6650
        %6652 = vmatmul.bf16.gmra.mxu0 %v6183
        %v6653 = vpop.f32.mrf.mxu0
        %v6654 = vadd.f32 0.0, %v6653
        %v6655 = vpop.f32.mrf.mxu0
        %v6656 = vadd.f32 0.0, %v6655
        %6657 = vmatmul.bf16.gmra.mxu0 %v6184
        %v6658 = vpop.f32.mrf.mxu0
        %v6659 = vadd.f32 0.0, %v6658
        %v6660 = vpop.f32.mrf.mxu0
        %v6661 = vadd.f32 0.0, %v6660
        %6662 = vmatmul.bf16.gmra.mxu0 %v6185
        %v6663 = vpop.f32.mrf.mxu0
        %v6664 = vpop.f32.mrf.mxu0
        %6665 = vdwg.mxu0
        %6666 = vmatpush.bf16.msra.mxu0 %v6554
        %6667 = vmatpush.bf16.msra.mxu0 %v6545
        %6668 = vmatpush.bf16.msra.mxu0 %v6536
        %6669 = vmatpush.bf16.msra.mxu0 %v6527
        %6670 = vmatpush.bf16.msra.mxu0 %v6518
        %6671 = vmatpush.bf16.msra.mxu0 %v6509
        %6672 = vmatpush.bf16.msra.mxu0 %v6500
        %6673 = vmatpush.bf16.msra.mxu0 %v6491
        %6674 = vmatmul.bf16.gmra.mxu0 %v6181
        %v6675 = vpop.f32.mrf.mxu0
        %v6676 = vadd.f32 0.0, %v6675
        %v6677 = vpop.f32.mrf.mxu0
        %v6678 = vadd.f32 0.0, %v6677
        %6679 = vmatmul.bf16.gmra.mxu0 %v6182
        %v6680 = vpop.f32.mrf.mxu0
        %v6681 = vadd.f32 0.0, %v6680
        %v6682 = vpop.f32.mrf.mxu0
        %v6683 = vadd.f32 0.0, %v6682
        %6684 = vmatmul.bf16.gmra.mxu0 %v6183
        %v6685 = vpop.f32.mrf.mxu0
        %v6686 = vadd.f32 0.0, %v6685
        %v6687 = vpop.f32.mrf.mxu0
        %v6688 = vadd.f32 0.0, %v6687
        %6689 = vmatmul.bf16.gmra.mxu0 %v6184
        %v6690 = vpop.f32.mrf.mxu0
        %v6691 = vadd.f32 0.0, %v6690
        %v6692 = vpop.f32.mrf.mxu0
        %v6693 = vadd.f32 0.0, %v6692
        %6694 = vmatmul.bf16.gmra.mxu0 %v6185
        %v6695 = vpop.f32.mrf.mxu0
        %v6696 = vpop.f32.mrf.mxu0
        %6697 = vdwg.mxu0
        %6698 = vmatpush.bf16.msra.mxu0 %v6555
        %6699 = vmatpush.bf16.msra.mxu0 %v6546
        %6700 = vmatpush.bf16.msra.mxu0 %v6537
        %6701 = vmatpush.bf16.msra.mxu0 %v6528
        %6702 = vmatpush.bf16.msra.mxu0 %v6519
        %6703 = vmatpush.bf16.msra.mxu0 %v6510
        %6704 = vmatpush.bf16.msra.mxu0 %v6501
        %6705 = vmatpush.bf16.msra.mxu0 %v6492
        %6706 = vmatmul.bf16.gmra.mxu0 %v6181
        %v6707 = vpop.f32.mrf.mxu0
        %v6708 = vadd.f32 0.0, %v6707
        %v6709 = vpop.f32.mrf.mxu0
        %v6710 = vadd.f32 0.0, %v6709
        %6711 = vmatmul.bf16.gmra.mxu0 %v6182
        %v6712 = vpop.f32.mrf.mxu0
        %v6713 = vadd.f32 0.0, %v6712
        %v6714 = vpop.f32.mrf.mxu0
        %v6715 = vadd.f32 0.0, %v6714
        %6716 = vmatmul.bf16.gmra.mxu0 %v6183
        %v6717 = vpop.f32.mrf.mxu0
        %v6718 = vadd.f32 0.0, %v6717
        %v6719 = vpop.f32.mrf.mxu0
        %v6720 = vadd.f32 0.0, %v6719
        %6721 = vmatmul.bf16.gmra.mxu0 %v6184
        %v6722 = vpop.f32.mrf.mxu0
        %v6723 = vadd.f32 0.0, %v6722
        %v6724 = vpop.f32.mrf.mxu0
        %v6725 = vadd.f32 0.0, %v6724
        %6726 = vmatmul.bf16.gmra.mxu0 %v6185
        %v6727 = vpop.f32.mrf.mxu0
        %v6728 = vpop.f32.mrf.mxu0
        %6729 = vdwg.mxu0
        %6730 = vmatpush.bf16.msra.mxu0 %v6556
        %6731 = vmatpush.bf16.msra.mxu0 %v6547
        %6732 = vmatpush.bf16.msra.mxu0 %v6538
        %6733 = vmatpush.bf16.msra.mxu0 %v6529
        %6734 = vmatpush.bf16.msra.mxu0 %v6520
        %6735 = vmatpush.bf16.msra.mxu0 %v6511
        %6736 = vmatpush.bf16.msra.mxu0 %v6502
        %6737 = vmatpush.bf16.msra.mxu0 %v6493
        %6738 = vmatmul.bf16.gmra.mxu0 %v6181
        %v6739 = vpop.f32.mrf.mxu0
        %v6740 = vadd.f32 0.0, %v6739
        %v6741 = vpop.f32.mrf.mxu0
        %v6742 = vadd.f32 0.0, %v6741
        %6743 = vmatmul.bf16.gmra.mxu0 %v6182
        %v6744 = vpop.f32.mrf.mxu0
        %v6745 = vadd.f32 0.0, %v6744
        %v6746 = vpop.f32.mrf.mxu0
        %v6747 = vadd.f32 0.0, %v6746
        %6748 = vmatmul.bf16.gmra.mxu0 %v6183
        %v6749 = vpop.f32.mrf.mxu0
        %v6750 = vadd.f32 0.0, %v6749
        %v6751 = vpop.f32.mrf.mxu0
        %v6752 = vadd.f32 0.0, %v6751
        %6753 = vmatmul.bf16.gmra.mxu0 %v6184
        %v6754 = vpop.f32.mrf.mxu0
        %v6755 = vadd.f32 0.0, %v6754
        %v6756 = vpop.f32.mrf.mxu0
        %v6757 = vadd.f32 0.0, %v6756
        %6758 = vmatmul.bf16.gmra.mxu0 %v6185
        %v6759 = vpop.f32.mrf.mxu0
        %v6760 = vpop.f32.mrf.mxu0
        %6761 = vdwg.mxu0
        %6762 = vmatpush.bf16.msra.mxu0 %v6557
        %6763 = vmatpush.bf16.msra.mxu0 %v6548
        %6764 = vmatpush.bf16.msra.mxu0 %v6539
        %6765 = vmatpush.bf16.msra.mxu0 %v6530
        %6766 = vmatpush.bf16.msra.mxu0 %v6521
        %6767 = vmatpush.bf16.msra.mxu0 %v6512
        %6768 = vmatpush.bf16.msra.mxu0 %v6503
        %6769 = vmatpush.bf16.msra.mxu0 %v6494
        %6770 = vmatmul.bf16.gmra.mxu0 %v6181
        %v6771 = vpop.f32.mrf.mxu0
        %v6772 = vadd.f32 0.0, %v6771
        %v6773 = vpop.f32.mrf.mxu0
        %v6774 = vadd.f32 0.0, %v6773
        %6775 = vmatmul.bf16.gmra.mxu0 %v6182
        %v6776 = vpop.f32.mrf.mxu0
        %v6777 = vadd.f32 0.0, %v6776
        %v6778 = vpop.f32.mrf.mxu0
        %v6779 = vadd.f32 0.0, %v6778
        %6780 = vmatmul.bf16.gmra.mxu0 %v6183
        %v6781 = vpop.f32.mrf.mxu0
        %v6782 = vadd.f32 0.0, %v6781
        %v6783 = vpop.f32.mrf.mxu0
        %v6784 = vadd.f32 0.0, %v6783
        %6785 = vmatmul.bf16.gmra.mxu0 %v6184
        %v6786 = vpop.f32.mrf.mxu0
        %v6787 = vadd.f32 0.0, %v6786
        %v6788 = vpop.f32.mrf.mxu0
        %v6789 = vadd.f32 0.0, %v6788
        %6790 = vmatmul.bf16.gmra.mxu0 %v6185
        %v6791 = vpop.f32.mrf.mxu0
        %v6792 = vadd.f32 0.0, %v6791
        %v6793 = vpop.f32.mrf.mxu0
        %6794 = vdwg.mxu0
        %6795 = vmatpush.bf16.msra.mxu0 %v6558
        %6796 = vmatpush.bf16.msra.mxu0 %v6549
        %6797 = vmatpush.bf16.msra.mxu0 %v6540
        %6798 = vmatpush.bf16.msra.mxu0 %v6531
        %6799 = vmatpush.bf16.msra.mxu0 %v6522
        %6800 = vmatpush.bf16.msra.mxu0 %v6513
        %6801 = vmatpush.bf16.msra.mxu0 %v6504
        %6802 = vmatpush.bf16.msra.mxu0 %v6495
        %6803 = vmatmul.bf16.gmra.mxu0 %v6181
        %v6804 = vpop.f32.mrf.mxu0
        %v6805 = vpop.f32.mrf.mxu0
        %v6806 = vadd.f32 0.0, %v6805
        %6807 = vmatmul.bf16.gmra.mxu0 %v6182
        %v6808 = vpop.f32.mrf.mxu0
        %v6809 = vadd.f32 0.0, %v6808
        %v6810 = vpop.f32.mrf.mxu0
        %v6811 = vadd.f32 0.0, %v6810
        %6812 = vmatmul.bf16.gmra.mxu0 %v6183
        %v6813 = vpop.f32.mrf.mxu0
        %v6814 = vadd.f32 0.0, %v6813
        %v6815 = vpop.f32.mrf.mxu0
        %v6816 = vadd.f32 0.0, %v6815
        %6817 = vmatmul.bf16.gmra.mxu0 %v6184
        %v6818 = vpop.f32.mrf.mxu0
        %v6819 = vadd.f32 0.0, %v6818
        %v6820 = vpop.f32.mrf.mxu0
        %v6821 = vadd.f32 0.0, %v6820
        %6822 = vmatmul.bf16.gmra.mxu0 %v6185
        %v6823 = vpop.f32.mrf.mxu0
        %v6824 = vadd.f32 0.0, %v6823
        %v6825 = vpop.f32.mrf.mxu0
        %6826 = vdwg.mxu0
        %6827 = vmatpush.bf16.msra.mxu0 %v6559
        %6828 = vmatpush.bf16.msra.mxu0 %v6550
        %6829 = vmatpush.bf16.msra.mxu0 %v6541
        %6830 = vmatpush.bf16.msra.mxu0 %v6532
        %6831 = vmatpush.bf16.msra.mxu0 %v6523
        %6832 = vmatpush.bf16.msra.mxu0 %v6514
        %6833 = vmatpush.bf16.msra.mxu0 %v6505
        %6834 = vmatpush.bf16.msra.mxu0 %v6496
        %6835 = vmatmul.bf16.gmra.mxu0 %v6181
        %v6836 = vpop.f32.mrf.mxu0
        %v6837 = vpop.f32.mrf.mxu0
        %v6838 = vadd.f32 0.0, %v6837
        %6839 = vmatmul.bf16.gmra.mxu0 %v6182
        %v6840 = vpop.f32.mrf.mxu0
        %v6841 = vadd.f32 0.0, %v6840
        %v6842 = vpop.f32.mrf.mxu0
        %v6843 = vadd.f32 0.0, %v6842
        %6844 = vmatmul.bf16.gmra.mxu0 %v6183
        %v6845 = vpop.f32.mrf.mxu0
        %v6846 = vadd.f32 0.0, %v6845
        %v6847 = vpop.f32.mrf.mxu0
        %v6848 = vadd.f32 0.0, %v6847
        %6849 = vmatmul.bf16.gmra.mxu0 %v6184
        %v6850 = vpop.f32.mrf.mxu0
        %v6851 = vadd.f32 0.0, %v6850
        %v6852 = vpop.f32.mrf.mxu0
        %v6853 = vadd.f32 0.0, %v6852
        %6854 = vmatmul.bf16.gmra.mxu0 %v6185
        %v6855 = vpop.f32.mrf.mxu0
        %v6856 = vadd.f32 0.0, %v6855
        %v6857 = vpop.f32.mrf.mxu0
        %6858 = vdwg.mxu0
        %6859 = vmatpush.bf16.msra.mxu0 %v6560
        %6860 = vmatpush.bf16.msra.mxu0 %v6551
        %6861 = vmatpush.bf16.msra.mxu0 %v6542
        %6862 = vmatpush.bf16.msra.mxu0 %v6533
        %6863 = vmatpush.bf16.msra.mxu0 %v6524
        %6864 = vmatpush.bf16.msra.mxu0 %v6515
        %6865 = vmatpush.bf16.msra.mxu0 %v6506
        %6866 = vmatpush.bf16.msra.mxu0 %v6497
        %6867 = vmatmul.bf16.gmra.mxu0 %v6181
        %v6868 = vpop.f32.mrf.mxu0
        %v6869 = vpop.f32.mrf.mxu0
        %v6870 = vadd.f32 0.0, %v6869
        %6871 = vmatmul.bf16.gmra.mxu0 %v6182
        %v6872 = vpop.f32.mrf.mxu0
        %v6873 = vadd.f32 0.0, %v6872
        %v6874 = vpop.f32.mrf.mxu0
        %v6875 = vadd.f32 0.0, %v6874
        %6876 = vmatmul.bf16.gmra.mxu0 %v6183
        %v6877 = vpop.f32.mrf.mxu0
        %v6878 = vadd.f32 0.0, %v6877
        %v6879 = vpop.f32.mrf.mxu0
        %v6880 = vadd.f32 0.0, %v6879
        %6881 = vmatmul.bf16.gmra.mxu0 %v6184
        %v6882 = vpop.f32.mrf.mxu0
        %v6883 = vadd.f32 0.0, %v6882
        %v6884 = vpop.f32.mrf.mxu0
        %v6885 = vadd.f32 0.0, %v6884
        %6886 = vmatmul.bf16.gmra.mxu0 %v6185
        %v6887 = vpop.f32.mrf.mxu0
        %v6888 = vadd.f32 0.0, %v6887
        %v6889 = vpop.f32.mrf.mxu0
        %6890 = vdwg.mxu0
        %6891 = vmatpush.bf16.msra.mxu0 %v6561
        %6892 = vmatpush.bf16.msra.mxu0 %v6552
        %6893 = vmatpush.bf16.msra.mxu0 %v6543
        %6894 = vmatpush.bf16.msra.mxu0 %v6534
        %6895 = vmatpush.bf16.msra.mxu0 %v6525
        %6896 = vmatpush.bf16.msra.mxu0 %v6516
        %6897 = vmatpush.bf16.msra.mxu0 %v6507
        %6898 = vmatpush.bf16.msra.mxu0 %v6498
        %6899 = vmatmul.bf16.gmra.mxu0 %v6181
        %v6900 = vpop.f32.mrf.mxu0
        %v6901 = vpop.f32.mrf.mxu0
        %v6902 = vadd.f32 0.0, %v6901
        %6903 = vmatmul.bf16.gmra.mxu0 %v6182
        %v6904 = vpop.f32.mrf.mxu0
        %v6905 = vadd.f32 0.0, %v6904
        %v6906 = vpop.f32.mrf.mxu0
        %v6907 = vadd.f32 0.0, %v6906
        %6908 = vmatmul.bf16.gmra.mxu0 %v6183
        %v6909 = vpop.f32.mrf.mxu0
        %v6910 = vadd.f32 0.0, %v6909
        %v6911 = vpop.f32.mrf.mxu0
        %v6912 = vadd.f32 0.0, %v6911
        %6913 = vmatmul.bf16.gmra.mxu0 %v6184
        %v6914 = vpop.f32.mrf.mxu0
        %v6915 = vadd.f32 0.0, %v6914
        %v6916 = vpop.f32.mrf.mxu0
        %v6917 = vadd.f32 0.0, %v6916
        %6918 = vmatmul.bf16.gmra.mxu0 %v6185
        %v6919 = vpop.f32.mrf.mxu0
        %v6920 = vadd.f32 0.0, %v6919
        %v6921 = vpop.f32.mrf.mxu0
        %6922 = vdwg.mxu0
        %v6931 = vrot.slane %v6676, 1
        %v6932 = vrot.slane %v6678, 1
        %v6933 = vsel %vm4930, %v6931, %v6932
        %v6934 = vrot.slane %v6681, 1
        %v6935 = vsel %vm4930, %v6932, %v6934
        %v6936 = vrot.slane %v6683, 1
        %v6937 = vsel %vm4930, %v6934, %v6936
        %v6938 = vrot.slane %v6686, 1
        %v6939 = vsel %vm4930, %v6936, %v6938
        %v6940 = vrot.slane %v6688, 1
        %v6941 = vsel %vm4930, %v6938, %v6940
        %v6942 = vrot.slane %v6691, 1
        %v6943 = vsel %vm4930, %v6940, %v6942
        %v6944 = vrot.slane %v6693, 1
        %v6945 = vsel %vm4930, %v6942, %v6944
        %v6954 = vadd.f32 %v6644, %v6933
        %v6955 = vadd.f32 %v6646, %v6935
        %v6956 = vadd.f32 %v6649, %v6937
        %v6957 = vadd.f32 %v6651, %v6939
        %v6958 = vadd.f32 %v6654, %v6941
        %v6959 = vadd.f32 %v6656, %v6943
        %v6960 = vadd.f32 %v6659, %v6945
        %v6961 = vadd.f32 %v6661, %v6944
        %vm6970 = vcmask 1043456
        %v6971 = vrot.slane %v6740, 4
        %v6972 = vrot.slane %v6742, 4
        %v6973 = vsel %vm6970, %v6971, %v6972
        %v6974 = vrot.slane %v6745, 4
        %v6975 = vsel %vm6970, %v6972, %v6974
        %v6976 = vrot.slane %v6747, 4
        %v6977 = vsel %vm6970, %v6974, %v6976
        %v6978 = vrot.slane %v6750, 4
        %v6979 = vsel %vm6970, %v6976, %v6978
        %v6980 = vrot.slane %v6752, 4
        %v6981 = vsel %vm6970, %v6978, %v6980
        %v6982 = vrot.slane %v6755, 4
        %v6983 = vsel %vm6970, %v6980, %v6982
        %v6984 = vrot.slane %v6757, 4
        %v6985 = vsel %vm6970, %v6982, %v6984
        %v6994 = vadd.f32 %v6708, %v6973
        %v6995 = vadd.f32 %v6710, %v6975
        %v6996 = vadd.f32 %v6713, %v6977
        %v6997 = vadd.f32 %v6715, %v6979
        %v6998 = vadd.f32 %v6718, %v6981
        %v6999 = vadd.f32 %v6720, %v6983
        %v7000 = vadd.f32 %v6723, %v6985
        %v7001 = vadd.f32 %v6725, %v6984
        %v7010 = vrot.slane %v6806, 1
        %v7011 = vrot.slane %v6809, 1
        %v7012 = vsel %vm4930, %v7010, %v7011
        %v7013 = vrot.slane %v6811, 1
        %v7014 = vsel %vm4930, %v7011, %v7013
        %v7015 = vrot.slane %v6814, 1
        %v7016 = vsel %vm4930, %v7013, %v7015
        %v7017 = vrot.slane %v6816, 1
        %v7018 = vsel %vm4930, %v7015, %v7017
        %v7019 = vrot.slane %v6819, 1
        %v7020 = vsel %vm4930, %v7017, %v7019
        %v7021 = vrot.slane %v6821, 1
        %v7022 = vsel %vm4930, %v7019, %v7021
        %v7023 = vrot.slane %v6824, 1
        %v7024 = vsel %vm4930, %v7021, %v7023
        %v7034 = vadd.f32 %v6772, %v7010
        %v7035 = vadd.f32 %v6774, %v7012
        %v7036 = vadd.f32 %v6777, %v7014
        %v7037 = vadd.f32 %v6779, %v7016
        %v7038 = vadd.f32 %v6782, %v7018
        %v7039 = vadd.f32 %v6784, %v7020
        %v7040 = vadd.f32 %v6787, %v7022
        %v7041 = vadd.f32 %v6789, %v7024
        %v7042 = vadd.f32 %v6792, %v7023
        %v7051 = vrot.slane %v6870, 1
        %v7052 = vrot.slane %v6873, 1
        %v7053 = vsel %vm4930, %v7051, %v7052
        %v7054 = vrot.slane %v6875, 1
        %v7055 = vsel %vm4930, %v7052, %v7054
        %v7056 = vrot.slane %v6878, 1
        %v7057 = vsel %vm4930, %v7054, %v7056
        %v7058 = vrot.slane %v6880, 1
        %v7059 = vsel %vm4930, %v7056, %v7058
        %v7060 = vrot.slane %v6883, 1
        %v7061 = vsel %vm4930, %v7058, %v7060
        %v7062 = vrot.slane %v6885, 1
        %v7063 = vsel %vm4930, %v7060, %v7062
        %v7064 = vrot.slane %v6888, 1
        %v7065 = vsel %vm4930, %v7062, %v7064
        %v7074 = vadd.f32 %v6838, %v7053
        %v7075 = vadd.f32 %v6841, %v7055
        %v7076 = vadd.f32 %v6843, %v7057
        %v7077 = vadd.f32 %v6846, %v7059
        %v7078 = vadd.f32 %v6848, %v7061
        %v7079 = vadd.f32 %v6851, %v7063
        %v7080 = vadd.f32 %v6853, %v7065
        %v7081 = vadd.f32 %v6856, %v7064
        %v7090 = vrot.slane %v6994, 2
        %v7091 = vrot.slane %v6995, 2
        %v7092 = vsel %vm5296, %v7090, %v7091
        %v7093 = vrot.slane %v6996, 2
        %v7094 = vsel %vm5296, %v7091, %v7093
        %v7095 = vrot.slane %v6997, 2
        %v7096 = vsel %vm5296, %v7093, %v7095
        %v7097 = vrot.slane %v6998, 2
        %v7098 = vsel %vm5296, %v7095, %v7097
        %v7099 = vrot.slane %v6999, 2
        %v7100 = vsel %vm5296, %v7097, %v7099
        %v7101 = vrot.slane %v7000, 2
        %v7102 = vsel %vm5296, %v7099, %v7101
        %v7103 = vrot.slane %v7001, 2
        %v7104 = vsel %vm5296, %v7101, %v7103
        %v7113 = vadd.f32 %v6954, %v7092
        %v7114 = vadd.f32 %v6955, %v7094
        %v7115 = vadd.f32 %v6956, %v7096
        %v7116 = vadd.f32 %v6957, %v7098
        %v7117 = vadd.f32 %v6958, %v7100
        %v7118 = vadd.f32 %v6959, %v7102
        %v7119 = vadd.f32 %v6960, %v7104
        %v7120 = vadd.f32 %v6961, %v7103
        %vm7129 = vcmask 1042432
        %v7130 = vrot.slane %v7074, 5
        %v7131 = vrot.slane %v7075, 5
        %v7132 = vsel %vm7129, %v7130, %v7131
        %v7133 = vrot.slane %v7076, 5
        %v7134 = vsel %vm7129, %v7131, %v7133
        %v7135 = vrot.slane %v7077, 5
        %v7136 = vsel %vm7129, %v7133, %v7135
        %v7137 = vrot.slane %v7078, 5
        %v7138 = vsel %vm7129, %v7135, %v7137
        %v7139 = vrot.slane %v7079, 5
        %v7140 = vsel %vm7129, %v7137, %v7139
        %v7141 = vrot.slane %v7080, 5
        %v7142 = vsel %vm7129, %v7139, %v7141
        %v7143 = vrot.slane %v7081, 5
        %v7144 = vsel %vm7129, %v7141, %v7143
        %v7154 = vadd.f32 %v7034, %v7130
        %v7155 = vadd.f32 %v7035, %v7132
        %v7156 = vadd.f32 %v7036, %v7134
        %v7157 = vadd.f32 %v7037, %v7136
        %v7158 = vadd.f32 %v7038, %v7138
        %v7159 = vadd.f32 %v7039, %v7140
        %v7160 = vadd.f32 %v7040, %v7142
        %v7161 = vadd.f32 %v7041, %v7144
        %v7162 = vadd.f32 %v7042, %v7143
        %vm7172 = vcmask 1040384
        %v7173 = vrot.slane %v7154, 7
        %v7174 = vrot.slane %v7155, 7
        %v7175 = vsel %vm7172, %v7173, %v7174
        %v7176 = vrot.slane %v7156, 7
        %v7177 = vsel %vm7172, %v7174, %v7176
        %v7178 = vrot.slane %v7157, 7
        %v7179 = vsel %vm7172, %v7176, %v7178
        %v7180 = vrot.slane %v7158, 7
        %v7181 = vsel %vm7172, %v7178, %v7180
        %v7182 = vrot.slane %v7159, 7
        %v7183 = vsel %vm7172, %v7180, %v7182
        %v7184 = vrot.slane %v7160, 7
        %v7185 = vsel %vm7172, %v7182, %v7184
        %v7186 = vrot.slane %v7161, 7
        %v7187 = vsel %vm7172, %v7184, %v7186
        %v7188 = vrot.slane %v7162, 7
        %v7189 = vsel %vm7172, %v7186, %v7188
        %v7198 = vadd.f32 %v7113, %v7175
        %v7199 = vadd.f32 %v7114, %v7177
        %v7200 = vadd.f32 %v7115, %v7179
        %v7201 = vadd.f32 %v7116, %v7181
        %v7202 = vadd.f32 %v7117, %v7183
        %v7203 = vadd.f32 %v7118, %v7185
        %v7204 = vadd.f32 %v7119, %v7187
        %v7205 = vadd.f32 %v7120, %v7189
        %v7214 = vrot.slane %v6902, 6
        %v7215 = vrot.slane %v6905, 6
        %v7216 = vsel %vm5640, %v7214, %v7215
        %v7217 = vrot.slane %v6907, 6
        %v7218 = vsel %vm5640, %v7215, %v7217
        %v7219 = vrot.slane %v6910, 6
        %v7220 = vsel %vm5640, %v7217, %v7219
        %v7221 = vrot.slane %v6912, 6
        %v7222 = vsel %vm5640, %v7219, %v7221
        %v7223 = vrot.slane %v6915, 6
        %v7224 = vsel %vm5640, %v7221, %v7223
        %v7225 = vrot.slane %v6917, 6
        %v7226 = vsel %vm5640, %v7223, %v7225
        %v7227 = vrot.slane %v6920, 6
        %v7228 = vsel %vm5640, %v7225, %v7227
        %v7237 = vadd.f32 %v7198, %v7216
        %v7238 = vadd.f32 %v7199, %v7218
        %v7239 = vadd.f32 %v7200, %v7220
        %v7240 = vadd.f32 %v7201, %v7222
        %v7241 = vadd.f32 %v7202, %v7224
        %v7242 = vadd.f32 %v7203, %v7226
        %v7243 = vadd.f32 %v7204, %v7228
        %v7244 = vadd.f32 %v7205, %v7227
        %v7253 = vrot.slane %v7237, 1
        %v7254 = vrot.slane %v7238, 1
        %v7255 = vsel %vm4930, %v7253, %v7254
        %v7256 = vrot.slane %v7239, 1
        %v7257 = vsel %vm4930, %v7254, %v7256
        %v7258 = vrot.slane %v7240, 1
        %v7259 = vsel %vm4930, %v7256, %v7258
        %v7260 = vrot.slane %v7241, 1
        %v7261 = vrot.slane %v7242, 1
        %v7262 = vsel %vm4930, %v7260, %v7261
        %v7263 = vrot.slane %v7243, 1
        %v7264 = vsel %vm4930, %v7261, %v7263
        %v7265 = vrot.slane %v7244, 1
        %v7266 = vsel %vm4930, %v7263, %v7265
        %v7274 = vmax.f32 %v7237, %v7255
        %v7275 = vmax.f32 %v7238, %v7257
        %v7276 = vmax.f32 %v7239, %v7259
        %v7277 = vmax.f32 %v7241, %v7262
        %v7278 = vmax.f32 %v7242, %v7264
        %v7279 = vmax.f32 %v7243, %v7266
        %v7280 = vmax.f32 %v7244, %v7265
        %v7288 = vrot.slane %v7274, 6
        %v7289 = vrot.slane %v7275, 6
        %v7290 = vsel %vm5640, %v7288, %v7289
        %v7291 = vrot.slane %v7276, 6
        %v7292 = vsel %vm5640, %v7289, %v7291
        %v7293 = vrot.slane %v7277, 6
        %v7294 = vrot.slane %v7278, 6
        %v7295 = vsel %vm5640, %v7293, %v7294
        %v7296 = vrot.slane %v7279, 6
        %v7297 = vrot.slane %v7280, 6
        %v7298 = vsel %vm5640, %v7296, %v7297
        %v7303 = vmax.f32 %v7274, %v7290
        %v7304 = vmax.f32 %v7275, %v7292
        %v7305 = vmax.f32 %v7277, %v7295
        %v7306 = vmax.f32 %v7279, %v7298
        %v7308 = vrot.slane %v7303, 1
        %v7311 = vrot.slane %v7304, 2
        %v7313 = vrot.slane %v7304, 3
        %v7316 = vrot.slane %v7305, 1
        %v7319 = vrot.slane %v7306, 2
        %v7321 = vrot.slane %v7306, 3
        %v7323 = vsel %vm7172, %v7303, %v7308
        %v7324 = vsel %vm5640, %v7323, %v7311
        %v7325 = vsel %vm7129, %v7324, %v7313
        %v7326 = vsel %vm6970, %v7325, %v7305
        %v7327 = vsel %vm5525, %v7326, %v7316
        %v7328 = vsel %vm5296, %v7327, %v7319
        %v7329 = vsel %vm4930, %v7328, %v7321
        %v7330 = vld [vmem:[%s5] sm:$0x1]
        %v7332 = vperm.slane %v7330, 0
        %v7334 = vadd.f32 %v7329, %v7332
        %7335 = vst [vmem:[%s247] sm:$0xff] %v7334
        %s7336 = sand.u32 %s159, 1
        %s7337 = scalar_lea.sflag [#allocation4], %s7336
        %s7338 = sand.u32 %s159, 1
        %s7339 = smul.addr %s7338, 8
        %s7340 = scalar_lea.vmem [#allocation3], %s7339
        // Predicated region
        $region45: #{encoder_head.1} parent=43 // pred_check
          %p7341 = pneg %p169
        $region46: #{encoder_head.1} parent=43 // pred_check_branch
          %7343 = sbr.rel (%p7341) target = $region48
        $region47: #{encoder_head.1} parent=43 // pred_region
          %7345 = vsyncadd %s7337, 0
          %s7346 = smul.addr %s20, 8
          %s7347 = scalar_lea.hbm %s6, %s7346
          %s7349 = sshll.u32 %s7340, 4
          %s7350 = int_to_ptr.vmem [resolvable:$true] %s7349
          %s7351 = sshll.u32 %s7347, 4
          %s7352 = int_to_ptr.hbm [resolvable:$true] %s7351
          %7354 = dma.vmem_to_hbm [thread:$0]  %s7350, 128, %s7352, %s7337
        $region48: #{encoder_head.1} parent=43 // pred_fallthru
          _
      $region44: #{encoder_head.1} parent=5 // pred_fallthru
        _
      %p7355 = scmp.le.s32.totalorder 2, %s15
      // Predicated region
      $region49: #{encoder_head.1} parent=5 // pred_check
        %p7356 = pneg %p7355
      $region50: #{encoder_head.1} parent=5 // pred_check_branch
        %7358 = sbr.rel (%p7356) target = $region52
      $region51: #{encoder_head.1} parent=5 // pred_region
        %s7359 = ssub.s32 %s15, 2
        // Predicated region
        $region53: #{encoder_head.1} parent=51 // pred_check
          %p7360 = pneg %p175
        $region54: #{encoder_head.1} parent=51 // pred_check_branch
          %7362 = sbr.rel (%p7360) target = $region56
        $region55: #{encoder_head.1} parent=51 // pred_region
          %s7363 = sand.u32 %s160, 1
          %s7364 = scalar_lea.sflag [#allocation4], %s7363
          %s7365 = sand.u32 %s160, 1
          %s7366 = smul.addr %s7365, 8
          %s7367 = scalar_lea.vmem [#allocation3], %s7366
          %7369 = dma.done %s7364, 128
        $region56: #{encoder_head.1} parent=51 // pred_fallthru
          _
      $region52: #{encoder_head.1} parent=5 // pred_fallthru
        _
    $region6: #{encoder_head.1} parent=1 // loop_footer
      %s19 = sadd.s32 1, %s15
    $region7: #{encoder_head.1} parent=1 // loop_footer_branch
      %14 = sbr.rel target = $region3
    $region8: #{encoder_head.1} parent=1 // loop_exit
      _
    %7370 = vsyncpa [#allocation4], 1
    %s7371 = scalar_lea.sflag [#allocation4], 1
    %7372 = vsyncpa %s7371, 1

</llo_original>
